<compile_context>
chip_gen: v7x
topology: tpu7x:2x2x1
jax: 0.10.0
libtpu: 0.0.40
codegen_flags: <defaults>
</compile_context>

<pallas_src>
import functools

import jax
import jax.numpy as jnp
from jax import lax
from jax.experimental import pallas as pl
from jax.experimental.pallas import tpu as pltpu


# --------------------------------------------------------------------------
# Pallas kernels
# --------------------------------------------------------------------------
def _make_conv3x3_kernel(n_in, tr):
    """Fused 3x3 conv (pad=1) + folded-BN scale/bias + ReLU over `n_in`
    channel-concatenated inputs (each pre-padded with a 1px halo).

    ref order: x_0..x_{n-1}  (1, H+2, W+2, C_i) bf16
               w_0..w_{n-1}  (9, C_i, TCO)      bf16, taps k = dy*3 + dx
               scale, bias   (1, TCO)           f32  (folded BatchNorm)
               o             (1, H, W, TCO)     bf16
    tr: static number of output rows folded into each MXU matmul.
    """

    def kernel(*refs):
        x_refs = refs[:n_in]
        w_refs = refs[n_in:2 * n_in]
        scale_ref = refs[2 * n_in]
        bias_ref = refs[2 * n_in + 1]
        o_ref = refs[2 * n_in + 2]

        _, H, W, tco = o_ref.shape
        scale = scale_ref[...]          # hoisted out of the row-tile loop
        bias = bias_ref[...]

        for t in range(H // tr):        # static unroll over row tiles
            h0 = t * tr
            acc = None
            for i in range(n_in):       # static unroll over concat inputs
                x_ref = x_refs[i]
                w_ref = w_refs[i]
                for k in range(9):      # static unroll over the 3x3 taps
                    dy, dx = divmod(k, 3)
                    if tr == 1:
                        patch = x_ref[0, h0 + dy, pl.ds(dx, W), :]          # (W, Ci)
                    else:
                        patch = x_ref[0, pl.ds(h0 + dy, tr), pl.ds(dx, W), :]
                        patch = patch.reshape(tr * W, patch.shape[-1])      # (tr*W, Ci)
                    d = jnp.dot(patch, w_ref[k],
                                preferred_element_type=jnp.float32)
                    acc = d if acc is None else acc + d
            y = jnp.maximum(acc * scale + bias, 0.0)
            if tr == 1:
                o_ref[0, h0] = y.astype(o_ref.dtype)
            else:
                o_ref[0, pl.ds(h0, tr), :, :] = (
                    y.reshape(tr, W, tco).astype(o_ref.dtype))

    return kernel


def _dense_bn_relu_kernel(x_ref, w_ref, scale_ref, bias_ref, o_ref):
    """Exact 3x3-conv shortcut for H=W=1 layers: only the centre tap is live.

    x_ref: (B, Cin) bf16; w_ref: (Cin, TCO) bf16 (= centre tap of the 3x3);
    scale/bias: (1, TCO) f32; o_ref: (B, TCO) bf16.
    """
    y = jnp.dot(x_ref[...], w_ref[...], preferred_element_type=jnp.float32)
    o_ref[...] = jnp.maximum(y * scale_ref[...] + bias_ref[...], 0.0
                             ).astype(o_ref.dtype)


def _conv1x1_kernel(x_ref, w_ref, b_ref, o_ref):
    """1x1 conv + bias (the 'mixer'), one flattened matmul per batch element.

    x_ref: (1, H*W, Cin) bf16; w_ref: (Cin, Cout) bf16; b_ref: (1, Cout) f32
    o_ref: (1, H*W, Cout) f32
    """
    y = jnp.dot(x_ref[0], w_ref[...], preferred_element_type=jnp.float32)
    o_ref[0] = (y + b_ref[...]).astype(o_ref.dtype)


# --------------------------------------------------------------------------
# Pallas wrappers
# --------------------------------------------------------------------------
def _pick_row_tile(H, W):
    """Output rows folded per matmul: aim for M = tr*W >= 256 when the
    (tr, W, Cin) -> (tr*W, Cin) merge is layout-free for bf16 (W % 16 == 0)."""
    if W % 16 != 0:
        return 1                     # tiny deep layers: per-row matmuls
    tr = min(H, max(1, 256 // W))
    while H % tr:
        tr -= 1
    return tr


def _conv3x3_bn_relu_impl(xs, ws, scale, bias):
    """xs: list of (B,H,W,Ci) activations (channel-concat order);
    ws: matching list of (9, Ci, Cout) weights; scale/bias: (Cout,)."""
    B, H, W, _ = xs[0].shape
    Cout = ws[0].shape[2]

    xps, wps, cis = [], [], []
    for x, w in zip(xs, ws):
        cin = x.shape[3]
        pc = (-cin) % 8              # lane-pad tiny channel counts (Cin=3)
        xp = jnp.pad(x.astype(jnp.bfloat16), ((0, 0), (1, 1), (1, 1), (0, pc)))
        wp = jnp.pad(w, ((0, 0), (0, pc), (0, 0))) if pc else w
        xps.append(xp)
        wps.append(wp.astype(jnp.bfloat16))
        cis.append(cin + pc)

    tco = min(Cout, 256)             # Cout tile matching the 256-wide MXU
    tr = _pick_row_tile(H, W)
    n_in = len(xs)
    kern = _make_conv3x3_kernel(n_in, tr)
    scale2 = scale.reshape(1, Cout).astype(jnp.float32)
    bias2 = bias.reshape(1, Cout).astype(jnp.float32)

    in_specs = (
        [pl.BlockSpec((1, H + 2, W + 2, ci), lambda j, b: (b, 0, 0, 0))
         for ci in cis]
        + [pl.BlockSpec((9, ci, tco), lambda j, b: (0, 0, j)) for ci in cis]
        + [pl.BlockSpec((1, tco), lambda j, b: (0, j)),
           pl.BlockSpec((1, tco), lambda j, b: (0, j))])

    return pl.pallas_call(
        kern,
        out_shape=jax.ShapeDtypeStruct((B, H, W, Cout), jnp.bfloat16),
        grid_spec=pltpu.PrefetchScalarGridSpec(
            num_scalar_prefetch=0,
            # Batch is the innermost grid axis so the bf16 weight blocks (and
            # scale/bias) stay VMEM-resident across batch elements; both axes
            # are "parallel" so v7x can shard across its two TensorCores.
            grid=(Cout // tco, B),
            in_specs=in_specs,
            out_specs=pl.BlockSpec((1, H, W, tco), lambda j, b: (b, 0, 0, j)),
        ),
        compiler_params=pltpu.CompilerParams(
            dimension_semantics=("parallel", "parallel"),
            vmem_limit_bytes=32 * 1024 * 1024),
    )(*xps, *wps, scale2, bias2)


def conv3x3_bn_relu(x, w, scale, bias):
    """Single-input ConvBlock3: x (B,H,W,Cin), w (9,Cin,Cout)."""
    return _conv3x3_bn_relu_impl([x], [w], scale, bias)


def conv3x3_bn_relu_cat(xs, w, scale, bias):
    """ConvBlock3 applied to concat(xs, channel-axis) without materializing
    the concat: the (9, sum(Ci), Cout) weights are split per input."""
    ws, off = [], 0
    for x in xs:
        c = x.shape[3]
        ws.append(w[:, off:off + c, :])
        off += c
    return _conv3x3_bn_relu_impl(xs, ws, scale, bias)


def dense_bn_relu(x, w9, scale, bias):
    """Exact ConvBlock3 for H=W=1 inputs (center / decoder5): with pad=1 only
    the centre tap multiplies non-zero data, so fetch 1/9 of the weights and
    run one batched matmul.  x: (B,1,1,Cin); w9: (9,Cin,Cout)."""
    B, _, _, Cin = x.shape
    Cout = w9.shape[2]
    x2 = x.reshape(B, Cin).astype(jnp.bfloat16)
    wc = w9[4].astype(jnp.bfloat16)                  # centre tap only
    tco = min(Cout, 256)

    out = pl.pallas_call(
        _dense_bn_relu_kernel,
        out_shape=jax.ShapeDtypeStruct((B, Cout), jnp.bfloat16),
        grid_spec=pltpu.PrefetchScalarGridSpec(
            num_scalar_prefetch=0,
            grid=(Cout // tco,),
            in_specs=[
                pl.BlockSpec((B, Cin), lambda j: (0, 0)),
                pl.BlockSpec((Cin, tco), lambda j: (0, j)),
                pl.BlockSpec((1, tco), lambda j: (0, j)),
                pl.BlockSpec((1, tco), lambda j: (0, j)),
            ],
            out_specs=pl.BlockSpec((B, tco), lambda j: (0, j)),
        ),
        compiler_params=pltpu.CompilerParams(
            dimension_semantics=("parallel",)),
    )(x2, wc, scale.reshape(1, Cout).astype(jnp.float32),
      bias.reshape(1, Cout).astype(jnp.float32))
    return out.reshape(B, 1, 1, Cout)


def conv1x1(x, w, b):
    """Mixer: x (B,H,W,Cin) -> (B,H,W,Cout) f32, one flattened matmul/batch."""
    B, H, W, Cin = x.shape
    Cout = w.shape[1]
    hw = H * W
    xf = x.reshape(B, hw, Cin).astype(jnp.bfloat16)

    out = pl.pallas_call(
        _conv1x1_kernel,
        out_shape=jax.ShapeDtypeStruct((B, hw, Cout), jnp.float32),
        grid_spec=pltpu.PrefetchScalarGridSpec(
            num_scalar_prefetch=0,
            grid=(B,),
            in_specs=[
                pl.BlockSpec((1, hw, Cin), lambda bb: (bb, 0, 0)),
                pl.BlockSpec((Cin, Cout), lambda bb: (0, 0)),
                pl.BlockSpec((1, Cout), lambda bb: (0, 0)),
            ],
            out_specs=pl.BlockSpec((1, hw, Cout), lambda bb: (bb, 0, 0)),
        ),
        compiler_params=pltpu.CompilerParams(dimension_semantics=("parallel",)),
    )(xf, w.astype(jnp.bfloat16), b.reshape(1, Cout).astype(jnp.float32))
    return out.reshape(B, H, W, Cout)


# --------------------------------------------------------------------------
# Cheap memory-bound glue (plain JAX, bf16): maxpool, bilinear upsample
# --------------------------------------------------------------------------
def maxpool2(x):
    """2x2 stride-2 max pool, NHWC (H and W assumed even, as in VGG use)."""
    B, H, W, C = x.shape
    return x.reshape(B, H // 2, 2, W // 2, 2, C).max(axis=(2, 4))


def bilinear_upsample(x, out_h, out_w):
    """F.interpolate(mode='bilinear', align_corners=True), NHWC."""
    B, H, W, C = x.shape
    if (H, W) == (out_h, out_w):     # identity: skip the gather entirely
        return x
    dtype = x.dtype
    xf = x.astype(jnp.float32)

    def coords(out_size, in_size):
        if out_size == 1:
            src = jnp.zeros((1,), jnp.float32)
        else:
            src = jnp.arange(out_size, dtype=jnp.float32) * (
                (in_size - 1) / (out_size - 1))
        i0 = jnp.clip(jnp.floor(src).astype(jnp.int32), 0, in_size - 1)
        i1 = jnp.clip(i0 + 1, 0, in_size - 1)
        frac = src - i0.astype(jnp.float32)
        return i0, i1, frac

    h0, h1, fh = coords(out_h, H)
    w0, w1, fw = coords(out_w, W)
    fh_ = fh[None, :, None, None]
    xh = xf[:, h0] * (1.0 - fh_) + xf[:, h1] * fh_
    fw_ = fw[None, None, :, None]
    y = xh[:, :, w0] * (1.0 - fw_) + xh[:, :, w1] * fw_
    return y.astype(dtype)


# --------------------------------------------------------------------------
# Parameters (deterministic synthetic init; shapes follow vgg19_bn + U-Net)
# --------------------------------------------------------------------------
MODEL_CFG = {
    "encoder1": [(3, 64), (64, 64)],
    "encoder2": [(64, 128), (128, 128)],
    "encoder3": [(128, 256), (256, 256), (256, 256), (256, 256)],
    "encoder4": [(256, 512), (512, 512), (512, 512), (512, 512)],
    "encoder5": [(512, 512), (512, 512), (512, 512), (512, 512)],
    "center":   [(512, 512), (512, 512)],
    "decoder5": [(1024, 512), (512, 512)],
    "decoder4": [(1024, 256), (256, 256)],
    "decoder3": [(512, 128), (128, 128)],
    "decoder2": [(256, 64), (64, 64)],
    "decoder1": [(128, 64), (64, 64)],
}
BN_EPS = 1e-5


def _conv_block_params(key, cin, cout):
    kw, kb, kg, kbe, km, kv = jax.random.split(key, 6)
    std = (2.0 / (cin * 9)) ** 0.5
    # TODO(synk): int8 (v5e/v6e) or fp8 (v7x) weight quantization would halve
    #             the dominant weight-DMA traffic; kept bf16 for portability.
    w = (jax.random.normal(kw, (3, 3, cin, cout), jnp.float32) * std
         ).reshape(9, cin, cout).astype(jnp.bfloat16)       # bf16 weights in HBM
    conv_b = 0.01 * jax.random.normal(kb, (cout,), jnp.float32)
    gamma = 1.0 + 0.1 * jax.random.normal(kg, (cout,), jnp.float32)
    beta = 0.05 * jax.random.normal(kbe, (cout,), jnp.float32)
    mean = 0.05 * jax.random.normal(km, (cout,), jnp.float32)
    var = 1.0 + 0.1 * jax.random.uniform(kv, (cout,), jnp.float32)
    scale = gamma / jnp.sqrt(var + BN_EPS)
    bias = (conv_b - mean) * scale + beta
    return {"w": w, "scale": scale, "bias": bias}


def init_params(key, output_channels=1):
    params = {}
    for name, blocks in MODEL_CFG.items():
        key, sub = jax.random.split(key)
        bkeys = jax.random.split(sub, len(blocks))
        params[name] = [_conv_block_params(k, ci, co)
                        for k, (ci, co) in zip(bkeys, blocks)]
    key, kw, kb = jax.random.split(key, 3)
    params["mixer_w"] = jax.random.normal(
        kw, (64, output_channels), jnp.float32) * (2.0 / 64.0) ** 0.5
    params["mixer_b"] = 0.01 * jax.random.normal(
        kb, (output_channels,), jnp.float32)
    return params


# --------------------------------------------------------------------------
# Forward pass (mirrors VGG19BNUnet.forward)
# --------------------------------------------------------------------------
def _apply_block(x, p):
    if x.shape[1] == 1 and x.shape[2] == 1:      # exact single-tap shortcut
        return dense_bn_relu(x, p["w"], p["scale"], p["bias"])
    return conv3x3_bn_relu(x, p["w"], p["scale"], p["bias"])


def _seq(x, blocks):
    for p in blocks:
        x = _apply_block(x, p)
    return x


def forward(params, x_nchw):
    x = jnp.transpose(x_nchw, (0, 2, 3, 1)).astype(jnp.bfloat16)   # -> NHWC
    in0 = jnp.concatenate([x, x, x], axis=-1)                      # cat(tmp,tmp,tmp)

    in1 = _seq(in0, params["encoder1"])
    in2 = _seq(maxpool2(in1), params["encoder2"])
    in3 = _seq(maxpool2(in2), params["encoder3"])
    in4 = _seq(maxpool2(in3), params["encoder4"])
    in5 = maxpool2(_seq(maxpool2(in4), params["encoder5"]))
    cen = _seq(in5, params["center"])

    def decode(x_big, xs, blocks):
        x_ups = bilinear_upsample(xs, x_big.shape[1], x_big.shape[2])
        first, rest = blocks[0], blocks[1:]
        if x_big.shape[1] == 1 and x_big.shape[2] == 1:
            y = dense_bn_relu(jnp.concatenate([x_ups, x_big], axis=-1),
                              first["w"], first["scale"], first["bias"])
        else:
            # concat fused into the first decoder conv (two dot chains).
            y = conv3x3_bn_relu_cat([x_ups, x_big], first["w"],
                                    first["scale"], first["bias"])
        for p in rest:
            y = _apply_block(y, p)
        return y

    out5 = decode(in5, cen, params["decoder5"])
    out4 = decode(in4, out5, params["decoder4"])
    out3 = decode(in3, out4, params["decoder3"])
    out2 = decode(in2, out3, params["decoder2"])
    out1 = decode(in1, out2, params["decoder1"])

    ret = conv1x1(out1, params["mixer_w"], params["mixer_b"])      # f32 NHWC
    ret_up = bilinear_upsample(ret, x_nchw.shape[2], x_nchw.shape[3])
    return jnp.transpose(ret_up, (0, 3, 1, 2))                     # -> NCHW


# --------------------------------------------------------------------------
# Self-check helpers (Pallas kernels vs. XLA conv reference)
# --------------------------------------------------------------------------
def _conv_ref(x, w9, scale, bias):
    cin, cout = w9.shape[1], w9.shape[2]
    w = w9.astype(jnp.float32).reshape(3, 3, cin, cout)
    y = lax.conv_general_dilated(
        x, w, window_strides=(1, 1), padding="SAME",
        dimension_numbers=("NHWC", "HWIO", "NHWC"))
    return jnp.maximum(y * scale + bias, 0.0)


def _rand_block(key, cin, cout):
    k2, k3, k4 = jax.random.split(key, 3)
    wc = (jax.random.normal(k2, (9, cin, cout), jnp.float32)
          * (2.0 / (cin * 9)) ** 0.5).astype(jnp.bfloat16)
    sc = 1.0 + 0.1 * jax.random.normal(k3, (cout,), jnp.float32)
    bc = 0.1 * jax.random.normal(k4, (cout,), jnp.float32)
    return wc, sc, bc


def _bf16r(x):
    return x.astype(jnp.bfloat16).astype(jnp.float32)


def _check_conv(b, h, w_, cin, cout, key):
    k1, kr = jax.random.split(key)
    xc = jax.random.normal(k1, (b, h, w_, cin), jnp.float32)
    wc, sc, bc = _rand_block(kr, cin, cout)
    got = conv3x3_bn_relu(xc, wc, sc, bc).astype(jnp.float32)
    want = _conv_ref(_bf16r(xc), wc, sc, bc)
    assert jnp.allclose(got, want, rtol=5e-2, atol=5e-2), (
        float(jnp.max(jnp.abs(got - want))))


def _check_conv_cat(b, h, w_, ca, cb, cout, key):
    k1, k2, kr = jax.random.split(key, 3)
    xa = jax.random.normal(k1, (b, h, w_, ca), jnp.float32)
    xb = jax.random.normal(k2, (b, h, w_, cb), jnp.float32)
    wc, sc, bc = _rand_block(kr, ca + cb, cout)
    got = conv3x3_bn_relu_cat([xa, xb], wc, sc, bc).astype(jnp.float32)
    want = _conv_ref(_bf16r(jnp.concatenate([xa, xb], -1)), wc, sc, bc)
    assert jnp.allclose(got, want, rtol=5e-2, atol=5e-2), (
        float(jnp.max(jnp.abs(got - want))))


def _check_dense(b, cin, cout, key):
    k1, kr = jax.random.split(key)
    xc = jax.random.normal(k1, (b, 1, 1, cin), jnp.float32)
    wc, sc, bc = _rand_block(kr, cin, cout)
    got = dense_bn_relu(xc, wc, sc, bc).astype(jnp.float32)
    want = _conv_ref(_bf16r(xc), wc, sc, bc)       # only centre tap is live
    assert jnp.allclose(got, want, rtol=5e-2, atol=5e-2), (
        float(jnp.max(jnp.abs(got - want))))


# --------------------------------------------------------------------------
if __name__ == "__main__":
    key = jax.random.PRNGKey(0)
    pkey, xkey, c1, c2, c3, c4 = jax.random.split(key, 6)

    # Correctness of every Pallas conv variant against the XLA conv reference:
    _check_conv(2, 16, 16, 3, 64, c1)        # Cin lane-pad + row-tiled path
    _check_conv(2, 4, 4, 64, 512, c2)        # per-row path + Cout tiling
    _check_conv_cat(2, 8, 8, 32, 32, 64, c3)  # fused-concat decoder conv
    _check_dense(2, 512, 512, c4)            # 1x1-spatial single-tap shortcut

    params = init_params(pkey, output_channels=1)

    # x: NCHW single-channel image (forward tiles it to 3 channels internally).
    x = jax.random.normal(xkey, (2, 1, 32, 32), jnp.float32)

    y = jax.jit(forward)(params, x)
    jax.block_until_ready(y)
    assert y.shape == (2, 1, 32, 32), y.shape
    assert bool(jnp.all(jnp.isfinite(y)))
    print("KERNEL_OK")
</pallas_src>

<mosaic_0001>
module attributes {stable_mosaic.version = 11 : i64} {
  func.func @kernel(%arg0: i32, %arg1: i32, %arg2: memref<1x18x18x8xbf16, #tpu.memory_space<vmem>>, %arg3: memref<9x8x64xbf16, #tpu.memory_space<vmem>>, %arg4: memref<1x64xf32, #tpu.memory_space<vmem>>, %arg5: memref<1x64xf32, #tpu.memory_space<vmem>>, %arg6: memref<1x16x16x64xbf16, #tpu.memory_space<vmem>>) attributes {dimension_semantics = [#tpu.dimension_semantics<parallel>, #tpu.dimension_semantics<parallel>], iteration_bounds = array<i64: 1, 2>, scalar_prefetch = 0 : i64, scratch_operands = 0 : i64, tpu.core_type = #tpu.core_type<tc>, window_params = [{transform_indices = @transform_0, window_bounds = array<i64: 1, 18, 18, 8>}, {transform_indices = @transform_1, window_bounds = array<i64: 9, 8, 64>}, {transform_indices = @transform_2, window_bounds = array<i64: 1, 64>}, {transform_indices = @transform_3, window_bounds = array<i64: 1, 64>}, {transform_indices = @transform_4, window_bounds = array<i64: 1, 16, 16, 64>}]} {
    %c0 = arith.constant 0 : index
    %c0_0 = arith.constant 0 : index
    %0 = vector.load %arg4[%c0, %c0_0] : memref<1x64xf32, #tpu.memory_space<vmem>>, vector<1x64xf32>
    %c0_1 = arith.constant 0 : index
    %c0_2 = arith.constant 0 : index
    %1 = vector.load %arg5[%c0_1, %c0_2] : memref<1x64xf32, #tpu.memory_space<vmem>>, vector<1x64xf32>
    %c0_3 = arith.constant 0 : index
    %c0_4 = arith.constant 0 : index
    %c0_5 = arith.constant 0 : index
    %c0_6 = arith.constant 0 : index
    %2 = vector.load %arg2[%c0_3, %c0_4, %c0_5, %c0_6] : memref<1x18x18x8xbf16, #tpu.memory_space<vmem>>, vector<1x16x16x8xbf16>
    %3 = vector.shape_cast %2 : vector<1x16x16x8xbf16> to vector<16x16x8xbf16>
    %4 = vector.shape_cast %3 : vector<16x16x8xbf16> to vector<256x8xbf16>
    %c0_7 = arith.constant 0 : index
    %c0_8 = arith.constant 0 : index
    %c0_9 = arith.constant 0 : index
    %5 = vector.load %arg3[%c0_7, %c0_8, %c0_9] : memref<9x8x64xbf16, #tpu.memory_space<vmem>>, vector<1x8x64xbf16>
    %6 = vector.shape_cast %5 : vector<1x8x64xbf16> to vector<8x64xbf16>
    %cst = arith.constant dense<0.000000e+00> : vector<256x64xf32>
    %7 = tpu.matmul %4, %6, %cst {dimension_numbers = #tpu.dot_dimension_numbers<[1], [0], [0], [1], [0, 0, 1, 1], [], []>} : vector<256x8xbf16>, vector<8x64xbf16>, vector<256x64xf32> -> vector<256x64xf32>
    %c0_10 = arith.constant 0 : index
    %c0_11 = arith.constant 0 : index
    %c1 = arith.constant 1 : index
    %c0_12 = arith.constant 0 : index
    %8 = vector.load %arg2[%c0_10, %c0_11, %c1, %c0_12] : memref<1x18x18x8xbf16, #tpu.memory_space<vmem>>, vector<1x16x16x8xbf16>
    %9 = vector.shape_cast %8 : vector<1x16x16x8xbf16> to vector<16x16x8xbf16>
    %10 = vector.shape_cast %9 : vector<16x16x8xbf16> to vector<256x8xbf16>
    %c1_13 = arith.constant 1 : index
    %c0_14 = arith.constant 0 : index
    %c0_15 = arith.constant 0 : index
    %11 = vector.load %arg3[%c1_13, %c0_14, %c0_15] : memref<9x8x64xbf16, #tpu.memory_space<vmem>>, vector<1x8x64xbf16>
    %12 = vector.shape_cast %11 : vector<1x8x64xbf16> to vector<8x64xbf16>
    %cst_16 = arith.constant dense<0.000000e+00> : vector<256x64xf32>
    %13 = tpu.matmul %10, %12, %cst_16 {dimension_numbers = #tpu.dot_dimension_numbers<[1], [0], [0], [1], [0, 0, 1, 1], [], []>} : vector<256x8xbf16>, vector<8x64xbf16>, vector<256x64xf32> -> vector<256x64xf32>
    %14 = arith.addf %7, %13 : vector<256x64xf32>
    %c0_17 = arith.constant 0 : index
    %c0_18 = arith.constant 0 : index
    %c2 = arith.constant 2 : index
    %c0_19 = arith.constant 0 : index
    %15 = vector.load %arg2[%c0_17, %c0_18, %c2, %c0_19] : memref<1x18x18x8xbf16, #tpu.memory_space<vmem>>, vector<1x16x16x8xbf16>
    %16 = vector.shape_cast %15 : vector<1x16x16x8xbf16> to vector<16x16x8xbf16>
    %17 = vector.shape_cast %16 : vector<16x16x8xbf16> to vector<256x8xbf16>
    %c2_20 = arith.constant 2 : index
    %c0_21 = arith.constant 0 : index
    %c0_22 = arith.constant 0 : index
    %18 = vector.load %arg3[%c2_20, %c0_21, %c0_22] : memref<9x8x64xbf16, #tpu.memory_space<vmem>>, vector<1x8x64xbf16>
    %19 = vector.shape_cast %18 : vector<1x8x64xbf16> to vector<8x64xbf16>
    %cst_23 = arith.constant dense<0.000000e+00> : vector<256x64xf32>
    %20 = tpu.matmul %17, %19, %cst_23 {dimension_numbers = #tpu.dot_dimension_numbers<[1], [0], [0], [1], [0, 0, 1, 1], [], []>} : vector<256x8xbf16>, vector<8x64xbf16>, vector<256x64xf32> -> vector<256x64xf32>
    %21 = arith.addf %14, %20 : vector<256x64xf32>
    %c0_24 = arith.constant 0 : index
    %c1_25 = arith.constant 1 : index
    %c0_26 = arith.constant 0 : index
    %c0_27 = arith.constant 0 : index
    %22 = vector.load %arg2[%c0_24, %c1_25, %c0_26, %c0_27] : memref<1x18x18x8xbf16, #tpu.memory_space<vmem>>, vector<1x16x16x8xbf16>
    %23 = vector.shape_cast %22 : vector<1x16x16x8xbf16> to vector<16x16x8xbf16>
    %24 = vector.shape_cast %23 : vector<16x16x8xbf16> to vector<256x8xbf16>
    %c3 = arith.constant 3 : index
    %c0_28 = arith.constant 0 : index
    %c0_29 = arith.constant 0 : index
    %25 = vector.load %arg3[%c3, %c0_28, %c0_29] : memref<9x8x64xbf16, #tpu.memory_space<vmem>>, vector<1x8x64xbf16>
    %26 = vector.shape_cast %25 : vector<1x8x64xbf16> to vector<8x64xbf16>
    %cst_30 = arith.constant dense<0.000000e+00> : vector<256x64xf32>
    %27 = tpu.matmul %24, %26, %cst_30 {dimension_numbers = #tpu.dot_dimension_numbers<[1], [0], [0], [1], [0, 0, 1, 1], [], []>} : vector<256x8xbf16>, vector<8x64xbf16>, vector<256x64xf32> -> vector<256x64xf32>
    %28 = arith.addf %21, %27 : vector<256x64xf32>
    %c0_31 = arith.constant 0 : index
    %c1_32 = arith.constant 1 : index
    %c1_33 = arith.constant 1 : index
    %c0_34 = arith.constant 0 : index
    %29 = vector.load %arg2[%c0_31, %c1_32, %c1_33, %c0_34] : memref<1x18x18x8xbf16, #tpu.memory_space<vmem>>, vector<1x16x16x8xbf16>
    %30 = vector.shape_cast %29 : vector<1x16x16x8xbf16> to vector<16x16x8xbf16>
    %31 = vector.shape_cast %30 : vector<16x16x8xbf16> to vector<256x8xbf16>
    %c4 = arith.constant 4 : index
    %c0_35 = arith.constant 0 : index
    %c0_36 = arith.constant 0 : index
    %32 = vector.load %arg3[%c4, %c0_35, %c0_36] : memref<9x8x64xbf16, #tpu.memory_space<vmem>>, vector<1x8x64xbf16>
    %33 = vector.shape_cast %32 : vector<1x8x64xbf16> to vector<8x64xbf16>
    %cst_37 = arith.constant dense<0.000000e+00> : vector<256x64xf32>
    %34 = tpu.matmul %31, %33, %cst_37 {dimension_numbers = #tpu.dot_dimension_numbers<[1], [0], [0], [1], [0, 0, 1, 1], [], []>} : vector<256x8xbf16>, vector<8x64xbf16>, vector<256x64xf32> -> vector<256x64xf32>
    %35 = arith.addf %28, %34 : vector<256x64xf32>
    %c0_38 = arith.constant 0 : index
    %c1_39 = arith.constant 1 : index
    %c2_40 = arith.constant 2 : index
    %c0_41 = arith.constant 0 : index
    %36 = vector.load %arg2[%c0_38, %c1_39, %c2_40, %c0_41] : memref<1x18x18x8xbf16, #tpu.memory_space<vmem>>, vector<1x16x16x8xbf16>
    %37 = vector.shape_cast %36 : vector<1x16x16x8xbf16> to vector<16x16x8xbf16>
    %38 = vector.shape_cast %37 : vector<16x16x8xbf16> to vector<256x8xbf16>
    %c5 = arith.constant 5 : index
    %c0_42 = arith.constant 0 : index
    %c0_43 = arith.constant 0 : index
    %39 = vector.load %arg3[%c5, %c0_42, %c0_43] : memref<9x8x64xbf16, #tpu.memory_space<vmem>>, vector<1x8x64xbf16>
    %40 = vector.shape_cast %39 : vector<1x8x64xbf16> to vector<8x64xbf16>
    %cst_44 = arith.constant dense<0.000000e+00> : vector<256x64xf32>
    %41 = tpu.matmul %38, %40, %cst_44 {dimension_numbers = #tpu.dot_dimension_numbers<[1], [0], [0], [1], [0, 0, 1, 1], [], []>} : vector<256x8xbf16>, vector<8x64xbf16>, vector<256x64xf32> -> vector<256x64xf32>
    %42 = arith.addf %35, %41 : vector<256x64xf32>
    %c0_45 = arith.constant 0 : index
    %c2_46 = arith.constant 2 : index
    %c0_47 = arith.constant 0 : index
    %c0_48 = arith.constant 0 : index
    %43 = vector.load %arg2[%c0_45, %c2_46, %c0_47, %c0_48] : memref<1x18x18x8xbf16, #tpu.memory_space<vmem>>, vector<1x16x16x8xbf16>
    %44 = vector.shape_cast %43 : vector<1x16x16x8xbf16> to vector<16x16x8xbf16>
    %45 = vector.shape_cast %44 : vector<16x16x8xbf16> to vector<256x8xbf16>
    %c6 = arith.constant 6 : index
    %c0_49 = arith.constant 0 : index
    %c0_50 = arith.constant 0 : index
    %46 = vector.load %arg3[%c6, %c0_49, %c0_50] : memref<9x8x64xbf16, #tpu.memory_space<vmem>>, vector<1x8x64xbf16>
    %47 = vector.shape_cast %46 : vector<1x8x64xbf16> to vector<8x64xbf16>
    %cst_51 = arith.constant dense<0.000000e+00> : vector<256x64xf32>
    %48 = tpu.matmul %45, %47, %cst_51 {dimension_numbers = #tpu.dot_dimension_numbers<[1], [0], [0], [1], [0, 0, 1, 1], [], []>} : vector<256x8xbf16>, vector<8x64xbf16>, vector<256x64xf32> -> vector<256x64xf32>
    %49 = arith.addf %42, %48 : vector<256x64xf32>
    %c0_52 = arith.constant 0 : index
    %c2_53 = arith.constant 2 : index
    %c1_54 = arith.constant 1 : index
    %c0_55 = arith.constant 0 : index
    %50 = vector.load %arg2[%c0_52, %c2_53, %c1_54, %c0_55] : memref<1x18x18x8xbf16, #tpu.memory_space<vmem>>, vector<1x16x16x8xbf16>
    %51 = vector.shape_cast %50 : vector<1x16x16x8xbf16> to vector<16x16x8xbf16>
    %52 = vector.shape_cast %51 : vector<16x16x8xbf16> to vector<256x8xbf16>
    %c7 = arith.constant 7 : index
    %c0_56 = arith.constant 0 : index
    %c0_57 = arith.constant 0 : index
    %53 = vector.load %arg3[%c7, %c0_56, %c0_57] : memref<9x8x64xbf16, #tpu.memory_space<vmem>>, vector<1x8x64xbf16>
    %54 = vector.shape_cast %53 : vector<1x8x64xbf16> to vector<8x64xbf16>
    %cst_58 = arith.constant dense<0.000000e+00> : vector<256x64xf32>
    %55 = tpu.matmul %52, %54, %cst_58 {dimension_numbers = #tpu.dot_dimension_numbers<[1], [0], [0], [1], [0, 0, 1, 1], [], []>} : vector<256x8xbf16>, vector<8x64xbf16>, vector<256x64xf32> -> vector<256x64xf32>
    %56 = arith.addf %49, %55 : vector<256x64xf32>
    %c0_59 = arith.constant 0 : index
    %c2_60 = arith.constant 2 : index
    %c2_61 = arith.constant 2 : index
    %c0_62 = arith.constant 0 : index
    %57 = vector.load %arg2[%c0_59, %c2_60, %c2_61, %c0_62] : memref<1x18x18x8xbf16, #tpu.memory_space<vmem>>, vector<1x16x16x8xbf16>
    %58 = vector.shape_cast %57 : vector<1x16x16x8xbf16> to vector<16x16x8xbf16>
    %59 = vector.shape_cast %58 : vector<16x16x8xbf16> to vector<256x8xbf16>
    %c8 = arith.constant 8 : index
    %c0_63 = arith.constant 0 : index
    %c0_64 = arith.constant 0 : index
    %60 = vector.load %arg3[%c8, %c0_63, %c0_64] : memref<9x8x64xbf16, #tpu.memory_space<vmem>>, vector<1x8x64xbf16>
    %61 = vector.shape_cast %60 : vector<1x8x64xbf16> to vector<8x64xbf16>
    %cst_65 = arith.constant dense<0.000000e+00> : vector<256x64xf32>
    %62 = tpu.matmul %59, %61, %cst_65 {dimension_numbers = #tpu.dot_dimension_numbers<[1], [0], [0], [1], [0, 0, 1, 1], [], []>} : vector<256x8xbf16>, vector<8x64xbf16>, vector<256x64xf32> -> vector<256x64xf32>
    %63 = arith.addf %56, %62 : vector<256x64xf32>
    %64 = vector.broadcast %0 : vector<1x64xf32> to vector<256x64xf32>
    %65 = arith.mulf %63, %64 : vector<256x64xf32>
    %66 = vector.broadcast %1 : vector<1x64xf32> to vector<256x64xf32>
    %67 = arith.addf %65, %66 : vector<256x64xf32>
    %cst_66 = arith.constant 0.000000e+00 : f32
    %68 = vector.broadcast %cst_66 : f32 to vector<256x64xf32>
    %69 = arith.maximumf %67, %68 : vector<256x64xf32>
    %70 = vector.shape_cast %69 : vector<256x64xf32> to vector<16x16x64xf32>
    %71 = arith.truncf %70 : vector<16x16x64xf32> to vector<16x16x64xbf16>
    %c0_67 = arith.constant 0 : index
    %c0_68 = arith.constant 0 : index
    %c0_69 = arith.constant 0 : index
    %c0_70 = arith.constant 0 : index
    %72 = vector.load %arg6[%c0_67, %c0_68, %c0_69, %c0_70] : memref<1x16x16x64xbf16, #tpu.memory_space<vmem>>, vector<1x16x16x64xbf16>
    %73 = vector.shape_cast %72 : vector<1x16x16x64xbf16> to vector<16x16x64xbf16>
    %74 = vector.shape_cast %71 : vector<16x16x64xbf16> to vector<1x16x16x64xbf16>
    tpu.vector_store %arg6[%c0_67, %c0_68, %c0_69, %c0_70], %74 {strides = array<i32>} : memref<1x16x16x64xbf16, #tpu.memory_space<vmem>>, vector<1x16x16x64xbf16>,
    return
  }
  func.func @transform_0(%arg0: i32, %arg1: i32) -> (i32, i32, i32, i32) {
    %c0_i32 = arith.constant 0 : i32
    %c0_i32_0 = arith.constant 0 : i32
    %c0_i32_1 = arith.constant 0 : i32
    %c0_i32_2 = arith.constant 0 : i32
    return %arg1, %c0_i32, %c0_i32_0, %c0_i32_1 : i32, i32, i32, i32
  }
  func.func @transform_1(%arg0: i32, %arg1: i32) -> (i32, i32, i32) {
    %c0_i32 = arith.constant 0 : i32
    %c0_i32_0 = arith.constant 0 : i32
    %c0_i32_1 = arith.constant 0 : i32
    return %c0_i32, %c0_i32_0, %arg0 : i32, i32, i32
  }
  func.func @transform_2(%arg0: i32, %arg1: i32) -> (i32, i32) {
    %c0_i32 = arith.constant 0 : i32
    %c0_i32_0 = arith.constant 0 : i32
    return %c0_i32, %arg0 : i32, i32
  }
  func.func @transform_3(%arg0: i32, %arg1: i32) -> (i32, i32) {
    %c0_i32 = arith.constant 0 : i32
    %c0_i32_0 = arith.constant 0 : i32
    return %c0_i32, %arg0 : i32, i32
  }
  func.func @transform_4(%arg0: i32, %arg1: i32) -> (i32, i32, i32, i32) {
    %c0_i32 = arith.constant 0 : i32
    %c0_i32_0 = arith.constant 0 : i32
    %c0_i32_1 = arith.constant 0 : i32
    return %arg1, %c0_i32, %c0_i32_0, %arg0 : i32, i32, i32, i32
  }
}

</mosaic_0001>

<llo_original>
// kernel: tpu_custom_call.1
$region0: #{tpu_custom_call.1}
  #allocation0 [shape = 'u32[]', space=smem, size = 0x4, offset = 0x4, fixed_abs, tag = 'smem constant byte address 0x4 - core index']
  #allocation1 [shape = 'u32[144,128]{1,0:T(1,128)}', space=vmem, size = 0x12000, scoped, tag = 'internal scratch']
  %s0 = inlined_call_operand.vmem [shape: bf16[2,18,18,8], index: 0, kind: input, shape index: {}]
  %s1 = inlined_call_operand.vmem [shape: bf16[9,8,64], index: 1, kind: input, shape index: {}]
  %s2 = inlined_call_operand.vmem [shape: f32[1,64], index: 2, kind: input, shape index: {}]
  %s3 = inlined_call_operand.vmem [shape: f32[1,64], index: 3, kind: input, shape index: {}]
  %s4 = inlined_call_operand.hbm [shape: bf16[2,16,16,64], index: 4, kind: output, shape index: {}]
  %s5 = sld [smem:[#allocation0]]
  $region49: #{tpu_custom_call.1} parent=0
    _
  %s7 = ssub.s32 1, %s5
  %s8 = scalar_select 0, %s7, %s5
  $region1: #{tpu_custom_call.1} parent=0
    #allocation2 [shape = 'u8[131072]{0}', space=vmem, size = 0x20000, scoped, tag = 'output window, operand 0']
    #allocation3 [shape = 's32[2]{0}', space=sflag, size = 0x8, scoped, tag = 'scoped memory for tpu_custom_call.1']
    %9 = vsyncpa [#allocation3], 0
    %s10 = scalar_lea.sflag [#allocation3], 1
    %11 = vsyncpa %s10, 0
    loop: start=0, step=1, limit=4
    $region2: #{tpu_custom_call.1} parent=1 // loop_pre_header
      _
    $region3: #{tpu_custom_call.1} parent=1 // loop_header
      %s13 = sphi 0, %s17
      %p14 = scmp.ge.s32.totalorder %s13, 4
      %s20 = sphi 0, %s32
      %s21 = sphi 0, %s28
      %s22 = sphi 0, %s20
      %s23 = sphi 0, %s21
      %s24 = sphi 0, %s22
      %s25 = sphi 0, %s23
      %s35 = sphi 0, %s37
      %s38 = sphi 0, %s35
      %s39 = sphi 0, %s38
      %s55 = sphi 0, %s39
      %s61 = sphi 0, %s63
      %s64 = sphi 0, %s61
      %s65 = sphi 0, %s64
      %s81 = sphi 0, %s65
      %s87 = sphi 0, %s89
      %s90 = sphi 0, %s87
      %s91 = sphi 0, %s90
      %s107 = sphi 0, %s91
      %s113 = sphi 0, %s115
      %s116 = sphi 0, %s113
      %s117 = sphi 0, %s116
      %s133 = sphi 0, %s117
      %s141 = sphi 0, %s143
      %s144 = sphi 0, %s141
      %s145 = sphi 0, %s144
      %s161 = sphi 0, %s145
    $region4: #{tpu_custom_call.1} parent=1 // loop_header_branch
      %16 = sbr.rel (%p14) target = $region8
    $region5: #{tpu_custom_call.1} parent=1 // loop_body
      %s18 = ssub.s32 %s13, 1
      %s19 = ssub.s32 %s13, 2
      %s26 = sadd.s32 1, %s21
      %p27 = scmp.ge.s32.totalorder %s26, 2
      %s28 = scalar_select %p27, 0, %s26
      %s29 = sadd.s32 1, %s20
      %s30 = scalar_select %p27, %s29, %s20
      %p31 = scmp.ge.s32.totalorder %s30, 1
      %s32 = scalar_select %p31, 0, %s30
      %s33 = ssub.s32 %s21, %s28
      %p34 = scmp.eq.s32.totalorder %s33, 0
      %s36 = sadd.s32 %s35, 1
      %s37 = scalar_select %p34, %s35, %s36
      %p40 = pneg %p34
      %p41 = scmp.eq.s32.totalorder %s13, 1
      %p42 = por %p40, %p41
      %p43 = scmp.ne.s32.totalorder %s35, %s38
      %p44 = scmp.eq.s32.totalorder %s13, 0
      %p45 = por %p43, %p44
      %p46 = scmp.ne.s32.totalorder %s35, %s38
      %p47 = scmp.eq.s32.totalorder %s18, 1
      %p48 = por %p46, %p47
      %p49 = scmp.ne.s32.totalorder %s38, %s39
      %p50 = scmp.eq.s32.totalorder %s18, 0
      %p51 = por %p49, %p50
      %p52 = scmp.ne.s32.totalorder %s38, %s39
      %p53 = scmp.eq.s32.totalorder %s19, 1
      %p54 = por %p52, %p53
      %p56 = scmp.ne.s32.totalorder %s39, %s55
      %p57 = scmp.eq.s32.totalorder %s19, 0
      %p58 = por %p56, %p57
      %s59 = ssub.s32 %s20, %s32
      %p60 = scmp.eq.s32.totalorder %s59, 0
      %s62 = sadd.s32 %s61, 1
      %s63 = scalar_select %p60, %s61, %s62
      %p66 = pneg %p60
      %p67 = scmp.eq.s32.totalorder %s13, 1
      %p68 = por %p66, %p67
      %p69 = scmp.ne.s32.totalorder %s61, %s64
      %p70 = scmp.eq.s32.totalorder %s13, 0
      %p71 = por %p69, %p70
      %p72 = scmp.ne.s32.totalorder %s61, %s64
      %p73 = scmp.eq.s32.totalorder %s18, 1
      %p74 = por %p72, %p73
      %p75 = scmp.ne.s32.totalorder %s64, %s65
      %p76 = scmp.eq.s32.totalorder %s18, 0
      %p77 = por %p75, %p76
      %p78 = scmp.ne.s32.totalorder %s64, %s65
      %p79 = scmp.eq.s32.totalorder %s19, 1
      %p80 = por %p78, %p79
      %p82 = scmp.ne.s32.totalorder %s65, %s81
      %p83 = scmp.eq.s32.totalorder %s19, 0
      %p84 = por %p82, %p83
      %s85 = ssub.s32 %s20, %s32
      %p86 = scmp.eq.s32.totalorder %s85, 0
      %s88 = sadd.s32 %s87, 1
      %s89 = scalar_select %p86, %s87, %s88
      %p92 = pneg %p86
      %p93 = scmp.eq.s32.totalorder %s13, 1
      %p94 = por %p92, %p93
      %p95 = scmp.ne.s32.totalorder %s87, %s90
      %p96 = scmp.eq.s32.totalorder %s13, 0
      %p97 = por %p95, %p96
      %p98 = scmp.ne.s32.totalorder %s87, %s90
      %p99 = scmp.eq.s32.totalorder %s18, 1
      %p100 = por %p98, %p99
      %p101 = scmp.ne.s32.totalorder %s90, %s91
      %p102 = scmp.eq.s32.totalorder %s18, 0
      %p103 = por %p101, %p102
      %p104 = scmp.ne.s32.totalorder %s90, %s91
      %p105 = scmp.eq.s32.totalorder %s19, 1
      %p106 = por %p104, %p105
      %p108 = scmp.ne.s32.totalorder %s91, %s107
      %p109 = scmp.eq.s32.totalorder %s19, 0
      %p110 = por %p108, %p109
      %s111 = ssub.s32 %s20, %s32
      %p112 = scmp.eq.s32.totalorder %s111, 0
      %s114 = sadd.s32 %s113, 1
      %s115 = scalar_select %p112, %s113, %s114
      %p118 = pneg %p112
      %p119 = scmp.eq.s32.totalorder %s13, 1
      %p120 = por %p118, %p119
      %p121 = scmp.ne.s32.totalorder %s113, %s116
      %p122 = scmp.eq.s32.totalorder %s13, 0
      %p123 = por %p121, %p122
      %p124 = scmp.ne.s32.totalorder %s113, %s116
      %p125 = scmp.eq.s32.totalorder %s18, 1
      %p126 = por %p124, %p125
      %p127 = scmp.ne.s32.totalorder %s116, %s117
      %p128 = scmp.eq.s32.totalorder %s18, 0
      %p129 = por %p127, %p128
      %p130 = scmp.ne.s32.totalorder %s116, %s117
      %p131 = scmp.eq.s32.totalorder %s19, 1
      %p132 = por %p130, %p131
      %p134 = scmp.ne.s32.totalorder %s117, %s133
      %p135 = scmp.eq.s32.totalorder %s19, 0
      %p136 = por %p134, %p135
      %s137 = ssub.s32 %s21, %s28
      %s138 = ssub.s32 %s20, %s32
      %s139 = sor.u32 %s137, %s138
      %p140 = scmp.eq.s32.totalorder %s139, 0
      %s142 = sadd.s32 %s141, 1
      %s143 = scalar_select %p140, %s141, %s142
      %p146 = pneg %p140
      %p147 = scmp.eq.s32.totalorder %s13, 1
      %p148 = por %p146, %p147
      %p149 = scmp.ne.s32.totalorder %s141, %s144
      %p150 = scmp.eq.s32.totalorder %s13, 0
      %p151 = por %p149, %p150
      %p152 = scmp.ne.s32.totalorder %s141, %s144
      %p153 = scmp.eq.s32.totalorder %s18, 1
      %p154 = por %p152, %p153
      %p155 = scmp.ne.s32.totalorder %s144, %s145
      %p156 = scmp.eq.s32.totalorder %s18, 0
      %p157 = por %p155, %p156
      %p158 = scmp.ne.s32.totalorder %s144, %s145
      %p159 = scmp.eq.s32.totalorder %s19, 1
      %p160 = por %p158, %p159
      %p162 = scmp.ne.s32.totalorder %s145, %s161
      %p163 = scmp.eq.s32.totalorder %s19, 0
      %p164 = por %p162, %p163
      %p165 = scmp.le.s32.totalorder 1, %s13
      %p166 = scmp.lt.s32.totalorder %s13, 3
      %p167 = pnand %p165, %p166
      %p168 = pneg %p167
      // Predicated region
      $region9: #{tpu_custom_call.1} parent=5 // pred_check
        _
      $region10: #{tpu_custom_call.1} parent=5 // pred_check_branch
        %170 = sbr.rel (%p167) target = $region12
      $region11: #{tpu_custom_call.1} parent=5 // pred_region
        %s171 = ssub.s32 %s13, 1
        // Predicated region
        $region13: #{tpu_custom_call.1} parent=11 // pred_check
          %p172 = pneg %p77
        $region14: #{tpu_custom_call.1} parent=11 // pred_check_branch
          %174 = sbr.rel (%p172) target = $region16
        $region15: #{tpu_custom_call.1} parent=11 // pred_region
          %p175 = scmp.lt.s32.totalorder %s22, 0
          %s176 = scalar_select %p175, %s22, 0
          %s177 = smul.addr %s176, 4
          %s178 = scalar_lea.vmem %s1, %s177
        $region16: #{tpu_custom_call.1} parent=11 // pred_fallthru
          _
        // Predicated region
        $region17: #{tpu_custom_call.1} parent=11 // pred_check
          %p179 = pneg %p103
        $region18: #{tpu_custom_call.1} parent=11 // pred_check_branch
          %181 = sbr.rel (%p179) target = $region20
        $region19: #{tpu_custom_call.1} parent=11 // pred_region
          %p182 = scmp.lt.s32.totalorder %s22, 0
          %s183 = scalar_select %p182, %s22, 0
          %s184 = scalar_lea.vmem %s2, %s183
        $region20: #{tpu_custom_call.1} parent=11 // pred_fallthru
          _
        // Predicated region
        $region21: #{tpu_custom_call.1} parent=11 // pred_check
          %p185 = pneg %p129
        $region22: #{tpu_custom_call.1} parent=11 // pred_check_branch
          %187 = sbr.rel (%p185) target = $region24
        $region23: #{tpu_custom_call.1} parent=11 // pred_region
          %p188 = scmp.lt.s32.totalorder %s22, 0
          %s189 = scalar_select %p188, %s22, 0
          %s190 = scalar_lea.vmem %s3, %s189
        $region24: #{tpu_custom_call.1} parent=11 // pred_fallthru
          _
      $region12: #{tpu_custom_call.1} parent=5 // pred_fallthru
        _
      %p191 = scmp.lt.s32.totalorder %s13, 2
      // Predicated region
      $region25: #{tpu_custom_call.1} parent=5 // pred_check
        %p192 = pneg %p191
      $region26: #{tpu_custom_call.1} parent=5 // pred_check_branch
        %194 = sbr.rel (%p192) target = $region28
      $region27: #{tpu_custom_call.1} parent=5 // pred_region
        // Predicated region
        $region29: #{tpu_custom_call.1} parent=27 // pred_check
          %p195 = pneg %p45
        $region30: #{tpu_custom_call.1} parent=27 // pred_check_branch
          %197 = sbr.rel (%p195) target = $region32
        $region31: #{tpu_custom_call.1} parent=27 // pred_region
          %p198 = scmp.lt.s32.totalorder %s21, 1
          %s199 = scalar_select %p198, %s21, 1
          %s200 = smul.addr %s199, 54
          %s201 = smul.addr %s200, 4
          %s202 = scalar_lea.vmem %s0, %s201
        $region32: #{tpu_custom_call.1} parent=27 // pred_fallthru
          _
      $region28: #{tpu_custom_call.1} parent=5 // pred_fallthru
        _
      %p203 = scmp.le.s32.totalorder 1, %s13
      %p204 = scmp.lt.s32.totalorder %s13, 3
      %p205 = pnand %p203, %p204
      %p206 = pneg %p205
      // Predicated region
      $region33: #{tpu_custom_call.1} parent=5 // pred_check
        _
      $region34: #{tpu_custom_call.1} parent=5 // pred_check_branch
        %208 = sbr.rel (%p205) target = $region36
      $region35: #{tpu_custom_call.1} parent=5 // pred_region
        %s209 = ssub.s32 %s13, 1
        %p210 = scmp.lt.s32.totalorder %s23, 1
        %s211 = scalar_select %p210, %s23, 1
        %s212 = smul.addr %s211, 54
        %s213 = smul.addr %s212, 4
        %s214 = scalar_lea.vmem %s0, %s213
        %p215 = pneg %p51
        %p216 = pneg %p48
        %p217 = scmp.lt.s32.totalorder %s22, 0
        %s218 = scalar_select %p217, %s22, 0
        %s219 = smul.addr %s218, 4
        %s220 = scalar_lea.vmem %s1, %s219
        %p221 = pneg %p77
        %p222 = pneg %p74
        %p223 = scmp.lt.s32.totalorder %s22, 0
        %s224 = scalar_select %p223, %s22, 0
        %s225 = scalar_lea.vmem %s2, %s224
        %p226 = pneg %p103
        %p227 = pneg %p100
        %p228 = scmp.lt.s32.totalorder %s22, 0
        %s229 = scalar_select %p228, %s22, 0
        %s230 = scalar_lea.vmem %s3, %s229
        %p231 = pneg %p129
        %p232 = pneg %p126
        %p233 = pneg %p157
        %p234 = pneg %p154
        %s235 = sand.u32 %s144, 1
        %s236 = scalar_lea.sflag [#allocation3], %s235
        %s237 = sand.u32 %s144, 1
        %s238 = smul.addr %s237, 128
        %s239 = scalar_lea.vmem [#allocation2], %s238
        %p240 = scmp.lt.s32.totalorder %s23, 1
        %s241 = scalar_select %p240, %s23, 1
        %s242 = smul.addr %s241, 54
        %s243 = smul.addr %s242, 4
        %s244 = scalar_lea.vmem %s0, %s243
        %p245 = scmp.lt.s32.totalorder %s22, 0
        %s246 = scalar_select %p245, %s22, 0
        %s247 = smul.addr %s246, 4
        %s248 = scalar_lea.vmem %s1, %s247
        %p249 = scmp.lt.s32.totalorder %s22, 0
        %s250 = scalar_select %p249, %s22, 0
        %s251 = scalar_lea.vmem %s2, %s250
        %p252 = scmp.lt.s32.totalorder %s22, 0
        %s253 = scalar_select %p252, %s22, 0
        %s254 = scalar_lea.vmem %s3, %s253
        %v256 = vld [vmem:[%s251] sm:$0x1]
        %v257 = vld [vmem:[%s254] sm:$0x1]
        %v258 = vld [vmem:[%s244] sm:$0xf]
        %v259 = vld [vmem:[%s244 + $0x4] sm:$0xf]
        %v260 = vld [vmem:[%s244 + $0xc] sm:$0xf]
        %v261 = vld [vmem:[%s244 + $0x10] sm:$0xf]
        %v262 = vld [vmem:[%s244 + $0x18] sm:$0xf]
        %v263 = vld [vmem:[%s244 + $0x1c] sm:$0xf]
        %v264 = vld [vmem:[%s244 + $0x24] sm:$0xf]
        %v265 = vld [vmem:[%s244 + $0x28] sm:$0xf]
        %v266 = vld [vmem:[%s244 + $0x30] sm:$0xf]
        %v267 = vld [vmem:[%s244 + $0x34] sm:$0xf]
        %v268 = vld [vmem:[%s244 + $0x3c] sm:$0xf]
        %v269 = vld [vmem:[%s244 + $0x40] sm:$0xf]
        %v270 = vld [vmem:[%s244 + $0x48] sm:$0xf]
        %v271 = vld [vmem:[%s244 + $0x4c] sm:$0xf]
        %v272 = vld [vmem:[%s244 + $0x54] sm:$0xf]
        %v273 = vld [vmem:[%s244 + $0x58] sm:$0xf]
        %v274 = vld [vmem:[%s244 + $0x60] sm:$0xf]
        %v275 = vld [vmem:[%s244 + $0x64] sm:$0xf]
        %v276 = vld [vmem:[%s244 + $0x6c] sm:$0xf]
        %v277 = vld [vmem:[%s244 + $0x70] sm:$0xf]
        %v278 = vld [vmem:[%s244 + $0x78] sm:$0xf]
        %v279 = vld [vmem:[%s244 + $0x7c] sm:$0xf]
        %v280 = vld [vmem:[%s244 + $0x84] sm:$0xf]
        %v281 = vld [vmem:[%s244 + $0x88] sm:$0xf]
        %v282 = vld [vmem:[%s244 + $0x90] sm:$0xf]
        %v283 = vld [vmem:[%s244 + $0x94] sm:$0xf]
        %v284 = vld [vmem:[%s244 + $0x9c] sm:$0xf]
        %v285 = vld [vmem:[%s244 + $0xa0] sm:$0xf]
        %v286 = vld [vmem:[%s244 + $0xa8] sm:$0xf]
        %v287 = vld [vmem:[%s244 + $0xac] sm:$0xf]
        %v288 = vld [vmem:[%s244 + $0xb4] sm:$0xf]
        %v289 = vld [vmem:[%s244 + $0xb8] sm:$0xf]
        %v290 = vld [vmem:[%s248] sm:$0xf]
        %v291 = vld [vmem:[%s244 + $0x8] sm:$0x1]
        %v292 = vld [vmem:[%s244 + $0x14] sm:$0x1]
        %v293 = vld [vmem:[%s244 + $0x20] sm:$0x1]
        %v294 = vld [vmem:[%s244 + $0x2c] sm:$0x1]
        %v295 = vld [vmem:[%s244 + $0x38] sm:$0x1]
        %v296 = vld [vmem:[%s244 + $0x44] sm:$0x1]
        %v297 = vld [vmem:[%s244 + $0x50] sm:$0x1]
        %v298 = vld [vmem:[%s244 + $0x5c] sm:$0x1]
        %v299 = vld [vmem:[%s244 + $0x68] sm:$0x1]
        %v300 = vld [vmem:[%s244 + $0x74] sm:$0x1]
        %v301 = vld [vmem:[%s244 + $0x80] sm:$0x1]
        %v302 = vld [vmem:[%s244 + $0x8c] sm:$0x1]
        %v303 = vld [vmem:[%s244 + $0x98] sm:$0x1]
        %v304 = vld [vmem:[%s244 + $0xa4] sm:$0x1]
        %v305 = vld [vmem:[%s244 + $0xb0] sm:$0x1]
        %v306 = vld [vmem:[%s244 + $0xbc] sm:$0x1]
        %vm307 = vsmask.f32 3328
        %vm308 = vsmask.f32 7440
        %vm309 = vmor %vm307, %vm308
        %v311 = vshrl.u32 %v258, 16
        %v313 = vrot.slane %v311, 4
        %v314 = vshll.u32 %v258, 16
        %v316 = vrot.slane %v314, 5
        %v317 = vor.u32 %v313, %v316
        %v318 = vrot.slane %v317, 4
        %v320 = vshll.u32 %v259, 16
        %v322 = vrot.slane %v320, 5
        %v323 = vsel %vm309, %v318, %v322
        %v324 = vshrl.u32 %v259, 16
        %v326 = vrot.slane %v324, 4
        %v327 = vor.u32 %v326, %v322
        %v328 = vrot.slane %v327, 4
        %v330 = vshll.u32 %v291, 16
        %v332 = vrot.slane %v330, 5
        %v333 = vsel %vm309, %v328, %v332
        %v335 = vshrl.u32 %v260, 16
        %v337 = vrot.slane %v335, 4
        %v338 = vshll.u32 %v260, 16
        %v340 = vrot.slane %v338, 5
        %v341 = vor.u32 %v337, %v340
        %v342 = vrot.slane %v341, 4
        %v344 = vshll.u32 %v261, 16
        %v346 = vrot.slane %v344, 5
        %v347 = vsel %vm309, %v342, %v346
        %v348 = vshrl.u32 %v261, 16
        %v350 = vrot.slane %v348, 4
        %v351 = vor.u32 %v350, %v346
        %v352 = vrot.slane %v351, 4
        %v354 = vshll.u32 %v292, 16
        %v356 = vrot.slane %v354, 5
        %v357 = vsel %vm309, %v352, %v356
        %v359 = vshrl.u32 %v262, 16
        %v361 = vrot.slane %v359, 4
        %v362 = vshll.u32 %v262, 16
        %v364 = vrot.slane %v362, 5
        %v365 = vor.u32 %v361, %v364
        %v366 = vrot.slane %v365, 4
        %v368 = vshll.u32 %v263, 16
        %v370 = vrot.slane %v368, 5
        %v371 = vsel %vm309, %v366, %v370
        %v372 = vshrl.u32 %v263, 16
        %v374 = vrot.slane %v372, 4
        %v375 = vor.u32 %v374, %v370
        %v376 = vrot.slane %v375, 4
        %v378 = vshll.u32 %v293, 16
        %v380 = vrot.slane %v378, 5
        %v381 = vsel %vm309, %v376, %v380
        %v383 = vshrl.u32 %v264, 16
        %v385 = vrot.slane %v383, 4
        %v386 = vshll.u32 %v264, 16
        %v388 = vrot.slane %v386, 5
        %v389 = vor.u32 %v385, %v388
        %v390 = vrot.slane %v389, 4
        %v392 = vshll.u32 %v265, 16
        %v394 = vrot.slane %v392, 5
        %v395 = vsel %vm309, %v390, %v394
        %v396 = vshrl.u32 %v265, 16
        %v398 = vrot.slane %v396, 4
        %v399 = vor.u32 %v398, %v394
        %v400 = vrot.slane %v399, 4
        %v402 = vshll.u32 %v294, 16
        %v404 = vrot.slane %v402, 5
        %v405 = vsel %vm309, %v400, %v404
        %v407 = vshrl.u32 %v266, 16
        %v409 = vrot.slane %v407, 4
        %v410 = vshll.u32 %v266, 16
        %v412 = vrot.slane %v410, 5
        %v413 = vor.u32 %v409, %v412
        %v414 = vrot.slane %v413, 4
        %v416 = vshll.u32 %v267, 16
        %v418 = vrot.slane %v416, 5
        %v419 = vsel %vm309, %v414, %v418
        %v420 = vshrl.u32 %v267, 16
        %v422 = vrot.slane %v420, 4
        %v423 = vor.u32 %v422, %v418
        %v424 = vrot.slane %v423, 4
        %v426 = vshll.u32 %v295, 16
        %v428 = vrot.slane %v426, 5
        %v429 = vsel %vm309, %v424, %v428
        %v431 = vshrl.u32 %v268, 16
        %v433 = vrot.slane %v431, 4
        %v434 = vshll.u32 %v268, 16
        %v436 = vrot.slane %v434, 5
        %v437 = vor.u32 %v433, %v436
        %v438 = vrot.slane %v437, 4
        %v440 = vshll.u32 %v269, 16
        %v442 = vrot.slane %v440, 5
        %v443 = vsel %vm309, %v438, %v442
        %v444 = vshrl.u32 %v269, 16
        %v446 = vrot.slane %v444, 4
        %v447 = vor.u32 %v446, %v442
        %v448 = vrot.slane %v447, 4
        %v450 = vshll.u32 %v296, 16
        %v452 = vrot.slane %v450, 5
        %v453 = vsel %vm309, %v448, %v452
        %v455 = vshrl.u32 %v270, 16
        %v457 = vrot.slane %v455, 4
        %v458 = vshll.u32 %v270, 16
        %v460 = vrot.slane %v458, 5
        %v461 = vor.u32 %v457, %v460
        %v462 = vrot.slane %v461, 4
        %v464 = vshll.u32 %v271, 16
        %v466 = vrot.slane %v464, 5
        %v467 = vsel %vm309, %v462, %v466
        %v468 = vshrl.u32 %v271, 16
        %v470 = vrot.slane %v468, 4
        %v471 = vor.u32 %v470, %v466
        %v472 = vrot.slane %v471, 4
        %v474 = vshll.u32 %v297, 16
        %v476 = vrot.slane %v474, 5
        %v477 = vsel %vm309, %v472, %v476
        %v479 = vshrl.u32 %v272, 16
        %v481 = vrot.slane %v479, 4
        %v482 = vshll.u32 %v272, 16
        %v484 = vrot.slane %v482, 5
        %v485 = vor.u32 %v481, %v484
        %v486 = vrot.slane %v485, 4
        %v488 = vshll.u32 %v273, 16
        %v490 = vrot.slane %v488, 5
        %v491 = vsel %vm309, %v486, %v490
        %v492 = vshrl.u32 %v273, 16
        %v494 = vrot.slane %v492, 4
        %v495 = vor.u32 %v494, %v490
        %v496 = vrot.slane %v495, 4
        %v498 = vshll.u32 %v298, 16
        %v500 = vrot.slane %v498, 5
        %v501 = vsel %vm309, %v496, %v500
        %v503 = vshrl.u32 %v274, 16
        %v505 = vrot.slane %v503, 4
        %v506 = vshll.u32 %v274, 16
        %v508 = vrot.slane %v506, 5
        %v509 = vor.u32 %v505, %v508
        %v510 = vrot.slane %v509, 4
        %v512 = vshll.u32 %v275, 16
        %v514 = vrot.slane %v512, 5
        %v515 = vsel %vm309, %v510, %v514
        %v516 = vshrl.u32 %v275, 16
        %v518 = vrot.slane %v516, 4
        %v519 = vor.u32 %v518, %v514
        %v520 = vrot.slane %v519, 4
        %v522 = vshll.u32 %v299, 16
        %v524 = vrot.slane %v522, 5
        %v525 = vsel %vm309, %v520, %v524
        %v527 = vshrl.u32 %v276, 16
        %v529 = vrot.slane %v527, 4
        %v530 = vshll.u32 %v276, 16
        %v532 = vrot.slane %v530, 5
        %v533 = vor.u32 %v529, %v532
        %v534 = vrot.slane %v533, 4
        %v536 = vshll.u32 %v277, 16
        %v538 = vrot.slane %v536, 5
        %v539 = vsel %vm309, %v534, %v538
        %v540 = vshrl.u32 %v277, 16
        %v542 = vrot.slane %v540, 4
        %v543 = vor.u32 %v542, %v538
        %v544 = vrot.slane %v543, 4
        %v546 = vshll.u32 %v300, 16
        %v548 = vrot.slane %v546, 5
        %v549 = vsel %vm309, %v544, %v548
        %v551 = vshrl.u32 %v278, 16
        %v553 = vrot.slane %v551, 4
        %v554 = vshll.u32 %v278, 16
        %v556 = vrot.slane %v554, 5
        %v557 = vor.u32 %v553, %v556
        %v558 = vrot.slane %v557, 4
        %v560 = vshll.u32 %v279, 16
        %v562 = vrot.slane %v560, 5
        %v563 = vsel %vm309, %v558, %v562
        %v564 = vshrl.u32 %v279, 16
        %v566 = vrot.slane %v564, 4
        %v567 = vor.u32 %v566, %v562
        %v568 = vrot.slane %v567, 4
        %v570 = vshll.u32 %v301, 16
        %v572 = vrot.slane %v570, 5
        %v573 = vsel %vm309, %v568, %v572
        %v575 = vshrl.u32 %v280, 16
        %v577 = vrot.slane %v575, 4
        %v578 = vshll.u32 %v280, 16
        %v580 = vrot.slane %v578, 5
        %v581 = vor.u32 %v577, %v580
        %v582 = vrot.slane %v581, 4
        %v584 = vshll.u32 %v281, 16
        %v586 = vrot.slane %v584, 5
        %v587 = vsel %vm309, %v582, %v586
        %v588 = vshrl.u32 %v281, 16
        %v590 = vrot.slane %v588, 4
        %v591 = vor.u32 %v590, %v586
        %v592 = vrot.slane %v591, 4
        %v594 = vshll.u32 %v302, 16
        %v596 = vrot.slane %v594, 5
        %v597 = vsel %vm309, %v592, %v596
        %v599 = vshrl.u32 %v282, 16
        %v601 = vrot.slane %v599, 4
        %v602 = vshll.u32 %v282, 16
        %v604 = vrot.slane %v602, 5
        %v605 = vor.u32 %v601, %v604
        %v606 = vrot.slane %v605, 4
        %v608 = vshll.u32 %v283, 16
        %v610 = vrot.slane %v608, 5
        %v611 = vsel %vm309, %v606, %v610
        %v612 = vshrl.u32 %v283, 16
        %v614 = vrot.slane %v612, 4
        %v615 = vor.u32 %v614, %v610
        %v616 = vrot.slane %v615, 4
        %v618 = vshll.u32 %v303, 16
        %v620 = vrot.slane %v618, 5
        %v621 = vsel %vm309, %v616, %v620
        %v623 = vshrl.u32 %v284, 16
        %v625 = vrot.slane %v623, 4
        %v626 = vshll.u32 %v284, 16
        %v628 = vrot.slane %v626, 5
        %v629 = vor.u32 %v625, %v628
        %v630 = vrot.slane %v629, 4
        %v632 = vshll.u32 %v285, 16
        %v634 = vrot.slane %v632, 5
        %v635 = vsel %vm309, %v630, %v634
        %v636 = vshrl.u32 %v285, 16
        %v638 = vrot.slane %v636, 4
        %v639 = vor.u32 %v638, %v634
        %v640 = vrot.slane %v639, 4
        %v642 = vshll.u32 %v304, 16
        %v644 = vrot.slane %v642, 5
        %v645 = vsel %vm309, %v640, %v644
        %v647 = vshrl.u32 %v286, 16
        %v649 = vrot.slane %v647, 4
        %v650 = vshll.u32 %v286, 16
        %v652 = vrot.slane %v650, 5
        %v653 = vor.u32 %v649, %v652
        %v654 = vrot.slane %v653, 4
        %v656 = vshll.u32 %v287, 16
        %v658 = vrot.slane %v656, 5
        %v659 = vsel %vm309, %v654, %v658
        %v660 = vshrl.u32 %v287, 16
        %v662 = vrot.slane %v660, 4
        %v663 = vor.u32 %v662, %v658
        %v664 = vrot.slane %v663, 4
        %v666 = vshll.u32 %v305, 16
        %v668 = vrot.slane %v666, 5
        %v669 = vsel %vm309, %v664, %v668
        %v671 = vshrl.u32 %v288, 16
        %v673 = vrot.slane %v671, 4
        %v674 = vshll.u32 %v288, 16
        %v676 = vrot.slane %v674, 5
        %v677 = vor.u32 %v673, %v676
        %v678 = vrot.slane %v677, 4
        %v680 = vshll.u32 %v289, 16
        %v682 = vrot.slane %v680, 5
        %v683 = vsel %vm309, %v678, %v682
        %v684 = vshrl.u32 %v289, 16
        %v686 = vrot.slane %v684, 4
        %v687 = vor.u32 %v686, %v682
        %v688 = vrot.slane %v687, 4
        %v690 = vshll.u32 %v306, 16
        %v692 = vrot.slane %v690, 5
        %v693 = vsel %vm309, %v688, %v692
        %s694 = scalar_lea.vmem %s248, 4
        %v695 = vld [vmem:[%s694] sm:$0xf]
        %v696 = vunpack.c.l.b16 %v323
        %v697 = vunpack.c.l.b16 %v333
        %v698 = vunpack.c.l.b16 %v347
        %v699 = vunpack.c.l.b16 %v357
        %v700 = vunpack.c.l.b16 %v371
        %v701 = vunpack.c.l.b16 %v381
        %v702 = vunpack.c.l.b16 %v395
        %v703 = vunpack.c.l.b16 %v405
        %v704 = vunpack.c.l.b16 %v419
        %v705 = vunpack.c.l.b16 %v429
        %v706 = vunpack.c.l.b16 %v443
        %v707 = vunpack.c.l.b16 %v453
        %v708 = vunpack.c.l.b16 %v467
        %v709 = vunpack.c.l.b16 %v477
        %v710 = vunpack.c.l.b16 %v491
        %v711 = vunpack.c.l.b16 %v501
        %v712 = vunpack.c.l.b16 %v515
        %v713 = vunpack.c.l.b16 %v525
        %v714 = vunpack.c.l.b16 %v539
        %v715 = vunpack.c.l.b16 %v549
        %v716 = vunpack.c.l.b16 %v563
        %v717 = vunpack.c.l.b16 %v573
        %v718 = vunpack.c.l.b16 %v587
        %v719 = vunpack.c.l.b16 %v597
        %v720 = vunpack.c.l.b16 %v611
        %v721 = vunpack.c.l.b16 %v621
        %v722 = vunpack.c.l.b16 %v635
        %v723 = vunpack.c.l.b16 %v645
        %v724 = vunpack.c.l.b16 %v659
        %v725 = vunpack.c.l.b16 %v669
        %v726 = vunpack.c.l.b16 %v683
        %v727 = vunpack.c.l.b16 %v693
        %v728 = vpack.c.b16 %v697, %v696
        %v729 = vpack.c.b16 %v699, %v698
        %v730 = vpack.c.b16 %v701, %v700
        %v731 = vpack.c.b16 %v703, %v702
        %v732 = vpack.c.b16 %v705, %v704
        %v733 = vpack.c.b16 %v707, %v706
        %v734 = vpack.c.b16 %v709, %v708
        %v735 = vpack.c.b16 %v711, %v710
        %v736 = vpack.c.b16 %v713, %v712
        %v737 = vpack.c.b16 %v715, %v714
        %v738 = vpack.c.b16 %v717, %v716
        %v739 = vpack.c.b16 %v719, %v718
        %v740 = vpack.c.b16 %v721, %v720
        %v741 = vpack.c.b16 %v723, %v722
        %v742 = vpack.c.b16 %v725, %v724
        %v743 = vpack.c.b16 %v727, %v726
        %vm744 = vcmask 64512
        %v746 = vsel %vm744, %v728, 0
        %v749 = vsel %vm744, %v729, 0
        %v752 = vsel %vm744, %v730, 0
        %v755 = vsel %vm744, %v731, 0
        %v758 = vsel %vm744, %v732, 0
        %v761 = vsel %vm744, %v733, 0
        %v764 = vsel %vm744, %v734, 0
        %v767 = vsel %vm744, %v735, 0
        %v770 = vsel %vm744, %v736, 0
        %v773 = vsel %vm744, %v737, 0
        %v776 = vsel %vm744, %v738, 0
        %v779 = vsel %vm744, %v739, 0
        %v782 = vsel %vm744, %v740, 0
        %v785 = vsel %vm744, %v741, 0
        %v788 = vsel %vm744, %v742, 0
        %v791 = vsel %vm744, %v743, 0
        %vm793 = vcmask 1043456
        %v795 = vsel %vm793, %v695, 0
        %797 = vmatprep.subr.bf16.mxu0 0
        %798 = vmatpush1.bf16.msra.mxu0 %v795
        %799 = vmatprep.subr.bf16.mxu0 0
        %800 = vmatpush1.bf16.msra.mxu0 0
        %801 = vmatprep.subr.bf16.mxu0 0
        %802 = vmatpush1.bf16.msra.mxu0 0
        %803 = vmatprep.subr.bf16.mxu0 0
        %804 = vmatpush1.bf16.msra.mxu0 0
        %805 = vmatprep.subr.bf16.mxu0 0
        %806 = vmatpush1.bf16.msra.mxu0 0
        %807 = vmatprep.subr.bf16.mxu0 0
        %808 = vmatpush1.bf16.msra.mxu0 0
        %809 = vmatprep.subr.bf16.mxu0 0
        %810 = vmatpush1.bf16.msra.mxu0 0
        %811 = vmatprep.subr.bf16.mxu0 0
        %812 = vmatpush1.bf16.msra.mxu0 0
        %813 = vmatprep.subr.bf16.mxu0 0
        %814 = vmatpush1.bf16.msra.mxu0 0
        %815 = vmatprep.subr.bf16.mxu0 0
        %816 = vmatpush1.bf16.msra.mxu0 0
        %817 = vmatprep.subr.bf16.mxu0 0
        %818 = vmatpush1.bf16.msra.mxu0 0
        %819 = vmatprep.subr.bf16.mxu0 0
        %820 = vmatpush1.bf16.msra.mxu0 0
        %821 = vmatprep.subr.bf16.mxu0 0
        %822 = vmatpush1.bf16.msra.mxu0 0
        %823 = vmatprep.subr.bf16.mxu0 0
        %824 = vmatpush1.bf16.msra.mxu0 0
        %825 = vmatprep.subr.bf16.mxu0 0
        %826 = vmatpush1.bf16.msra.mxu0 0
        %827 = vmatprep.subr.bf16.mxu0 0
        %828 = vmatpush1.bf16.msra.mxu0 0
        %829 = vmatprep.mubr.bf16.mxu0 0
        %830 = vmatmul.mubr.bf16.gmra.mrb[0].mxu0 %v746
        %v831 = vpop.f32.mrb[0].mxu0
        %v832 = vadd.f32 0.0, %v831
        %v833 = vpop.f32.mrb[0].mxu0
        %v834 = vpop.f32.mrb[0].mxu0
        %v835 = vadd.f32 0.0, %v834
        %v836 = vpop.f32.mrb[0].mxu0
        %837 = vmatprep.mubr.bf16.mxu0 0
        %838 = vmatmul.mubr.bf16.gmra.mrb[0].mxu0 %v749
        %v839 = vpop.f32.mrb[0].mxu0
        %v840 = vadd.f32 0.0, %v839
        %v841 = vpop.f32.mrb[0].mxu0
        %v842 = vpop.f32.mrb[0].mxu0
        %v843 = vadd.f32 0.0, %v842
        %v844 = vpop.f32.mrb[0].mxu0
        %845 = vmatprep.mubr.bf16.mxu0 0
        %846 = vmatmul.mubr.bf16.gmra.mrb[0].mxu0 %v752
        %v847 = vpop.f32.mrb[0].mxu0
        %v848 = vadd.f32 0.0, %v847
        %v849 = vpop.f32.mrb[0].mxu0
        %v850 = vpop.f32.mrb[0].mxu0
        %v851 = vadd.f32 0.0, %v850
        %v852 = vpop.f32.mrb[0].mxu0
        %853 = vmatprep.mubr.bf16.mxu0 0
        %854 = vmatmul.mubr.bf16.gmra.mrb[0].mxu0 %v755
        %v855 = vpop.f32.mrb[0].mxu0
        %v856 = vadd.f32 0.0, %v855
        %v857 = vpop.f32.mrb[0].mxu0
        %v858 = vpop.f32.mrb[0].mxu0
        %v859 = vadd.f32 0.0, %v858
        %v860 = vpop.f32.mrb[0].mxu0
        %861 = vmatprep.mubr.bf16.mxu0 0
        %862 = vmatmul.mubr.bf16.gmra.mrb[0].mxu0 %v758
        %v863 = vpop.f32.mrb[0].mxu0
        %v864 = vadd.f32 0.0, %v863
        %v865 = vpop.f32.mrb[0].mxu0
        %v866 = vpop.f32.mrb[0].mxu0
        %v867 = vadd.f32 0.0, %v866
        %v868 = vpop.f32.mrb[0].mxu0
        %869 = vmatprep.mubr.bf16.mxu0 0
        %870 = vmatmul.mubr.bf16.gmra.mrb[0].mxu0 %v761
        %v871 = vpop.f32.mrb[0].mxu0
        %v872 = vadd.f32 0.0, %v871
        %v873 = vpop.f32.mrb[0].mxu0
        %v874 = vpop.f32.mrb[0].mxu0
        %v875 = vadd.f32 0.0, %v874
        %v876 = vpop.f32.mrb[0].mxu0
        %877 = vmatprep.mubr.bf16.mxu0 0
        %878 = vmatmul.mubr.bf16.gmra.mrb[0].mxu0 %v764
        %v879 = vpop.f32.mrb[0].mxu0
        %v880 = vadd.f32 0.0, %v879
        %v881 = vpop.f32.mrb[0].mxu0
        %v882 = vpop.f32.mrb[0].mxu0
        %v883 = vadd.f32 0.0, %v882
        %v884 = vpop.f32.mrb[0].mxu0
        %885 = vmatprep.mubr.bf16.mxu0 0
        %886 = vmatmul.mubr.bf16.gmra.mrb[0].mxu0 %v767
        %v887 = vpop.f32.mrb[0].mxu0
        %v888 = vadd.f32 0.0, %v887
        %v889 = vpop.f32.mrb[0].mxu0
        %v890 = vpop.f32.mrb[0].mxu0
        %v891 = vadd.f32 0.0, %v890
        %v892 = vpop.f32.mrb[0].mxu0
        %893 = vmatprep.mubr.bf16.mxu0 0
        %894 = vmatmul.mubr.bf16.gmra.mrb[0].mxu0 %v770
        %v895 = vpop.f32.mrb[0].mxu0
        %v896 = vadd.f32 0.0, %v895
        %v897 = vpop.f32.mrb[0].mxu0
        %v898 = vpop.f32.mrb[0].mxu0
        %v899 = vadd.f32 0.0, %v898
        %v900 = vpop.f32.mrb[0].mxu0
        %901 = vmatprep.mubr.bf16.mxu0 0
        %902 = vmatmul.mubr.bf16.gmra.mrb[0].mxu0 %v773
        %v903 = vpop.f32.mrb[0].mxu0
        %v904 = vadd.f32 0.0, %v903
        %v905 = vpop.f32.mrb[0].mxu0
        %v906 = vpop.f32.mrb[0].mxu0
        %v907 = vadd.f32 0.0, %v906
        %v908 = vpop.f32.mrb[0].mxu0
        %909 = vmatprep.mubr.bf16.mxu0 0
        %910 = vmatmul.mubr.bf16.gmra.mrb[0].mxu0 %v776
        %v911 = vpop.f32.mrb[0].mxu0
        %v912 = vadd.f32 0.0, %v911
        %v913 = vpop.f32.mrb[0].mxu0
        %v914 = vpop.f32.mrb[0].mxu0
        %v915 = vadd.f32 0.0, %v914
        %v916 = vpop.f32.mrb[0].mxu0
        %917 = vmatprep.mubr.bf16.mxu0 0
        %918 = vmatmul.mubr.bf16.gmra.mrb[0].mxu0 %v779
        %v919 = vpop.f32.mrb[0].mxu0
        %v920 = vadd.f32 0.0, %v919
        %v921 = vpop.f32.mrb[0].mxu0
        %v922 = vpop.f32.mrb[0].mxu0
        %v923 = vadd.f32 0.0, %v922
        %v924 = vpop.f32.mrb[0].mxu0
        %925 = vmatprep.mubr.bf16.mxu0 0
        %926 = vmatmul.mubr.bf16.gmra.mrb[0].mxu0 %v782
        %v927 = vpop.f32.mrb[0].mxu0
        %v928 = vadd.f32 0.0, %v927
        %v929 = vpop.f32.mrb[0].mxu0
        %v930 = vpop.f32.mrb[0].mxu0
        %v931 = vadd.f32 0.0, %v930
        %v932 = vpop.f32.mrb[0].mxu0
        %933 = vmatprep.mubr.bf16.mxu0 0
        %934 = vmatmul.mubr.bf16.gmra.mrb[0].mxu0 %v785
        %v935 = vpop.f32.mrb[0].mxu0
        %v936 = vadd.f32 0.0, %v935
        %v937 = vpop.f32.mrb[0].mxu0
        %v938 = vpop.f32.mrb[0].mxu0
        %v939 = vadd.f32 0.0, %v938
        %v940 = vpop.f32.mrb[0].mxu0
        %941 = vmatprep.mubr.bf16.mxu0 0
        %942 = vmatmul.mubr.bf16.gmra.mrb[0].mxu0 %v788
        %v943 = vpop.f32.mrb[0].mxu0
        %v944 = vadd.f32 0.0, %v943
        %v945 = vpop.f32.mrb[0].mxu0
        %v946 = vpop.f32.mrb[0].mxu0
        %v947 = vadd.f32 0.0, %v946
        %v948 = vpop.f32.mrb[0].mxu0
        %949 = vmatprep.mubr.bf16.mxu0 0
        %950 = vmatmul.mubr.bf16.gmra.mrb[0].mxu0 %v791
        %v951 = vpop.f32.mrb[0].mxu0
        %v952 = vadd.f32 0.0, %v951
        %v953 = vpop.f32.mrb[0].mxu0
        %v954 = vpop.f32.mrb[0].mxu0
        %v955 = vadd.f32 0.0, %v954
        %v956 = vpop.f32.mrb[0].mxu0
        %957 = vdwg.mxu0
        %v990 = vunpack.c.l.b16 %v258
        %v991 = vunpack.c.l.b16 %v259
        %v992 = vunpack.c.l.b16 %v260
        %v993 = vunpack.c.l.b16 %v261
        %v994 = vunpack.c.l.b16 %v262
        %v995 = vunpack.c.l.b16 %v263
        %v996 = vunpack.c.l.b16 %v264
        %v997 = vunpack.c.l.b16 %v265
        %v998 = vunpack.c.l.b16 %v266
        %v999 = vunpack.c.l.b16 %v267
        %v1000 = vunpack.c.l.b16 %v268
        %v1001 = vunpack.c.l.b16 %v269
        %v1002 = vunpack.c.l.b16 %v270
        %v1003 = vunpack.c.l.b16 %v271
        %v1004 = vunpack.c.l.b16 %v272
        %v1005 = vunpack.c.l.b16 %v273
        %v1006 = vunpack.c.l.b16 %v274
        %v1007 = vunpack.c.l.b16 %v275
        %v1008 = vunpack.c.l.b16 %v276
        %v1009 = vunpack.c.l.b16 %v277
        %v1010 = vunpack.c.l.b16 %v278
        %v1011 = vunpack.c.l.b16 %v279
        %v1012 = vunpack.c.l.b16 %v280
        %v1013 = vunpack.c.l.b16 %v281
        %v1014 = vunpack.c.l.b16 %v282
        %v1015 = vunpack.c.l.b16 %v283
        %v1016 = vunpack.c.l.b16 %v284
        %v1017 = vunpack.c.l.b16 %v285
        %v1018 = vunpack.c.l.b16 %v286
        %v1019 = vunpack.c.l.b16 %v287
        %v1020 = vunpack.c.l.b16 %v288
        %v1021 = vunpack.c.l.b16 %v289
        %v1022 = vpack.c.b16 %v991, %v990
        %v1023 = vpack.c.b16 %v993, %v992
        %v1024 = vpack.c.b16 %v995, %v994
        %v1025 = vpack.c.b16 %v997, %v996
        %v1026 = vpack.c.b16 %v999, %v998
        %v1027 = vpack.c.b16 %v1001, %v1000
        %v1028 = vpack.c.b16 %v1003, %v1002
        %v1029 = vpack.c.b16 %v1005, %v1004
        %v1030 = vpack.c.b16 %v1007, %v1006
        %v1031 = vpack.c.b16 %v1009, %v1008
        %v1032 = vpack.c.b16 %v1011, %v1010
        %v1033 = vpack.c.b16 %v1013, %v1012
        %v1034 = vpack.c.b16 %v1015, %v1014
        %v1035 = vpack.c.b16 %v1017, %v1016
        %v1036 = vpack.c.b16 %v1019, %v1018
        %v1037 = vpack.c.b16 %v1021, %v1020
        %v1039 = vsel %vm744, %v1022, 0
        %v1042 = vsel %vm744, %v1023, 0
        %v1045 = vsel %vm744, %v1024, 0
        %v1048 = vsel %vm744, %v1025, 0
        %v1051 = vsel %vm744, %v1026, 0
        %v1054 = vsel %vm744, %v1027, 0
        %v1057 = vsel %vm744, %v1028, 0
        %v1060 = vsel %vm744, %v1029, 0
        %v1063 = vsel %vm744, %v1030, 0
        %v1066 = vsel %vm744, %v1031, 0
        %v1069 = vsel %vm744, %v1032, 0
        %v1072 = vsel %vm744, %v1033, 0
        %v1075 = vsel %vm744, %v1034, 0
        %v1078 = vsel %vm744, %v1035, 0
        %v1081 = vsel %vm744, %v1036, 0
        %v1084 = vsel %vm744, %v1037, 0
        %v1087 = vsel %vm793, %v290, 0
        %1089 = vmatprep.subr.bf16.mxu0 0
        %1090 = vmatpush1.bf16.msra.mxu0 %v1087
        %1091 = vmatprep.subr.bf16.mxu0 0
        %1092 = vmatpush1.bf16.msra.mxu0 0
        %1093 = vmatprep.subr.bf16.mxu0 0
        %1094 = vmatpush1.bf16.msra.mxu0 0
        %1095 = vmatprep.subr.bf16.mxu0 0
        %1096 = vmatpush1.bf16.msra.mxu0 0
        %1097 = vmatprep.subr.bf16.mxu0 0
        %1098 = vmatpush1.bf16.msra.mxu0 0
        %1099 = vmatprep.subr.bf16.mxu0 0
        %1100 = vmatpush1.bf16.msra.mxu0 0
        %1101 = vmatprep.subr.bf16.mxu0 0
        %1102 = vmatpush1.bf16.msra.mxu0 0
        %1103 = vmatprep.subr.bf16.mxu0 0
        %1104 = vmatpush1.bf16.msra.mxu0 0
        %1105 = vmatprep.subr.bf16.mxu0 0
        %1106 = vmatpush1.bf16.msra.mxu0 0
        %1107 = vmatprep.subr.bf16.mxu0 0
        %1108 = vmatpush1.bf16.msra.mxu0 0
        %1109 = vmatprep.subr.bf16.mxu0 0
        %1110 = vmatpush1.bf16.msra.mxu0 0
        %1111 = vmatprep.subr.bf16.mxu0 0
        %1112 = vmatpush1.bf16.msra.mxu0 0
        %1113 = vmatprep.subr.bf16.mxu0 0
        %1114 = vmatpush1.bf16.msra.mxu0 0
        %1115 = vmatprep.subr.bf16.mxu0 0
        %1116 = vmatpush1.bf16.msra.mxu0 0
        %1117 = vmatprep.subr.bf16.mxu0 0
        %1118 = vmatpush1.bf16.msra.mxu0 0
        %1119 = vmatprep.subr.bf16.mxu0 0
        %1120 = vmatpush1.bf16.msra.mxu0 0
        %1121 = vmatprep.mubr.bf16.mxu0 0
        %1122 = vmatmul.mubr.bf16.gmra.mrb[0].mxu0 %v1039
        %v1123 = vpop.f32.mrb[0].mxu0
        %v1124 = vadd.f32 %v832, %v1123
        %v1125 = vpop.f32.mrb[0].mxu0
        %v1126 = vpop.f32.mrb[0].mxu0
        %v1127 = vadd.f32 %v835, %v1126
        %v1128 = vpop.f32.mrb[0].mxu0
        %1129 = vmatprep.mubr.bf16.mxu0 0
        %1130 = vmatmul.mubr.bf16.gmra.mrb[0].mxu0 %v1042
        %v1131 = vpop.f32.mrb[0].mxu0
        %v1132 = vadd.f32 %v840, %v1131
        %v1133 = vpop.f32.mrb[0].mxu0
        %v1134 = vpop.f32.mrb[0].mxu0
        %v1135 = vadd.f32 %v843, %v1134
        %v1136 = vpop.f32.mrb[0].mxu0
        %1137 = vmatprep.mubr.bf16.mxu0 0
        %1138 = vmatmul.mubr.bf16.gmra.mrb[0].mxu0 %v1045
        %v1139 = vpop.f32.mrb[0].mxu0
        %v1140 = vadd.f32 %v848, %v1139
        %v1141 = vpop.f32.mrb[0].mxu0
        %v1142 = vpop.f32.mrb[0].mxu0
        %v1143 = vadd.f32 %v851, %v1142
        %v1144 = vpop.f32.mrb[0].mxu0
        %1145 = vmatprep.mubr.bf16.mxu0 0
        %1146 = vmatmul.mubr.bf16.gmra.mrb[0].mxu0 %v1048
        %v1147 = vpop.f32.mrb[0].mxu0
        %v1148 = vadd.f32 %v856, %v1147
        %v1149 = vpop.f32.mrb[0].mxu0
        %v1150 = vpop.f32.mrb[0].mxu0
        %v1151 = vadd.f32 %v859, %v1150
        %v1152 = vpop.f32.mrb[0].mxu0
        %1153 = vmatprep.mubr.bf16.mxu0 0
        %1154 = vmatmul.mubr.bf16.gmra.mrb[0].mxu0 %v1051
        %v1155 = vpop.f32.mrb[0].mxu0
        %v1156 = vadd.f32 %v864, %v1155
        %v1157 = vpop.f32.mrb[0].mxu0
        %v1158 = vpop.f32.mrb[0].mxu0
        %v1159 = vadd.f32 %v867, %v1158
        %v1160 = vpop.f32.mrb[0].mxu0
        %1161 = vmatprep.mubr.bf16.mxu0 0
        %1162 = vmatmul.mubr.bf16.gmra.mrb[0].mxu0 %v1054
        %v1163 = vpop.f32.mrb[0].mxu0
        %v1164 = vadd.f32 %v872, %v1163
        %v1165 = vpop.f32.mrb[0].mxu0
        %v1166 = vpop.f32.mrb[0].mxu0
        %v1167 = vadd.f32 %v875, %v1166
        %v1168 = vpop.f32.mrb[0].mxu0
        %1169 = vmatprep.mubr.bf16.mxu0 0
        %1170 = vmatmul.mubr.bf16.gmra.mrb[0].mxu0 %v1057
        %v1171 = vpop.f32.mrb[0].mxu0
        %v1172 = vadd.f32 %v880, %v1171
        %v1173 = vpop.f32.mrb[0].mxu0
        %v1174 = vpop.f32.mrb[0].mxu0
        %v1175 = vadd.f32 %v883, %v1174
        %v1176 = vpop.f32.mrb[0].mxu0
        %1177 = vmatprep.mubr.bf16.mxu0 0
        %1178 = vmatmul.mubr.bf16.gmra.mrb[0].mxu0 %v1060
        %v1179 = vpop.f32.mrb[0].mxu0
        %v1180 = vadd.f32 %v888, %v1179
        %v1181 = vpop.f32.mrb[0].mxu0
        %v1182 = vpop.f32.mrb[0].mxu0
        %v1183 = vadd.f32 %v891, %v1182
        %v1184 = vpop.f32.mrb[0].mxu0
        %1185 = vmatprep.mubr.bf16.mxu0 0
        %1186 = vmatmul.mubr.bf16.gmra.mrb[0].mxu0 %v1063
        %v1187 = vpop.f32.mrb[0].mxu0
        %v1188 = vadd.f32 %v896, %v1187
        %v1189 = vpop.f32.mrb[0].mxu0
        %v1190 = vpop.f32.mrb[0].mxu0
        %v1191 = vadd.f32 %v899, %v1190
        %v1192 = vpop.f32.mrb[0].mxu0
        %1193 = vmatprep.mubr.bf16.mxu0 0
        %1194 = vmatmul.mubr.bf16.gmra.mrb[0].mxu0 %v1066
        %v1195 = vpop.f32.mrb[0].mxu0
        %v1196 = vadd.f32 %v904, %v1195
        %v1197 = vpop.f32.mrb[0].mxu0
        %v1198 = vpop.f32.mrb[0].mxu0
        %v1199 = vadd.f32 %v907, %v1198
        %v1200 = vpop.f32.mrb[0].mxu0
        %1201 = vmatprep.mubr.bf16.mxu0 0
        %1202 = vmatmul.mubr.bf16.gmra.mrb[0].mxu0 %v1069
        %v1203 = vpop.f32.mrb[0].mxu0
        %v1204 = vadd.f32 %v912, %v1203
        %v1205 = vpop.f32.mrb[0].mxu0
        %v1206 = vpop.f32.mrb[0].mxu0
        %v1207 = vadd.f32 %v915, %v1206
        %v1208 = vpop.f32.mrb[0].mxu0
        %1209 = vmatprep.mubr.bf16.mxu0 0
        %1210 = vmatmul.mubr.bf16.gmra.mrb[0].mxu0 %v1072
        %v1211 = vpop.f32.mrb[0].mxu0
        %v1212 = vadd.f32 %v920, %v1211
        %v1213 = vpop.f32.mrb[0].mxu0
        %v1214 = vpop.f32.mrb[0].mxu0
        %v1215 = vadd.f32 %v923, %v1214
        %v1216 = vpop.f32.mrb[0].mxu0
        %1217 = vmatprep.mubr.bf16.mxu0 0
        %1218 = vmatmul.mubr.bf16.gmra.mrb[0].mxu0 %v1075
        %v1219 = vpop.f32.mrb[0].mxu0
        %v1220 = vadd.f32 %v928, %v1219
        %v1221 = vpop.f32.mrb[0].mxu0
        %v1222 = vpop.f32.mrb[0].mxu0
        %v1223 = vadd.f32 %v931, %v1222
        %v1224 = vpop.f32.mrb[0].mxu0
        %1225 = vmatprep.mubr.bf16.mxu0 0
        %1226 = vmatmul.mubr.bf16.gmra.mrb[0].mxu0 %v1078
        %v1227 = vpop.f32.mrb[0].mxu0
        %v1228 = vadd.f32 %v936, %v1227
        %v1229 = vpop.f32.mrb[0].mxu0
        %v1230 = vpop.f32.mrb[0].mxu0
        %v1231 = vadd.f32 %v939, %v1230
        %v1232 = vpop.f32.mrb[0].mxu0
        %1233 = vmatprep.mubr.bf16.mxu0 0
        %1234 = vmatmul.mubr.bf16.gmra.mrb[0].mxu0 %v1081
        %v1235 = vpop.f32.mrb[0].mxu0
        %v1236 = vadd.f32 %v944, %v1235
        %v1237 = vpop.f32.mrb[0].mxu0
        %v1238 = vpop.f32.mrb[0].mxu0
        %v1239 = vadd.f32 %v947, %v1238
        %v1240 = vpop.f32.mrb[0].mxu0
        %1241 = vmatprep.mubr.bf16.mxu0 0
        %1242 = vmatmul.mubr.bf16.gmra.mrb[0].mxu0 %v1084
        %v1243 = vpop.f32.mrb[0].mxu0
        %v1244 = vadd.f32 %v952, %v1243
        %v1245 = vpop.f32.mrb[0].mxu0
        %v1246 = vpop.f32.mrb[0].mxu0
        %v1247 = vadd.f32 %v955, %v1246
        %v1248 = vpop.f32.mrb[0].mxu0
        %1249 = vdwg.mxu0
        %v1250 = vld [vmem:[%s244] sm:$0xe]
        %v1251 = vld [vmem:[%s244 + $0xc] sm:$0xe]
        %v1252 = vld [vmem:[%s244 + $0x18] sm:$0xe]
        %v1253 = vld [vmem:[%s244 + $0x24] sm:$0xe]
        %v1254 = vld [vmem:[%s244 + $0x30] sm:$0xe]
        %v1255 = vld [vmem:[%s244 + $0x3c] sm:$0xe]
        %v1256 = vld [vmem:[%s244 + $0x48] sm:$0xe]
        %v1257 = vld [vmem:[%s244 + $0x54] sm:$0xe]
        %v1258 = vld [vmem:[%s244 + $0x60] sm:$0xe]
        %v1259 = vld [vmem:[%s244 + $0x6c] sm:$0xe]
        %v1260 = vld [vmem:[%s244 + $0x78] sm:$0xe]
        %v1261 = vld [vmem:[%s244 + $0x84] sm:$0xe]
        %v1262 = vld [vmem:[%s244 + $0x90] sm:$0xe]
        %v1263 = vld [vmem:[%s244 + $0x9c] sm:$0xe]
        %v1264 = vld [vmem:[%s244 + $0xa8] sm:$0xe]
        %v1265 = vld [vmem:[%s244 + $0xb4] sm:$0xe]
        %vm1298 = vcmask 1042432
        %vm1299 = vcmask 1046532
        %vm1300 = vmor %vm1298, %vm1299
        %v1301 = vrot.slane %v1250, 5
        %v1302 = vrot.slane %v1301, 4
        %v1303 = vrot.slane %v259, 5
        %v1304 = vsel %vm1300, %v1302, %v1303
        %v1305 = vrot.slane %v1303, 4
        %v1306 = vrot.slane %v291, 5
        %v1307 = vsel %vm1300, %v1305, %v1306
        %v1308 = vrot.slane %v1251, 5
        %v1309 = vrot.slane %v1308, 4
        %v1310 = vrot.slane %v261, 5
        %v1311 = vsel %vm1300, %v1309, %v1310
        %v1312 = vrot.slane %v1310, 4
        %v1313 = vrot.slane %v292, 5
        %v1314 = vsel %vm1300, %v1312, %v1313
        %v1315 = vrot.slane %v1252, 5
        %v1316 = vrot.slane %v1315, 4
        %v1317 = vrot.slane %v263, 5
        %v1318 = vsel %vm1300, %v1316, %v1317
        %v1319 = vrot.slane %v1317, 4
        %v1320 = vrot.slane %v293, 5
        %v1321 = vsel %vm1300, %v1319, %v1320
        %v1322 = vrot.slane %v1253, 5
        %v1323 = vrot.slane %v1322, 4
        %v1324 = vrot.slane %v265, 5
        %v1325 = vsel %vm1300, %v1323, %v1324
        %v1326 = vrot.slane %v1324, 4
        %v1327 = vrot.slane %v294, 5
        %v1328 = vsel %vm1300, %v1326, %v1327
        %v1329 = vrot.slane %v1254, 5
        %v1330 = vrot.slane %v1329, 4
        %v1331 = vrot.slane %v267, 5
        %v1332 = vsel %vm1300, %v1330, %v1331
        %v1333 = vrot.slane %v1331, 4
        %v1334 = vrot.slane %v295, 5
        %v1335 = vsel %vm1300, %v1333, %v1334
        %v1336 = vrot.slane %v1255, 5
        %v1337 = vrot.slane %v1336, 4
        %v1338 = vrot.slane %v269, 5
        %v1339 = vsel %vm1300, %v1337, %v1338
        %v1340 = vrot.slane %v1338, 4
        %v1341 = vrot.slane %v296, 5
        %v1342 = vsel %vm1300, %v1340, %v1341
        %v1343 = vrot.slane %v1256, 5
        %v1344 = vrot.slane %v1343, 4
        %v1345 = vrot.slane %v271, 5
        %v1346 = vsel %vm1300, %v1344, %v1345
        %v1347 = vrot.slane %v1345, 4
        %v1348 = vrot.slane %v297, 5
        %v1349 = vsel %vm1300, %v1347, %v1348
        %v1350 = vrot.slane %v1257, 5
        %v1351 = vrot.slane %v1350, 4
        %v1352 = vrot.slane %v273, 5
        %v1353 = vsel %vm1300, %v1351, %v1352
        %v1354 = vrot.slane %v1352, 4
        %v1355 = vrot.slane %v298, 5
        %v1356 = vsel %vm1300, %v1354, %v1355
        %v1357 = vrot.slane %v1258, 5
        %v1358 = vrot.slane %v1357, 4
        %v1359 = vrot.slane %v275, 5
        %v1360 = vsel %vm1300, %v1358, %v1359
        %v1361 = vrot.slane %v1359, 4
        %v1362 = vrot.slane %v299, 5
        %v1363 = vsel %vm1300, %v1361, %v1362
        %v1364 = vrot.slane %v1259, 5
        %v1365 = vrot.slane %v1364, 4
        %v1366 = vrot.slane %v277, 5
        %v1367 = vsel %vm1300, %v1365, %v1366
        %v1368 = vrot.slane %v1366, 4
        %v1369 = vrot.slane %v300, 5
        %v1370 = vsel %vm1300, %v1368, %v1369
        %v1371 = vrot.slane %v1260, 5
        %v1372 = vrot.slane %v1371, 4
        %v1373 = vrot.slane %v279, 5
        %v1374 = vsel %vm1300, %v1372, %v1373
        %v1375 = vrot.slane %v1373, 4
        %v1376 = vrot.slane %v301, 5
        %v1377 = vsel %vm1300, %v1375, %v1376
        %v1378 = vrot.slane %v1261, 5
        %v1379 = vrot.slane %v1378, 4
        %v1380 = vrot.slane %v281, 5
        %v1381 = vsel %vm1300, %v1379, %v1380
        %v1382 = vrot.slane %v1380, 4
        %v1383 = vrot.slane %v302, 5
        %v1384 = vsel %vm1300, %v1382, %v1383
        %v1385 = vrot.slane %v1262, 5
        %v1386 = vrot.slane %v1385, 4
        %v1387 = vrot.slane %v283, 5
        %v1388 = vsel %vm1300, %v1386, %v1387
        %v1389 = vrot.slane %v1387, 4
        %v1390 = vrot.slane %v303, 5
        %v1391 = vsel %vm1300, %v1389, %v1390
        %v1392 = vrot.slane %v1263, 5
        %v1393 = vrot.slane %v1392, 4
        %v1394 = vrot.slane %v285, 5
        %v1395 = vsel %vm1300, %v1393, %v1394
        %v1396 = vrot.slane %v1394, 4
        %v1397 = vrot.slane %v304, 5
        %v1398 = vsel %vm1300, %v1396, %v1397
        %v1399 = vrot.slane %v1264, 5
        %v1400 = vrot.slane %v1399, 4
        %v1401 = vrot.slane %v287, 5
        %v1402 = vsel %vm1300, %v1400, %v1401
        %v1403 = vrot.slane %v1401, 4
        %v1404 = vrot.slane %v305, 5
        %v1405 = vsel %vm1300, %v1403, %v1404
        %v1406 = vrot.slane %v1265, 5
        %v1407 = vrot.slane %v1406, 4
        %v1408 = vrot.slane %v289, 5
        %v1409 = vsel %vm1300, %v1407, %v1408
        %v1410 = vrot.slane %v1408, 4
        %v1411 = vrot.slane %v306, 5
        %v1412 = vsel %vm1300, %v1410, %v1411
        %s1413 = scalar_lea.vmem %s248, 8
        %v1414 = vld [vmem:[%s1413] sm:$0xf]
        %v1415 = vunpack.c.l.b16 %v1304
        %v1416 = vunpack.c.l.b16 %v1307
        %v1417 = vunpack.c.l.b16 %v1311
        %v1418 = vunpack.c.l.b16 %v1314
        %v1419 = vunpack.c.l.b16 %v1318
        %v1420 = vunpack.c.l.b16 %v1321
        %v1421 = vunpack.c.l.b16 %v1325
        %v1422 = vunpack.c.l.b16 %v1328
        %v1423 = vunpack.c.l.b16 %v1332
        %v1424 = vunpack.c.l.b16 %v1335
        %v1425 = vunpack.c.l.b16 %v1339
        %v1426 = vunpack.c.l.b16 %v1342
        %v1427 = vunpack.c.l.b16 %v1346
        %v1428 = vunpack.c.l.b16 %v1349
        %v1429 = vunpack.c.l.b16 %v1353
        %v1430 = vunpack.c.l.b16 %v1356
        %v1431 = vunpack.c.l.b16 %v1360
        %v1432 = vunpack.c.l.b16 %v1363
        %v1433 = vunpack.c.l.b16 %v1367
        %v1434 = vunpack.c.l.b16 %v1370
        %v1435 = vunpack.c.l.b16 %v1374
        %v1436 = vunpack.c.l.b16 %v1377
        %v1437 = vunpack.c.l.b16 %v1381
        %v1438 = vunpack.c.l.b16 %v1384
        %v1439 = vunpack.c.l.b16 %v1388
        %v1440 = vunpack.c.l.b16 %v1391
        %v1441 = vunpack.c.l.b16 %v1395
        %v1442 = vunpack.c.l.b16 %v1398
        %v1443 = vunpack.c.l.b16 %v1402
        %v1444 = vunpack.c.l.b16 %v1405
        %v1445 = vunpack.c.l.b16 %v1409
        %v1446 = vunpack.c.l.b16 %v1412
        %v1447 = vpack.c.b16 %v1416, %v1415
        %v1448 = vpack.c.b16 %v1418, %v1417
        %v1449 = vpack.c.b16 %v1420, %v1419
        %v1450 = vpack.c.b16 %v1422, %v1421
        %v1451 = vpack.c.b16 %v1424, %v1423
        %v1452 = vpack.c.b16 %v1426, %v1425
        %v1453 = vpack.c.b16 %v1428, %v1427
        %v1454 = vpack.c.b16 %v1430, %v1429
        %v1455 = vpack.c.b16 %v1432, %v1431
        %v1456 = vpack.c.b16 %v1434, %v1433
        %v1457 = vpack.c.b16 %v1436, %v1435
        %v1458 = vpack.c.b16 %v1438, %v1437
        %v1459 = vpack.c.b16 %v1440, %v1439
        %v1460 = vpack.c.b16 %v1442, %v1441
        %v1461 = vpack.c.b16 %v1444, %v1443
        %v1462 = vpack.c.b16 %v1446, %v1445
        %v1464 = vsel %vm744, %v1447, 0
        %v1467 = vsel %vm744, %v1448, 0
        %v1470 = vsel %vm744, %v1449, 0
        %v1473 = vsel %vm744, %v1450, 0
        %v1476 = vsel %vm744, %v1451, 0
        %v1479 = vsel %vm744, %v1452, 0
        %v1482 = vsel %vm744, %v1453, 0
        %v1485 = vsel %vm744, %v1454, 0
        %v1488 = vsel %vm744, %v1455, 0
        %v1491 = vsel %vm744, %v1456, 0
        %v1494 = vsel %vm744, %v1457, 0
        %v1497 = vsel %vm744, %v1458, 0
        %v1500 = vsel %vm744, %v1459, 0
        %v1503 = vsel %vm744, %v1460, 0
        %v1506 = vsel %vm744, %v1461, 0
        %v1509 = vsel %vm744, %v1462, 0
        %v1512 = vsel %vm793, %v1414, 0
        %1514 = vmatprep.subr.bf16.mxu0 0
        %1515 = vmatpush1.bf16.msra.mxu0 %v1512
        %1516 = vmatprep.subr.bf16.mxu0 0
        %1517 = vmatpush1.bf16.msra.mxu0 0
        %1518 = vmatprep.subr.bf16.mxu0 0
        %1519 = vmatpush1.bf16.msra.mxu0 0
        %1520 = vmatprep.subr.bf16.mxu0 0
        %1521 = vmatpush1.bf16.msra.mxu0 0
        %1522 = vmatprep.subr.bf16.mxu0 0
        %1523 = vmatpush1.bf16.msra.mxu0 0
        %1524 = vmatprep.subr.bf16.mxu0 0
        %1525 = vmatpush1.bf16.msra.mxu0 0
        %1526 = vmatprep.subr.bf16.mxu0 0
        %1527 = vmatpush1.bf16.msra.mxu0 0
        %1528 = vmatprep.subr.bf16.mxu0 0
        %1529 = vmatpush1.bf16.msra.mxu0 0
        %1530 = vmatprep.subr.bf16.mxu0 0
        %1531 = vmatpush1.bf16.msra.mxu0 0
        %1532 = vmatprep.subr.bf16.mxu0 0
        %1533 = vmatpush1.bf16.msra.mxu0 0
        %1534 = vmatprep.subr.bf16.mxu0 0
        %1535 = vmatpush1.bf16.msra.mxu0 0
        %1536 = vmatprep.subr.bf16.mxu0 0
        %1537 = vmatpush1.bf16.msra.mxu0 0
        %1538 = vmatprep.subr.bf16.mxu0 0
        %1539 = vmatpush1.bf16.msra.mxu0 0
        %1540 = vmatprep.subr.bf16.mxu0 0
        %1541 = vmatpush1.bf16.msra.mxu0 0
        %1542 = vmatprep.subr.bf16.mxu0 0
        %1543 = vmatpush1.bf16.msra.mxu0 0
        %1544 = vmatprep.subr.bf16.mxu0 0
        %1545 = vmatpush1.bf16.msra.mxu0 0
        %1546 = vmatprep.mubr.bf16.mxu0 0
        %1547 = vmatmul.mubr.bf16.gmra.mrb[0].mxu0 %v1464
        %v1548 = vpop.f32.mrb[0].mxu0
        %v1549 = vadd.f32 0.0, %v1548
        %v1550 = vpop.f32.mrb[0].mxu0
        %v1551 = vpop.f32.mrb[0].mxu0
        %v1552 = vadd.f32 0.0, %v1551
        %v1553 = vpop.f32.mrb[0].mxu0
        %1554 = vmatprep.mubr.bf16.mxu0 0
        %1555 = vmatmul.mubr.bf16.gmra.mrb[0].mxu0 %v1467
        %v1556 = vpop.f32.mrb[0].mxu0
        %v1557 = vadd.f32 0.0, %v1556
        %v1558 = vpop.f32.mrb[0].mxu0
        %v1559 = vpop.f32.mrb[0].mxu0
        %v1560 = vadd.f32 0.0, %v1559
        %v1561 = vpop.f32.mrb[0].mxu0
        %1562 = vmatprep.mubr.bf16.mxu0 0
        %1563 = vmatmul.mubr.bf16.gmra.mrb[0].mxu0 %v1470
        %v1564 = vpop.f32.mrb[0].mxu0
        %v1565 = vadd.f32 0.0, %v1564
        %v1566 = vpop.f32.mrb[0].mxu0
        %v1567 = vpop.f32.mrb[0].mxu0
        %v1568 = vadd.f32 0.0, %v1567
        %v1569 = vpop.f32.mrb[0].mxu0
        %1570 = vmatprep.mubr.bf16.mxu0 0
        %1571 = vmatmul.mubr.bf16.gmra.mrb[0].mxu0 %v1473
        %v1572 = vpop.f32.mrb[0].mxu0
        %v1573 = vadd.f32 0.0, %v1572
        %v1574 = vpop.f32.mrb[0].mxu0
        %v1575 = vpop.f32.mrb[0].mxu0
        %v1576 = vadd.f32 0.0, %v1575
        %v1577 = vpop.f32.mrb[0].mxu0
        %1578 = vmatprep.mubr.bf16.mxu0 0
        %1579 = vmatmul.mubr.bf16.gmra.mrb[0].mxu0 %v1476
        %v1580 = vpop.f32.mrb[0].mxu0
        %v1581 = vadd.f32 0.0, %v1580
        %v1582 = vpop.f32.mrb[0].mxu0
        %v1583 = vpop.f32.mrb[0].mxu0
        %v1584 = vadd.f32 0.0, %v1583
        %v1585 = vpop.f32.mrb[0].mxu0
        %1586 = vmatprep.mubr.bf16.mxu0 0
        %1587 = vmatmul.mubr.bf16.gmra.mrb[0].mxu0 %v1479
        %v1588 = vpop.f32.mrb[0].mxu0
        %v1589 = vadd.f32 0.0, %v1588
        %v1590 = vpop.f32.mrb[0].mxu0
        %v1591 = vpop.f32.mrb[0].mxu0
        %v1592 = vadd.f32 0.0, %v1591
        %v1593 = vpop.f32.mrb[0].mxu0
        %1594 = vmatprep.mubr.bf16.mxu0 0
        %1595 = vmatmul.mubr.bf16.gmra.mrb[0].mxu0 %v1482
        %v1596 = vpop.f32.mrb[0].mxu0
        %v1597 = vadd.f32 0.0, %v1596
        %v1598 = vpop.f32.mrb[0].mxu0
        %v1599 = vpop.f32.mrb[0].mxu0
        %v1600 = vadd.f32 0.0, %v1599
        %v1601 = vpop.f32.mrb[0].mxu0
        %1602 = vmatprep.mubr.bf16.mxu0 0
        %1603 = vmatmul.mubr.bf16.gmra.mrb[0].mxu0 %v1485
        %v1604 = vpop.f32.mrb[0].mxu0
        %v1605 = vadd.f32 0.0, %v1604
        %v1606 = vpop.f32.mrb[0].mxu0
        %v1607 = vpop.f32.mrb[0].mxu0
        %v1608 = vadd.f32 0.0, %v1607
        %v1609 = vpop.f32.mrb[0].mxu0
        %1610 = vmatprep.mubr.bf16.mxu0 0
        %1611 = vmatmul.mubr.bf16.gmra.mrb[0].mxu0 %v1488
        %v1612 = vpop.f32.mrb[0].mxu0
        %v1613 = vadd.f32 0.0, %v1612
        %v1614 = vpop.f32.mrb[0].mxu0
        %v1615 = vpop.f32.mrb[0].mxu0
        %v1616 = vadd.f32 0.0, %v1615
        %v1617 = vpop.f32.mrb[0].mxu0
        %1618 = vmatprep.mubr.bf16.mxu0 0
        %1619 = vmatmul.mubr.bf16.gmra.mrb[0].mxu0 %v1491
        %v1620 = vpop.f32.mrb[0].mxu0
        %v1621 = vadd.f32 0.0, %v1620
        %v1622 = vpop.f32.mrb[0].mxu0
        %v1623 = vpop.f32.mrb[0].mxu0
        %v1624 = vadd.f32 0.0, %v1623
        %v1625 = vpop.f32.mrb[0].mxu0
        %1626 = vmatprep.mubr.bf16.mxu0 0
        %1627 = vmatmul.mubr.bf16.gmra.mrb[0].mxu0 %v1494
        %v1628 = vpop.f32.mrb[0].mxu0
        %v1629 = vadd.f32 0.0, %v1628
        %v1630 = vpop.f32.mrb[0].mxu0
        %v1631 = vpop.f32.mrb[0].mxu0
        %v1632 = vadd.f32 0.0, %v1631
        %v1633 = vpop.f32.mrb[0].mxu0
        %1634 = vmatprep.mubr.bf16.mxu0 0
        %1635 = vmatmul.mubr.bf16.gmra.mrb[0].mxu0 %v1497
        %v1636 = vpop.f32.mrb[0].mxu0
        %v1637 = vadd.f32 0.0, %v1636
        %v1638 = vpop.f32.mrb[0].mxu0
        %v1639 = vpop.f32.mrb[0].mxu0
        %v1640 = vadd.f32 0.0, %v1639
        %v1641 = vpop.f32.mrb[0].mxu0
        %1642 = vmatprep.mubr.bf16.mxu0 0
        %1643 = vmatmul.mubr.bf16.gmra.mrb[0].mxu0 %v1500
        %v1644 = vpop.f32.mrb[0].mxu0
        %v1645 = vadd.f32 0.0, %v1644
        %v1646 = vpop.f32.mrb[0].mxu0
        %v1647 = vpop.f32.mrb[0].mxu0
        %v1648 = vadd.f32 0.0, %v1647
        %v1649 = vpop.f32.mrb[0].mxu0
        %1650 = vmatprep.mubr.bf16.mxu0 0
        %1651 = vmatmul.mubr.bf16.gmra.mrb[0].mxu0 %v1503
        %v1652 = vpop.f32.mrb[0].mxu0
        %v1653 = vadd.f32 0.0, %v1652
        %v1654 = vpop.f32.mrb[0].mxu0
        %v1655 = vpop.f32.mrb[0].mxu0
        %v1656 = vadd.f32 0.0, %v1655
        %v1657 = vpop.f32.mrb[0].mxu0
        %1658 = vmatprep.mubr.bf16.mxu0 0
        %1659 = vmatmul.mubr.bf16.gmra.mrb[0].mxu0 %v1506
        %v1660 = vpop.f32.mrb[0].mxu0
        %v1661 = vadd.f32 0.0, %v1660
        %v1662 = vpop.f32.mrb[0].mxu0
        %v1663 = vpop.f32.mrb[0].mxu0
        %v1664 = vadd.f32 0.0, %v1663
        %v1665 = vpop.f32.mrb[0].mxu0
        %1666 = vmatprep.mubr.bf16.mxu0 0
        %1667 = vmatmul.mubr.bf16.gmra.mrb[0].mxu0 %v1509
        %v1668 = vpop.f32.mrb[0].mxu0
        %v1669 = vadd.f32 0.0, %v1668
        %v1670 = vpop.f32.mrb[0].mxu0
        %v1671 = vpop.f32.mrb[0].mxu0
        %v1672 = vadd.f32 0.0, %v1671
        %v1673 = vpop.f32.mrb[0].mxu0
        %1674 = vdwg.mxu0
        %v1675 = vadd.f32 %v1124, %v1549
        %v1676 = vadd.f32 %v1127, %v1552
        %v1677 = vadd.f32 %v1132, %v1557
        %v1678 = vadd.f32 %v1135, %v1560
        %v1679 = vadd.f32 %v1140, %v1565
        %v1680 = vadd.f32 %v1143, %v1568
        %v1681 = vadd.f32 %v1148, %v1573
        %v1682 = vadd.f32 %v1151, %v1576
        %v1683 = vadd.f32 %v1156, %v1581
        %v1684 = vadd.f32 %v1159, %v1584
        %v1685 = vadd.f32 %v1164, %v1589
        %v1686 = vadd.f32 %v1167, %v1592
        %v1687 = vadd.f32 %v1172, %v1597
        %v1688 = vadd.f32 %v1175, %v1600
        %v1689 = vadd.f32 %v1180, %v1605
        %v1690 = vadd.f32 %v1183, %v1608
        %v1691 = vadd.f32 %v1188, %v1613
        %v1692 = vadd.f32 %v1191, %v1616
        %v1693 = vadd.f32 %v1196, %v1621
        %v1694 = vadd.f32 %v1199, %v1624
        %v1695 = vadd.f32 %v1204, %v1629
        %v1696 = vadd.f32 %v1207, %v1632
        %v1697 = vadd.f32 %v1212, %v1637
        %v1698 = vadd.f32 %v1215, %v1640
        %v1699 = vadd.f32 %v1220, %v1645
        %v1700 = vadd.f32 %v1223, %v1648
        %v1701 = vadd.f32 %v1228, %v1653
        %v1702 = vadd.f32 %v1231, %v1656
        %v1703 = vadd.f32 %v1236, %v1661
        %v1704 = vadd.f32 %v1239, %v1664
        %v1705 = vadd.f32 %v1244, %v1669
        %v1706 = vadd.f32 %v1247, %v1672
        %s1707 = scalar_lea.vmem %s244, 12
        %v1708 = vld [vmem:[%s1707] sm:$0xf]
        %v1709 = vld [vmem:[%s1707 + $0x4] sm:$0xf]
        %v1710 = vld [vmem:[%s1707 + $0xc] sm:$0xf]
        %v1711 = vld [vmem:[%s1707 + $0x10] sm:$0xf]
        %v1712 = vld [vmem:[%s1707 + $0x18] sm:$0xf]
        %v1713 = vld [vmem:[%s1707 + $0x1c] sm:$0xf]
        %v1714 = vld [vmem:[%s1707 + $0x24] sm:$0xf]
        %v1715 = vld [vmem:[%s1707 + $0x28] sm:$0xf]
        %v1716 = vld [vmem:[%s1707 + $0x30] sm:$0xf]
        %v1717 = vld [vmem:[%s1707 + $0x34] sm:$0xf]
        %v1718 = vld [vmem:[%s1707 + $0x3c] sm:$0xf]
        %v1719 = vld [vmem:[%s1707 + $0x40] sm:$0xf]
        %v1720 = vld [vmem:[%s1707 + $0x48] sm:$0xf]
        %v1721 = vld [vmem:[%s1707 + $0x4c] sm:$0xf]
        %v1722 = vld [vmem:[%s1707 + $0x54] sm:$0xf]
        %v1723 = vld [vmem:[%s1707 + $0x58] sm:$0xf]
        %v1724 = vld [vmem:[%s1707 + $0x60] sm:$0xf]
        %v1725 = vld [vmem:[%s1707 + $0x64] sm:$0xf]
        %v1726 = vld [vmem:[%s1707 + $0x6c] sm:$0xf]
        %v1727 = vld [vmem:[%s1707 + $0x70] sm:$0xf]
        %v1728 = vld [vmem:[%s1707 + $0x78] sm:$0xf]
        %v1729 = vld [vmem:[%s1707 + $0x7c] sm:$0xf]
        %v1730 = vld [vmem:[%s1707 + $0x84] sm:$0xf]
        %v1731 = vld [vmem:[%s1707 + $0x88] sm:$0xf]
        %v1732 = vld [vmem:[%s1707 + $0x90] sm:$0xf]
        %v1733 = vld [vmem:[%s1707 + $0x94] sm:$0xf]
        %v1734 = vld [vmem:[%s1707 + $0x9c] sm:$0xf]
        %v1735 = vld [vmem:[%s1707 + $0xa0] sm:$0xf]
        %v1736 = vld [vmem:[%s1707 + $0xa8] sm:$0xf]
        %v1737 = vld [vmem:[%s1707 + $0xac] sm:$0xf]
        %v1738 = vld [vmem:[%s1707 + $0xb4] sm:$0xf]
        %v1739 = vld [vmem:[%s1707 + $0xb8] sm:$0xf]
        %s1740 = scalar_lea.vmem %s248, 12
        %v1741 = vld [vmem:[%s1740] sm:$0xf]
        %v1774 = vunpack.c.l.b16 %v1708
        %v1775 = vunpack.c.l.b16 %v1709
        %v1776 = vunpack.c.l.b16 %v1710
        %v1777 = vunpack.c.l.b16 %v1711
        %v1778 = vunpack.c.l.b16 %v1712
        %v1779 = vunpack.c.l.b16 %v1713
        %v1780 = vunpack.c.l.b16 %v1714
        %v1781 = vunpack.c.l.b16 %v1715
        %v1782 = vunpack.c.l.b16 %v1716
        %v1783 = vunpack.c.l.b16 %v1717
        %v1784 = vunpack.c.l.b16 %v1718
        %v1785 = vunpack.c.l.b16 %v1719
        %v1786 = vunpack.c.l.b16 %v1720
        %v1787 = vunpack.c.l.b16 %v1721
        %v1788 = vunpack.c.l.b16 %v1722
        %v1789 = vunpack.c.l.b16 %v1723
        %v1790 = vunpack.c.l.b16 %v1724
        %v1791 = vunpack.c.l.b16 %v1725
        %v1792 = vunpack.c.l.b16 %v1726
        %v1793 = vunpack.c.l.b16 %v1727
        %v1794 = vunpack.c.l.b16 %v1728
        %v1795 = vunpack.c.l.b16 %v1729
        %v1796 = vunpack.c.l.b16 %v1730
        %v1797 = vunpack.c.l.b16 %v1731
        %v1798 = vunpack.c.l.b16 %v1732
        %v1799 = vunpack.c.l.b16 %v1733
        %v1800 = vunpack.c.l.b16 %v1734
        %v1801 = vunpack.c.l.b16 %v1735
        %v1802 = vunpack.c.l.b16 %v1736
        %v1803 = vunpack.c.l.b16 %v1737
        %v1804 = vunpack.c.l.b16 %v1738
        %v1805 = vunpack.c.l.b16 %v1739
        %v1806 = vpack.c.b16 %v1775, %v1774
        %v1807 = vpack.c.b16 %v1777, %v1776
        %v1808 = vpack.c.b16 %v1779, %v1778
        %v1809 = vpack.c.b16 %v1781, %v1780
        %v1810 = vpack.c.b16 %v1783, %v1782
        %v1811 = vpack.c.b16 %v1785, %v1784
        %v1812 = vpack.c.b16 %v1787, %v1786
        %v1813 = vpack.c.b16 %v1789, %v1788
        %v1814 = vpack.c.b16 %v1791, %v1790
        %v1815 = vpack.c.b16 %v1793, %v1792
        %v1816 = vpack.c.b16 %v1795, %v1794
        %v1817 = vpack.c.b16 %v1797, %v1796
        %v1818 = vpack.c.b16 %v1799, %v1798
        %v1819 = vpack.c.b16 %v1801, %v1800
        %v1820 = vpack.c.b16 %v1803, %v1802
        %v1821 = vpack.c.b16 %v1805, %v1804
        %v1823 = vsel %vm744, %v1806, 0
        %v1826 = vsel %vm744, %v1807, 0
        %v1829 = vsel %vm744, %v1808, 0
        %v1832 = vsel %vm744, %v1809, 0
        %v1835 = vsel %vm744, %v1810, 0
        %v1838 = vsel %vm744, %v1811, 0
        %v1841 = vsel %vm744, %v1812, 0
        %v1844 = vsel %vm744, %v1813, 0
        %v1847 = vsel %vm744, %v1814, 0
        %v1850 = vsel %vm744, %v1815, 0
        %v1853 = vsel %vm744, %v1816, 0
        %v1856 = vsel %vm744, %v1817, 0
        %v1859 = vsel %vm744, %v1818, 0
        %v1862 = vsel %vm744, %v1819, 0
        %v1865 = vsel %vm744, %v1820, 0
        %v1868 = vsel %vm744, %v1821, 0
        %v1871 = vsel %vm793, %v1741, 0
        %1873 = vmatprep.subr.bf16.mxu0 0
        %1874 = vmatpush1.bf16.msra.mxu0 %v1871
        %1875 = vmatprep.subr.bf16.mxu0 0
        %1876 = vmatpush1.bf16.msra.mxu0 0
        %1877 = vmatprep.subr.bf16.mxu0 0
        %1878 = vmatpush1.bf16.msra.mxu0 0
        %1879 = vmatprep.subr.bf16.mxu0 0
        %1880 = vmatpush1.bf16.msra.mxu0 0
        %1881 = vmatprep.subr.bf16.mxu0 0
        %1882 = vmatpush1.bf16.msra.mxu0 0
        %1883 = vmatprep.subr.bf16.mxu0 0
        %1884 = vmatpush1.bf16.msra.mxu0 0
        %1885 = vmatprep.subr.bf16.mxu0 0
        %1886 = vmatpush1.bf16.msra.mxu0 0
        %1887 = vmatprep.subr.bf16.mxu0 0
        %1888 = vmatpush1.bf16.msra.mxu0 0
        %1889 = vmatprep.subr.bf16.mxu0 0
        %1890 = vmatpush1.bf16.msra.mxu0 0
        %1891 = vmatprep.subr.bf16.mxu0 0
        %1892 = vmatpush1.bf16.msra.mxu0 0
        %1893 = vmatprep.subr.bf16.mxu0 0
        %1894 = vmatpush1.bf16.msra.mxu0 0
        %1895 = vmatprep.subr.bf16.mxu0 0
        %1896 = vmatpush1.bf16.msra.mxu0 0
        %1897 = vmatprep.subr.bf16.mxu0 0
        %1898 = vmatpush1.bf16.msra.mxu0 0
        %1899 = vmatprep.subr.bf16.mxu0 0
        %1900 = vmatpush1.bf16.msra.mxu0 0
        %1901 = vmatprep.subr.bf16.mxu0 0
        %1902 = vmatpush1.bf16.msra.mxu0 0
        %1903 = vmatprep.subr.bf16.mxu0 0
        %1904 = vmatpush1.bf16.msra.mxu0 0
        %1905 = vmatprep.mubr.bf16.mxu0 0
        %1906 = vmatmul.mubr.bf16.gmra.mrb[0].mxu0 %v1823
        %v1907 = vpop.f32.mrb[0].mxu0
        %v1908 = vadd.f32 0.0, %v1907
        %v1909 = vpop.f32.mrb[0].mxu0
        %v1910 = vpop.f32.mrb[0].mxu0
        %v1911 = vadd.f32 0.0, %v1910
        %v1912 = vpop.f32.mrb[0].mxu0
        %1913 = vmatprep.mubr.bf16.mxu0 0
        %1914 = vmatmul.mubr.bf16.gmra.mrb[0].mxu0 %v1826
        %v1915 = vpop.f32.mrb[0].mxu0
        %v1916 = vadd.f32 0.0, %v1915
        %v1917 = vpop.f32.mrb[0].mxu0
        %v1918 = vpop.f32.mrb[0].mxu0
        %v1919 = vadd.f32 0.0, %v1918
        %v1920 = vpop.f32.mrb[0].mxu0
        %1921 = vmatprep.mubr.bf16.mxu0 0
        %1922 = vmatmul.mubr.bf16.gmra.mrb[0].mxu0 %v1829
        %v1923 = vpop.f32.mrb[0].mxu0
        %v1924 = vadd.f32 0.0, %v1923
        %v1925 = vpop.f32.mrb[0].mxu0
        %v1926 = vpop.f32.mrb[0].mxu0
        %v1927 = vadd.f32 0.0, %v1926
        %v1928 = vpop.f32.mrb[0].mxu0
        %1929 = vmatprep.mubr.bf16.mxu0 0
        %1930 = vmatmul.mubr.bf16.gmra.mrb[0].mxu0 %v1832
        %v1931 = vpop.f32.mrb[0].mxu0
        %v1932 = vadd.f32 0.0, %v1931
        %v1933 = vpop.f32.mrb[0].mxu0
        %v1934 = vpop.f32.mrb[0].mxu0
        %v1935 = vadd.f32 0.0, %v1934
        %v1936 = vpop.f32.mrb[0].mxu0
        %1937 = vmatprep.mubr.bf16.mxu0 0
        %1938 = vmatmul.mubr.bf16.gmra.mrb[0].mxu0 %v1835
        %v1939 = vpop.f32.mrb[0].mxu0
        %v1940 = vadd.f32 0.0, %v1939
        %v1941 = vpop.f32.mrb[0].mxu0
        %v1942 = vpop.f32.mrb[0].mxu0
        %v1943 = vadd.f32 0.0, %v1942
        %v1944 = vpop.f32.mrb[0].mxu0
        %1945 = vmatprep.mubr.bf16.mxu0 0
        %1946 = vmatmul.mubr.bf16.gmra.mrb[0].mxu0 %v1838
        %v1947 = vpop.f32.mrb[0].mxu0
        %v1948 = vadd.f32 0.0, %v1947
        %v1949 = vpop.f32.mrb[0].mxu0
        %v1950 = vpop.f32.mrb[0].mxu0
        %v1951 = vadd.f32 0.0, %v1950
        %v1952 = vpop.f32.mrb[0].mxu0
        %1953 = vmatprep.mubr.bf16.mxu0 0
        %1954 = vmatmul.mubr.bf16.gmra.mrb[0].mxu0 %v1841
        %v1955 = vpop.f32.mrb[0].mxu0
        %v1956 = vadd.f32 0.0, %v1955
        %v1957 = vpop.f32.mrb[0].mxu0
        %v1958 = vpop.f32.mrb[0].mxu0
        %v1959 = vadd.f32 0.0, %v1958
        %v1960 = vpop.f32.mrb[0].mxu0
        %1961 = vmatprep.mubr.bf16.mxu0 0
        %1962 = vmatmul.mubr.bf16.gmra.mrb[0].mxu0 %v1844
        %v1963 = vpop.f32.mrb[0].mxu0
        %v1964 = vadd.f32 0.0, %v1963
        %v1965 = vpop.f32.mrb[0].mxu0
        %v1966 = vpop.f32.mrb[0].mxu0
        %v1967 = vadd.f32 0.0, %v1966
        %v1968 = vpop.f32.mrb[0].mxu0
        %1969 = vmatprep.mubr.bf16.mxu0 0
        %1970 = vmatmul.mubr.bf16.gmra.mrb[0].mxu0 %v1847
        %v1971 = vpop.f32.mrb[0].mxu0
        %v1972 = vadd.f32 0.0, %v1971
        %v1973 = vpop.f32.mrb[0].mxu0
        %v1974 = vpop.f32.mrb[0].mxu0
        %v1975 = vadd.f32 0.0, %v1974
        %v1976 = vpop.f32.mrb[0].mxu0
        %1977 = vmatprep.mubr.bf16.mxu0 0
        %1978 = vmatmul.mubr.bf16.gmra.mrb[0].mxu0 %v1850
        %v1979 = vpop.f32.mrb[0].mxu0
        %v1980 = vadd.f32 0.0, %v1979
        %v1981 = vpop.f32.mrb[0].mxu0
        %v1982 = vpop.f32.mrb[0].mxu0
        %v1983 = vadd.f32 0.0, %v1982
        %v1984 = vpop.f32.mrb[0].mxu0
        %1985 = vmatprep.mubr.bf16.mxu0 0
        %1986 = vmatmul.mubr.bf16.gmra.mrb[0].mxu0 %v1853
        %v1987 = vpop.f32.mrb[0].mxu0
        %v1988 = vadd.f32 0.0, %v1987
        %v1989 = vpop.f32.mrb[0].mxu0
        %v1990 = vpop.f32.mrb[0].mxu0
        %v1991 = vadd.f32 0.0, %v1990
        %v1992 = vpop.f32.mrb[0].mxu0
        %1993 = vmatprep.mubr.bf16.mxu0 0
        %1994 = vmatmul.mubr.bf16.gmra.mrb[0].mxu0 %v1856
        %v1995 = vpop.f32.mrb[0].mxu0
        %v1996 = vadd.f32 0.0, %v1995
        %v1997 = vpop.f32.mrb[0].mxu0
        %v1998 = vpop.f32.mrb[0].mxu0
        %v1999 = vadd.f32 0.0, %v1998
        %v2000 = vpop.f32.mrb[0].mxu0
        %2001 = vmatprep.mubr.bf16.mxu0 0
        %2002 = vmatmul.mubr.bf16.gmra.mrb[0].mxu0 %v1859
        %v2003 = vpop.f32.mrb[0].mxu0
        %v2004 = vadd.f32 0.0, %v2003
        %v2005 = vpop.f32.mrb[0].mxu0
        %v2006 = vpop.f32.mrb[0].mxu0
        %v2007 = vadd.f32 0.0, %v2006
        %v2008 = vpop.f32.mrb[0].mxu0
        %2009 = vmatprep.mubr.bf16.mxu0 0
        %2010 = vmatmul.mubr.bf16.gmra.mrb[0].mxu0 %v1862
        %v2011 = vpop.f32.mrb[0].mxu0
        %v2012 = vadd.f32 0.0, %v2011
        %v2013 = vpop.f32.mrb[0].mxu0
        %v2014 = vpop.f32.mrb[0].mxu0
        %v2015 = vadd.f32 0.0, %v2014
        %v2016 = vpop.f32.mrb[0].mxu0
        %2017 = vmatprep.mubr.bf16.mxu0 0
        %2018 = vmatmul.mubr.bf16.gmra.mrb[0].mxu0 %v1865
        %v2019 = vpop.f32.mrb[0].mxu0
        %v2020 = vadd.f32 0.0, %v2019
        %v2021 = vpop.f32.mrb[0].mxu0
        %v2022 = vpop.f32.mrb[0].mxu0
        %v2023 = vadd.f32 0.0, %v2022
        %v2024 = vpop.f32.mrb[0].mxu0
        %2025 = vmatprep.mubr.bf16.mxu0 0
        %2026 = vmatmul.mubr.bf16.gmra.mrb[0].mxu0 %v1868
        %v2027 = vpop.f32.mrb[0].mxu0
        %v2028 = vadd.f32 0.0, %v2027
        %v2029 = vpop.f32.mrb[0].mxu0
        %v2030 = vpop.f32.mrb[0].mxu0
        %v2031 = vadd.f32 0.0, %v2030
        %v2032 = vpop.f32.mrb[0].mxu0
        %2033 = vdwg.mxu0
        %v2034 = vadd.f32 %v1675, %v1908
        %v2035 = vadd.f32 %v1676, %v1911
        %v2036 = vadd.f32 %v1677, %v1916
        %v2037 = vadd.f32 %v1678, %v1919
        %v2038 = vadd.f32 %v1679, %v1924
        %v2039 = vadd.f32 %v1680, %v1927
        %v2040 = vadd.f32 %v1681, %v1932
        %v2041 = vadd.f32 %v1682, %v1935
        %v2042 = vadd.f32 %v1683, %v1940
        %v2043 = vadd.f32 %v1684, %v1943
        %v2044 = vadd.f32 %v1685, %v1948
        %v2045 = vadd.f32 %v1686, %v1951
        %v2046 = vadd.f32 %v1687, %v1956
        %v2047 = vadd.f32 %v1688, %v1959
        %v2048 = vadd.f32 %v1689, %v1964
        %v2049 = vadd.f32 %v1690, %v1967
        %v2050 = vadd.f32 %v1691, %v1972
        %v2051 = vadd.f32 %v1692, %v1975
        %v2052 = vadd.f32 %v1693, %v1980
        %v2053 = vadd.f32 %v1694, %v1983
        %v2054 = vadd.f32 %v1695, %v1988
        %v2055 = vadd.f32 %v1696, %v1991
        %v2056 = vadd.f32 %v1697, %v1996
        %v2057 = vadd.f32 %v1698, %v1999
        %v2058 = vadd.f32 %v1699, %v2004
        %v2059 = vadd.f32 %v1700, %v2007
        %v2060 = vadd.f32 %v1701, %v2012
        %v2061 = vadd.f32 %v1702, %v2015
        %v2062 = vadd.f32 %v1703, %v2020
        %v2063 = vadd.f32 %v1704, %v2023
        %v2064 = vadd.f32 %v1705, %v2028
        %v2065 = vadd.f32 %v1706, %v2031
        %v2066 = vld [vmem:[%s1707] sm:$0xf]
        %v2067 = vld [vmem:[%s1707 + $0x4] sm:$0xf]
        %v2068 = vld [vmem:[%s1707 + $0x8] sm:$0x1]
        %v2069 = vld [vmem:[%s1707 + $0xc] sm:$0xf]
        %v2070 = vld [vmem:[%s1707 + $0x10] sm:$0xf]
        %v2071 = vld [vmem:[%s1707 + $0x14] sm:$0x1]
        %v2072 = vld [vmem:[%s1707 + $0x18] sm:$0xf]
        %v2073 = vld [vmem:[%s1707 + $0x1c] sm:$0xf]
        %v2074 = vld [vmem:[%s1707 + $0x20] sm:$0x1]
        %v2075 = vld [vmem:[%s1707 + $0x24] sm:$0xf]
        %v2076 = vld [vmem:[%s1707 + $0x28] sm:$0xf]
        %v2077 = vld [vmem:[%s1707 + $0x2c] sm:$0x1]
        %v2078 = vld [vmem:[%s1707 + $0x30] sm:$0xf]
        %v2079 = vld [vmem:[%s1707 + $0x34] sm:$0xf]
        %v2080 = vld [vmem:[%s1707 + $0x38] sm:$0x1]
        %v2081 = vld [vmem:[%s1707 + $0x3c] sm:$0xf]
        %v2082 = vld [vmem:[%s1707 + $0x40] sm:$0xf]
        %v2083 = vld [vmem:[%s1707 + $0x44] sm:$0x1]
        %v2084 = vld [vmem:[%s1707 + $0x48] sm:$0xf]
        %v2085 = vld [vmem:[%s1707 + $0x4c] sm:$0xf]
        %v2086 = vld [vmem:[%s1707 + $0x50] sm:$0x1]
        %v2087 = vld [vmem:[%s1707 + $0x54] sm:$0xf]
        %v2088 = vld [vmem:[%s1707 + $0x58] sm:$0xf]
        %v2089 = vld [vmem:[%s1707 + $0x5c] sm:$0x1]
        %v2090 = vld [vmem:[%s1707 + $0x60] sm:$0xf]
        %v2091 = vld [vmem:[%s1707 + $0x64] sm:$0xf]
        %v2092 = vld [vmem:[%s1707 + $0x68] sm:$0x1]
        %v2093 = vld [vmem:[%s1707 + $0x6c] sm:$0xf]
        %v2094 = vld [vmem:[%s1707 + $0x70] sm:$0xf]
        %v2095 = vld [vmem:[%s1707 + $0x74] sm:$0x1]
        %v2096 = vld [vmem:[%s1707 + $0x78] sm:$0xf]
        %v2097 = vld [vmem:[%s1707 + $0x7c] sm:$0xf]
        %v2098 = vld [vmem:[%s1707 + $0x80] sm:$0x1]
        %v2099 = vld [vmem:[%s1707 + $0x84] sm:$0xf]
        %v2100 = vld [vmem:[%s1707 + $0x88] sm:$0xf]
        %v2101 = vld [vmem:[%s1707 + $0x8c] sm:$0x1]
        %v2102 = vld [vmem:[%s1707 + $0x90] sm:$0xf]
        %v2103 = vld [vmem:[%s1707 + $0x94] sm:$0xf]
        %v2104 = vld [vmem:[%s1707 + $0x98] sm:$0x1]
        %v2105 = vld [vmem:[%s1707 + $0x9c] sm:$0xf]
        %v2106 = vld [vmem:[%s1707 + $0xa0] sm:$0xf]
        %v2107 = vld [vmem:[%s1707 + $0xa4] sm:$0x1]
        %v2108 = vld [vmem:[%s1707 + $0xa8] sm:$0xf]
        %v2109 = vld [vmem:[%s1707 + $0xac] sm:$0xf]
        %v2110 = vld [vmem:[%s1707 + $0xb0] sm:$0x1]
        %v2111 = vld [vmem:[%s1707 + $0xb4] sm:$0xf]
        %v2112 = vld [vmem:[%s1707 + $0xb8] sm:$0xf]
        %v2113 = vld [vmem:[%s1707 + $0xbc] sm:$0x1]
        %v2115 = vshrl.u32 %v2066, 16
        %v2117 = vrot.slane %v2115, 4
        %v2118 = vshll.u32 %v2066, 16
        %v2120 = vrot.slane %v2118, 5
        %v2121 = vor.u32 %v2117, %v2120
        %v2122 = vrot.slane %v2121, 4
        %v2124 = vshll.u32 %v2067, 16
        %v2126 = vrot.slane %v2124, 5
        %v2127 = vsel %vm309, %v2122, %v2126
        %v2128 = vshrl.u32 %v2067, 16
        %v2130 = vrot.slane %v2128, 4
        %v2131 = vor.u32 %v2130, %v2126
        %v2132 = vrot.slane %v2131, 4
        %v2134 = vshll.u32 %v2068, 16
        %v2136 = vrot.slane %v2134, 5
        %v2137 = vsel %vm309, %v2132, %v2136
        %v2139 = vshrl.u32 %v2069, 16
        %v2141 = vrot.slane %v2139, 4
        %v2142 = vshll.u32 %v2069, 16
        %v2144 = vrot.slane %v2142, 5
        %v2145 = vor.u32 %v2141, %v2144
        %v2146 = vrot.slane %v2145, 4
        %v2148 = vshll.u32 %v2070, 16
        %v2150 = vrot.slane %v2148, 5
        %v2151 = vsel %vm309, %v2146, %v2150
        %v2152 = vshrl.u32 %v2070, 16
        %v2154 = vrot.slane %v2152, 4
        %v2155 = vor.u32 %v2154, %v2150
        %v2156 = vrot.slane %v2155, 4
        %v2158 = vshll.u32 %v2071, 16
        %v2160 = vrot.slane %v2158, 5
        %v2161 = vsel %vm309, %v2156, %v2160
        %v2163 = vshrl.u32 %v2072, 16
        %v2165 = vrot.slane %v2163, 4
        %v2166 = vshll.u32 %v2072, 16
        %v2168 = vrot.slane %v2166, 5
        %v2169 = vor.u32 %v2165, %v2168
        %v2170 = vrot.slane %v2169, 4
        %v2172 = vshll.u32 %v2073, 16
        %v2174 = vrot.slane %v2172, 5
        %v2175 = vsel %vm309, %v2170, %v2174
        %v2176 = vshrl.u32 %v2073, 16
        %v2178 = vrot.slane %v2176, 4
        %v2179 = vor.u32 %v2178, %v2174
        %v2180 = vrot.slane %v2179, 4
        %v2182 = vshll.u32 %v2074, 16
        %v2184 = vrot.slane %v2182, 5
        %v2185 = vsel %vm309, %v2180, %v2184
        %v2187 = vshrl.u32 %v2075, 16
        %v2189 = vrot.slane %v2187, 4
        %v2190 = vshll.u32 %v2075, 16
        %v2192 = vrot.slane %v2190, 5
        %v2193 = vor.u32 %v2189, %v2192
        %v2194 = vrot.slane %v2193, 4
        %v2196 = vshll.u32 %v2076, 16
        %v2198 = vrot.slane %v2196, 5
        %v2199 = vsel %vm309, %v2194, %v2198
        %v2200 = vshrl.u32 %v2076, 16
        %v2202 = vrot.slane %v2200, 4
        %v2203 = vor.u32 %v2202, %v2198
        %v2204 = vrot.slane %v2203, 4
        %v2206 = vshll.u32 %v2077, 16
        %v2208 = vrot.slane %v2206, 5
        %v2209 = vsel %vm309, %v2204, %v2208
        %v2211 = vshrl.u32 %v2078, 16
        %v2213 = vrot.slane %v2211, 4
        %v2214 = vshll.u32 %v2078, 16
        %v2216 = vrot.slane %v2214, 5
        %v2217 = vor.u32 %v2213, %v2216
        %v2218 = vrot.slane %v2217, 4
        %v2220 = vshll.u32 %v2079, 16
        %v2222 = vrot.slane %v2220, 5
        %v2223 = vsel %vm309, %v2218, %v2222
        %v2224 = vshrl.u32 %v2079, 16
        %v2226 = vrot.slane %v2224, 4
        %v2227 = vor.u32 %v2226, %v2222
        %v2228 = vrot.slane %v2227, 4
        %v2230 = vshll.u32 %v2080, 16
        %v2232 = vrot.slane %v2230, 5
        %v2233 = vsel %vm309, %v2228, %v2232
        %v2235 = vshrl.u32 %v2081, 16
        %v2237 = vrot.slane %v2235, 4
        %v2238 = vshll.u32 %v2081, 16
        %v2240 = vrot.slane %v2238, 5
        %v2241 = vor.u32 %v2237, %v2240
        %v2242 = vrot.slane %v2241, 4
        %v2244 = vshll.u32 %v2082, 16
        %v2246 = vrot.slane %v2244, 5
        %v2247 = vsel %vm309, %v2242, %v2246
        %v2248 = vshrl.u32 %v2082, 16
        %v2250 = vrot.slane %v2248, 4
        %v2251 = vor.u32 %v2250, %v2246
        %v2252 = vrot.slane %v2251, 4
        %v2254 = vshll.u32 %v2083, 16
        %v2256 = vrot.slane %v2254, 5
        %v2257 = vsel %vm309, %v2252, %v2256
        %v2259 = vshrl.u32 %v2084, 16
        %v2261 = vrot.slane %v2259, 4
        %v2262 = vshll.u32 %v2084, 16
        %v2264 = vrot.slane %v2262, 5
        %v2265 = vor.u32 %v2261, %v2264
        %v2266 = vrot.slane %v2265, 4
        %v2268 = vshll.u32 %v2085, 16
        %v2270 = vrot.slane %v2268, 5
        %v2271 = vsel %vm309, %v2266, %v2270
        %v2272 = vshrl.u32 %v2085, 16
        %v2274 = vrot.slane %v2272, 4
        %v2275 = vor.u32 %v2274, %v2270
        %v2276 = vrot.slane %v2275, 4
        %v2278 = vshll.u32 %v2086, 16
        %v2280 = vrot.slane %v2278, 5
        %v2281 = vsel %vm309, %v2276, %v2280
        %v2283 = vshrl.u32 %v2087, 16
        %v2285 = vrot.slane %v2283, 4
        %v2286 = vshll.u32 %v2087, 16
        %v2288 = vrot.slane %v2286, 5
        %v2289 = vor.u32 %v2285, %v2288
        %v2290 = vrot.slane %v2289, 4
        %v2292 = vshll.u32 %v2088, 16
        %v2294 = vrot.slane %v2292, 5
        %v2295 = vsel %vm309, %v2290, %v2294
        %v2296 = vshrl.u32 %v2088, 16
        %v2298 = vrot.slane %v2296, 4
        %v2299 = vor.u32 %v2298, %v2294
        %v2300 = vrot.slane %v2299, 4
        %v2302 = vshll.u32 %v2089, 16
        %v2304 = vrot.slane %v2302, 5
        %v2305 = vsel %vm309, %v2300, %v2304
        %v2307 = vshrl.u32 %v2090, 16
        %v2309 = vrot.slane %v2307, 4
        %v2310 = vshll.u32 %v2090, 16
        %v2312 = vrot.slane %v2310, 5
        %v2313 = vor.u32 %v2309, %v2312
        %v2314 = vrot.slane %v2313, 4
        %v2316 = vshll.u32 %v2091, 16
        %v2318 = vrot.slane %v2316, 5
        %v2319 = vsel %vm309, %v2314, %v2318
        %v2320 = vshrl.u32 %v2091, 16
        %v2322 = vrot.slane %v2320, 4
        %v2323 = vor.u32 %v2322, %v2318
        %v2324 = vrot.slane %v2323, 4
        %v2326 = vshll.u32 %v2092, 16
        %v2328 = vrot.slane %v2326, 5
        %v2329 = vsel %vm309, %v2324, %v2328
        %v2331 = vshrl.u32 %v2093, 16
        %v2333 = vrot.slane %v2331, 4
        %v2334 = vshll.u32 %v2093, 16
        %v2336 = vrot.slane %v2334, 5
        %v2337 = vor.u32 %v2333, %v2336
        %v2338 = vrot.slane %v2337, 4
        %v2340 = vshll.u32 %v2094, 16
        %v2342 = vrot.slane %v2340, 5
        %v2343 = vsel %vm309, %v2338, %v2342
        %v2344 = vshrl.u32 %v2094, 16
        %v2346 = vrot.slane %v2344, 4
        %v2347 = vor.u32 %v2346, %v2342
        %v2348 = vrot.slane %v2347, 4
        %v2350 = vshll.u32 %v2095, 16
        %v2352 = vrot.slane %v2350, 5
        %v2353 = vsel %vm309, %v2348, %v2352
        %v2355 = vshrl.u32 %v2096, 16
        %v2357 = vrot.slane %v2355, 4
        %v2358 = vshll.u32 %v2096, 16
        %v2360 = vrot.slane %v2358, 5
        %v2361 = vor.u32 %v2357, %v2360
        %v2362 = vrot.slane %v2361, 4
        %v2364 = vshll.u32 %v2097, 16
        %v2366 = vrot.slane %v2364, 5
        %v2367 = vsel %vm309, %v2362, %v2366
        %v2368 = vshrl.u32 %v2097, 16
        %v2370 = vrot.slane %v2368, 4
        %v2371 = vor.u32 %v2370, %v2366
        %v2372 = vrot.slane %v2371, 4
        %v2374 = vshll.u32 %v2098, 16
        %v2376 = vrot.slane %v2374, 5
        %v2377 = vsel %vm309, %v2372, %v2376
        %v2379 = vshrl.u32 %v2099, 16
        %v2381 = vrot.slane %v2379, 4
        %v2382 = vshll.u32 %v2099, 16
        %v2384 = vrot.slane %v2382, 5
        %v2385 = vor.u32 %v2381, %v2384
        %v2386 = vrot.slane %v2385, 4
        %v2388 = vshll.u32 %v2100, 16
        %v2390 = vrot.slane %v2388, 5
        %v2391 = vsel %vm309, %v2386, %v2390
        %v2392 = vshrl.u32 %v2100, 16
        %v2394 = vrot.slane %v2392, 4
        %v2395 = vor.u32 %v2394, %v2390
        %v2396 = vrot.slane %v2395, 4
        %v2398 = vshll.u32 %v2101, 16
        %v2400 = vrot.slane %v2398, 5
        %v2401 = vsel %vm309, %v2396, %v2400
        %v2403 = vshrl.u32 %v2102, 16
        %v2405 = vrot.slane %v2403, 4
        %v2406 = vshll.u32 %v2102, 16
        %v2408 = vrot.slane %v2406, 5
        %v2409 = vor.u32 %v2405, %v2408
        %v2410 = vrot.slane %v2409, 4
        %v2412 = vshll.u32 %v2103, 16
        %v2414 = vrot.slane %v2412, 5
        %v2415 = vsel %vm309, %v2410, %v2414
        %v2416 = vshrl.u32 %v2103, 16
        %v2418 = vrot.slane %v2416, 4
        %v2419 = vor.u32 %v2418, %v2414
        %v2420 = vrot.slane %v2419, 4
        %v2422 = vshll.u32 %v2104, 16
        %v2424 = vrot.slane %v2422, 5
        %v2425 = vsel %vm309, %v2420, %v2424
        %v2427 = vshrl.u32 %v2105, 16
        %v2429 = vrot.slane %v2427, 4
        %v2430 = vshll.u32 %v2105, 16
        %v2432 = vrot.slane %v2430, 5
        %v2433 = vor.u32 %v2429, %v2432
        %v2434 = vrot.slane %v2433, 4
        %v2436 = vshll.u32 %v2106, 16
        %v2438 = vrot.slane %v2436, 5
        %v2439 = vsel %vm309, %v2434, %v2438
        %v2440 = vshrl.u32 %v2106, 16
        %v2442 = vrot.slane %v2440, 4
        %v2443 = vor.u32 %v2442, %v2438
        %v2444 = vrot.slane %v2443, 4
        %v2446 = vshll.u32 %v2107, 16
        %v2448 = vrot.slane %v2446, 5
        %v2449 = vsel %vm309, %v2444, %v2448
        %v2451 = vshrl.u32 %v2108, 16
        %v2453 = vrot.slane %v2451, 4
        %v2454 = vshll.u32 %v2108, 16
        %v2456 = vrot.slane %v2454, 5
        %v2457 = vor.u32 %v2453, %v2456
        %v2458 = vrot.slane %v2457, 4
        %v2460 = vshll.u32 %v2109, 16
        %v2462 = vrot.slane %v2460, 5
        %v2463 = vsel %vm309, %v2458, %v2462
        %v2464 = vshrl.u32 %v2109, 16
        %v2466 = vrot.slane %v2464, 4
        %v2467 = vor.u32 %v2466, %v2462
        %v2468 = vrot.slane %v2467, 4
        %v2470 = vshll.u32 %v2110, 16
        %v2472 = vrot.slane %v2470, 5
        %v2473 = vsel %vm309, %v2468, %v2472
        %v2475 = vshrl.u32 %v2111, 16
        %v2477 = vrot.slane %v2475, 4
        %v2478 = vshll.u32 %v2111, 16
        %v2480 = vrot.slane %v2478, 5
        %v2481 = vor.u32 %v2477, %v2480
        %v2482 = vrot.slane %v2481, 4
        %v2484 = vshll.u32 %v2112, 16
        %v2486 = vrot.slane %v2484, 5
        %v2487 = vsel %vm309, %v2482, %v2486
        %v2488 = vshrl.u32 %v2112, 16
        %v2490 = vrot.slane %v2488, 4
        %v2491 = vor.u32 %v2490, %v2486
        %v2492 = vrot.slane %v2491, 4
        %v2494 = vshll.u32 %v2113, 16
        %v2496 = vrot.slane %v2494, 5
        %v2497 = vsel %vm309, %v2492, %v2496
        %s2498 = scalar_lea.vmem %s248, 16
        %v2499 = vld [vmem:[%s2498] sm:$0xf]
        %v2500 = vunpack.c.l.b16 %v2127
        %v2501 = vunpack.c.l.b16 %v2137
        %v2502 = vunpack.c.l.b16 %v2151
        %v2503 = vunpack.c.l.b16 %v2161
        %v2504 = vunpack.c.l.b16 %v2175
        %v2505 = vunpack.c.l.b16 %v2185
        %v2506 = vunpack.c.l.b16 %v2199
        %v2507 = vunpack.c.l.b16 %v2209
        %v2508 = vunpack.c.l.b16 %v2223
        %v2509 = vunpack.c.l.b16 %v2233
        %v2510 = vunpack.c.l.b16 %v2247
        %v2511 = vunpack.c.l.b16 %v2257
        %v2512 = vunpack.c.l.b16 %v2271
        %v2513 = vunpack.c.l.b16 %v2281
        %v2514 = vunpack.c.l.b16 %v2295
        %v2515 = vunpack.c.l.b16 %v2305
        %v2516 = vunpack.c.l.b16 %v2319
        %v2517 = vunpack.c.l.b16 %v2329
        %v2518 = vunpack.c.l.b16 %v2343
        %v2519 = vunpack.c.l.b16 %v2353
        %v2520 = vunpack.c.l.b16 %v2367
        %v2521 = vunpack.c.l.b16 %v2377
        %v2522 = vunpack.c.l.b16 %v2391
        %v2523 = vunpack.c.l.b16 %v2401
        %v2524 = vunpack.c.l.b16 %v2415
        %v2525 = vunpack.c.l.b16 %v2425
        %v2526 = vunpack.c.l.b16 %v2439
        %v2527 = vunpack.c.l.b16 %v2449
        %v2528 = vunpack.c.l.b16 %v2463
        %v2529 = vunpack.c.l.b16 %v2473
        %v2530 = vunpack.c.l.b16 %v2487
        %v2531 = vunpack.c.l.b16 %v2497
        %v2532 = vpack.c.b16 %v2501, %v2500
        %v2533 = vpack.c.b16 %v2503, %v2502
        %v2534 = vpack.c.b16 %v2505, %v2504
        %v2535 = vpack.c.b16 %v2507, %v2506
        %v2536 = vpack.c.b16 %v2509, %v2508
        %v2537 = vpack.c.b16 %v2511, %v2510
        %v2538 = vpack.c.b16 %v2513, %v2512
        %v2539 = vpack.c.b16 %v2515, %v2514
        %v2540 = vpack.c.b16 %v2517, %v2516
        %v2541 = vpack.c.b16 %v2519, %v2518
        %v2542 = vpack.c.b16 %v2521, %v2520
        %v2543 = vpack.c.b16 %v2523, %v2522
        %v2544 = vpack.c.b16 %v2525, %v2524
        %v2545 = vpack.c.b16 %v2527, %v2526
        %v2546 = vpack.c.b16 %v2529, %v2528
        %v2547 = vpack.c.b16 %v2531, %v2530
        %v2549 = vsel %vm744, %v2532, 0
        %v2552 = vsel %vm744, %v2533, 0
        %v2555 = vsel %vm744, %v2534, 0
        %v2558 = vsel %vm744, %v2535, 0
        %v2561 = vsel %vm744, %v2536, 0
        %v2564 = vsel %vm744, %v2537, 0
        %v2567 = vsel %vm744, %v2538, 0
        %v2570 = vsel %vm744, %v2539, 0
        %v2573 = vsel %vm744, %v2540, 0
        %v2576 = vsel %vm744, %v2541, 0
        %v2579 = vsel %vm744, %v2542, 0
        %v2582 = vsel %vm744, %v2543, 0
        %v2585 = vsel %vm744, %v2544, 0
        %v2588 = vsel %vm744, %v2545, 0
        %v2591 = vsel %vm744, %v2546, 0
        %v2594 = vsel %vm744, %v2547, 0
        %v2597 = vsel %vm793, %v2499, 0
        %2599 = vmatprep.subr.bf16.mxu0 0
        %2600 = vmatpush1.bf16.msra.mxu0 %v2597
        %2601 = vmatprep.subr.bf16.mxu0 0
        %2602 = vmatpush1.bf16.msra.mxu0 0
        %2603 = vmatprep.subr.bf16.mxu0 0
        %2604 = vmatpush1.bf16.msra.mxu0 0
        %2605 = vmatprep.subr.bf16.mxu0 0
        %2606 = vmatpush1.bf16.msra.mxu0 0
        %2607 = vmatprep.subr.bf16.mxu0 0
        %2608 = vmatpush1.bf16.msra.mxu0 0
        %2609 = vmatprep.subr.bf16.mxu0 0
        %2610 = vmatpush1.bf16.msra.mxu0 0
        %2611 = vmatprep.subr.bf16.mxu0 0
        %2612 = vmatpush1.bf16.msra.mxu0 0
        %2613 = vmatprep.subr.bf16.mxu0 0
        %2614 = vmatpush1.bf16.msra.mxu0 0
        %2615 = vmatprep.subr.bf16.mxu0 0
        %2616 = vmatpush1.bf16.msra.mxu0 0
        %2617 = vmatprep.subr.bf16.mxu0 0
        %2618 = vmatpush1.bf16.msra.mxu0 0
        %2619 = vmatprep.subr.bf16.mxu0 0
        %2620 = vmatpush1.bf16.msra.mxu0 0
        %2621 = vmatprep.subr.bf16.mxu0 0
        %2622 = vmatpush1.bf16.msra.mxu0 0
        %2623 = vmatprep.subr.bf16.mxu0 0
        %2624 = vmatpush1.bf16.msra.mxu0 0
        %2625 = vmatprep.subr.bf16.mxu0 0
        %2626 = vmatpush1.bf16.msra.mxu0 0
        %2627 = vmatprep.subr.bf16.mxu0 0
        %2628 = vmatpush1.bf16.msra.mxu0 0
        %2629 = vmatprep.subr.bf16.mxu0 0
        %2630 = vmatpush1.bf16.msra.mxu0 0
        %2631 = vmatprep.mubr.bf16.mxu0 0
        %2632 = vmatmul.mubr.bf16.gmra.mrb[0].mxu0 %v2549
        %v2633 = vpop.f32.mrb[0].mxu0
        %v2634 = vadd.f32 0.0, %v2633
        %v2635 = vpop.f32.mrb[0].mxu0
        %v2636 = vpop.f32.mrb[0].mxu0
        %v2637 = vadd.f32 0.0, %v2636
        %v2638 = vpop.f32.mrb[0].mxu0
        %2639 = vmatprep.mubr.bf16.mxu0 0
        %2640 = vmatmul.mubr.bf16.gmra.mrb[0].mxu0 %v2552
        %v2641 = vpop.f32.mrb[0].mxu0
        %v2642 = vadd.f32 0.0, %v2641
        %v2643 = vpop.f32.mrb[0].mxu0
        %v2644 = vpop.f32.mrb[0].mxu0
        %v2645 = vadd.f32 0.0, %v2644
        %v2646 = vpop.f32.mrb[0].mxu0
        %2647 = vmatprep.mubr.bf16.mxu0 0
        %2648 = vmatmul.mubr.bf16.gmra.mrb[0].mxu0 %v2555
        %v2649 = vpop.f32.mrb[0].mxu0
        %v2650 = vadd.f32 0.0, %v2649
        %v2651 = vpop.f32.mrb[0].mxu0
        %v2652 = vpop.f32.mrb[0].mxu0
        %v2653 = vadd.f32 0.0, %v2652
        %v2654 = vpop.f32.mrb[0].mxu0
        %2655 = vmatprep.mubr.bf16.mxu0 0
        %2656 = vmatmul.mubr.bf16.gmra.mrb[0].mxu0 %v2558
        %v2657 = vpop.f32.mrb[0].mxu0
        %v2658 = vadd.f32 0.0, %v2657
        %v2659 = vpop.f32.mrb[0].mxu0
        %v2660 = vpop.f32.mrb[0].mxu0
        %v2661 = vadd.f32 0.0, %v2660
        %v2662 = vpop.f32.mrb[0].mxu0
        %2663 = vmatprep.mubr.bf16.mxu0 0
        %2664 = vmatmul.mubr.bf16.gmra.mrb[0].mxu0 %v2561
        %v2665 = vpop.f32.mrb[0].mxu0
        %v2666 = vadd.f32 0.0, %v2665
        %v2667 = vpop.f32.mrb[0].mxu0
        %v2668 = vpop.f32.mrb[0].mxu0
        %v2669 = vadd.f32 0.0, %v2668
        %v2670 = vpop.f32.mrb[0].mxu0
        %2671 = vmatprep.mubr.bf16.mxu0 0
        %2672 = vmatmul.mubr.bf16.gmra.mrb[0].mxu0 %v2564
        %v2673 = vpop.f32.mrb[0].mxu0
        %v2674 = vadd.f32 0.0, %v2673
        %v2675 = vpop.f32.mrb[0].mxu0
        %v2676 = vpop.f32.mrb[0].mxu0
        %v2677 = vadd.f32 0.0, %v2676
        %v2678 = vpop.f32.mrb[0].mxu0
        %2679 = vmatprep.mubr.bf16.mxu0 0
        %2680 = vmatmul.mubr.bf16.gmra.mrb[0].mxu0 %v2567
        %v2681 = vpop.f32.mrb[0].mxu0
        %v2682 = vadd.f32 0.0, %v2681
        %v2683 = vpop.f32.mrb[0].mxu0
        %v2684 = vpop.f32.mrb[0].mxu0
        %v2685 = vadd.f32 0.0, %v2684
        %v2686 = vpop.f32.mrb[0].mxu0
        %2687 = vmatprep.mubr.bf16.mxu0 0
        %2688 = vmatmul.mubr.bf16.gmra.mrb[0].mxu0 %v2570
        %v2689 = vpop.f32.mrb[0].mxu0
        %v2690 = vadd.f32 0.0, %v2689
        %v2691 = vpop.f32.mrb[0].mxu0
        %v2692 = vpop.f32.mrb[0].mxu0
        %v2693 = vadd.f32 0.0, %v2692
        %v2694 = vpop.f32.mrb[0].mxu0
        %2695 = vmatprep.mubr.bf16.mxu0 0
        %2696 = vmatmul.mubr.bf16.gmra.mrb[0].mxu0 %v2573
        %v2697 = vpop.f32.mrb[0].mxu0
        %v2698 = vadd.f32 0.0, %v2697
        %v2699 = vpop.f32.mrb[0].mxu0
        %v2700 = vpop.f32.mrb[0].mxu0
        %v2701 = vadd.f32 0.0, %v2700
        %v2702 = vpop.f32.mrb[0].mxu0
        %2703 = vmatprep.mubr.bf16.mxu0 0
        %2704 = vmatmul.mubr.bf16.gmra.mrb[0].mxu0 %v2576
        %v2705 = vpop.f32.mrb[0].mxu0
        %v2706 = vadd.f32 0.0, %v2705
        %v2707 = vpop.f32.mrb[0].mxu0
        %v2708 = vpop.f32.mrb[0].mxu0
        %v2709 = vadd.f32 0.0, %v2708
        %v2710 = vpop.f32.mrb[0].mxu0
        %2711 = vmatprep.mubr.bf16.mxu0 0
        %2712 = vmatmul.mubr.bf16.gmra.mrb[0].mxu0 %v2579
        %v2713 = vpop.f32.mrb[0].mxu0
        %v2714 = vadd.f32 0.0, %v2713
        %v2715 = vpop.f32.mrb[0].mxu0
        %v2716 = vpop.f32.mrb[0].mxu0
        %v2717 = vadd.f32 0.0, %v2716
        %v2718 = vpop.f32.mrb[0].mxu0
        %2719 = vmatprep.mubr.bf16.mxu0 0
        %2720 = vmatmul.mubr.bf16.gmra.mrb[0].mxu0 %v2582
        %v2721 = vpop.f32.mrb[0].mxu0
        %v2722 = vadd.f32 0.0, %v2721
        %v2723 = vpop.f32.mrb[0].mxu0
        %v2724 = vpop.f32.mrb[0].mxu0
        %v2725 = vadd.f32 0.0, %v2724
        %v2726 = vpop.f32.mrb[0].mxu0
        %2727 = vmatprep.mubr.bf16.mxu0 0
        %2728 = vmatmul.mubr.bf16.gmra.mrb[0].mxu0 %v2585
        %v2729 = vpop.f32.mrb[0].mxu0
        %v2730 = vadd.f32 0.0, %v2729
        %v2731 = vpop.f32.mrb[0].mxu0
        %v2732 = vpop.f32.mrb[0].mxu0
        %v2733 = vadd.f32 0.0, %v2732
        %v2734 = vpop.f32.mrb[0].mxu0
        %2735 = vmatprep.mubr.bf16.mxu0 0
        %2736 = vmatmul.mubr.bf16.gmra.mrb[0].mxu0 %v2588
        %v2737 = vpop.f32.mrb[0].mxu0
        %v2738 = vadd.f32 0.0, %v2737
        %v2739 = vpop.f32.mrb[0].mxu0
        %v2740 = vpop.f32.mrb[0].mxu0
        %v2741 = vadd.f32 0.0, %v2740
        %v2742 = vpop.f32.mrb[0].mxu0
        %2743 = vmatprep.mubr.bf16.mxu0 0
        %2744 = vmatmul.mubr.bf16.gmra.mrb[0].mxu0 %v2591
        %v2745 = vpop.f32.mrb[0].mxu0
        %v2746 = vadd.f32 0.0, %v2745
        %v2747 = vpop.f32.mrb[0].mxu0
        %v2748 = vpop.f32.mrb[0].mxu0
        %v2749 = vadd.f32 0.0, %v2748
        %v2750 = vpop.f32.mrb[0].mxu0
        %2751 = vmatprep.mubr.bf16.mxu0 0
        %2752 = vmatmul.mubr.bf16.gmra.mrb[0].mxu0 %v2594
        %v2753 = vpop.f32.mrb[0].mxu0
        %v2754 = vadd.f32 0.0, %v2753
        %v2755 = vpop.f32.mrb[0].mxu0
        %v2756 = vpop.f32.mrb[0].mxu0
        %v2757 = vadd.f32 0.0, %v2756
        %v2758 = vpop.f32.mrb[0].mxu0
        %2759 = vdwg.mxu0
        %v2760 = vadd.f32 %v2034, %v2634
        %v2761 = vadd.f32 %v2035, %v2637
        %v2762 = vadd.f32 %v2036, %v2642
        %v2763 = vadd.f32 %v2037, %v2645
        %v2764 = vadd.f32 %v2038, %v2650
        %v2765 = vadd.f32 %v2039, %v2653
        %v2766 = vadd.f32 %v2040, %v2658
        %v2767 = vadd.f32 %v2041, %v2661
        %v2768 = vadd.f32 %v2042, %v2666
        %v2769 = vadd.f32 %v2043, %v2669
        %v2770 = vadd.f32 %v2044, %v2674
        %v2771 = vadd.f32 %v2045, %v2677
        %v2772 = vadd.f32 %v2046, %v2682
        %v2773 = vadd.f32 %v2047, %v2685
        %v2774 = vadd.f32 %v2048, %v2690
        %v2775 = vadd.f32 %v2049, %v2693
        %v2776 = vadd.f32 %v2050, %v2698
        %v2777 = vadd.f32 %v2051, %v2701
        %v2778 = vadd.f32 %v2052, %v2706
        %v2779 = vadd.f32 %v2053, %v2709
        %v2780 = vadd.f32 %v2054, %v2714
        %v2781 = vadd.f32 %v2055, %v2717
        %v2782 = vadd.f32 %v2056, %v2722
        %v2783 = vadd.f32 %v2057, %v2725
        %v2784 = vadd.f32 %v2058, %v2730
        %v2785 = vadd.f32 %v2059, %v2733
        %v2786 = vadd.f32 %v2060, %v2738
        %v2787 = vadd.f32 %v2061, %v2741
        %v2788 = vadd.f32 %v2062, %v2746
        %v2789 = vadd.f32 %v2063, %v2749
        %v2790 = vadd.f32 %v2064, %v2754
        %v2791 = vadd.f32 %v2065, %v2757
        %v2792 = vld [vmem:[%s1707] sm:$0xe]
        %v2793 = vld [vmem:[%s1707 + $0xc] sm:$0xe]
        %v2794 = vld [vmem:[%s1707 + $0x18] sm:$0xe]
        %v2795 = vld [vmem:[%s1707 + $0x24] sm:$0xe]
        %v2796 = vld [vmem:[%s1707 + $0x30] sm:$0xe]
        %v2797 = vld [vmem:[%s1707 + $0x3c] sm:$0xe]
        %v2798 = vld [vmem:[%s1707 + $0x48] sm:$0xe]
        %v2799 = vld [vmem:[%s1707 + $0x54] sm:$0xe]
        %v2800 = vld [vmem:[%s1707 + $0x60] sm:$0xe]
        %v2801 = vld [vmem:[%s1707 + $0x6c] sm:$0xe]
        %v2802 = vld [vmem:[%s1707 + $0x78] sm:$0xe]
        %v2803 = vld [vmem:[%s1707 + $0x84] sm:$0xe]
        %v2804 = vld [vmem:[%s1707 + $0x90] sm:$0xe]
        %v2805 = vld [vmem:[%s1707 + $0x9c] sm:$0xe]
        %v2806 = vld [vmem:[%s1707 + $0xa8] sm:$0xe]
        %v2807 = vld [vmem:[%s1707 + $0xb4] sm:$0xe]
        %v2856 = vrot.slane %v2792, 5
        %v2857 = vrot.slane %v2856, 4
        %v2858 = vrot.slane %v2067, 5
        %v2859 = vsel %vm1300, %v2857, %v2858
        %v2860 = vrot.slane %v2858, 4
        %v2861 = vrot.slane %v2068, 5
        %v2862 = vsel %vm1300, %v2860, %v2861
        %v2863 = vrot.slane %v2793, 5
        %v2864 = vrot.slane %v2863, 4
        %v2865 = vrot.slane %v2070, 5
        %v2866 = vsel %vm1300, %v2864, %v2865
        %v2867 = vrot.slane %v2865, 4
        %v2868 = vrot.slane %v2071, 5
        %v2869 = vsel %vm1300, %v2867, %v2868
        %v2870 = vrot.slane %v2794, 5
        %v2871 = vrot.slane %v2870, 4
        %v2872 = vrot.slane %v2073, 5
        %v2873 = vsel %vm1300, %v2871, %v2872
        %v2874 = vrot.slane %v2872, 4
        %v2875 = vrot.slane %v2074, 5
        %v2876 = vsel %vm1300, %v2874, %v2875
        %v2877 = vrot.slane %v2795, 5
        %v2878 = vrot.slane %v2877, 4
        %v2879 = vrot.slane %v2076, 5
        %v2880 = vsel %vm1300, %v2878, %v2879
        %v2881 = vrot.slane %v2879, 4
        %v2882 = vrot.slane %v2077, 5
        %v2883 = vsel %vm1300, %v2881, %v2882
        %v2884 = vrot.slane %v2796, 5
        %v2885 = vrot.slane %v2884, 4
        %v2886 = vrot.slane %v2079, 5
        %v2887 = vsel %vm1300, %v2885, %v2886
        %v2888 = vrot.slane %v2886, 4
        %v2889 = vrot.slane %v2080, 5
        %v2890 = vsel %vm1300, %v2888, %v2889
        %v2891 = vrot.slane %v2797, 5
        %v2892 = vrot.slane %v2891, 4
        %v2893 = vrot.slane %v2082, 5
        %v2894 = vsel %vm1300, %v2892, %v2893
        %v2895 = vrot.slane %v2893, 4
        %v2896 = vrot.slane %v2083, 5
        %v2897 = vsel %vm1300, %v2895, %v2896
        %v2898 = vrot.slane %v2798, 5
        %v2899 = vrot.slane %v2898, 4
        %v2900 = vrot.slane %v2085, 5
        %v2901 = vsel %vm1300, %v2899, %v2900
        %v2902 = vrot.slane %v2900, 4
        %v2903 = vrot.slane %v2086, 5
        %v2904 = vsel %vm1300, %v2902, %v2903
        %v2905 = vrot.slane %v2799, 5
        %v2906 = vrot.slane %v2905, 4
        %v2907 = vrot.slane %v2088, 5
        %v2908 = vsel %vm1300, %v2906, %v2907
        %v2909 = vrot.slane %v2907, 4
        %v2910 = vrot.slane %v2089, 5
        %v2911 = vsel %vm1300, %v2909, %v2910
        %v2912 = vrot.slane %v2800, 5
        %v2913 = vrot.slane %v2912, 4
        %v2914 = vrot.slane %v2091, 5
        %v2915 = vsel %vm1300, %v2913, %v2914
        %v2916 = vrot.slane %v2914, 4
        %v2917 = vrot.slane %v2092, 5
        %v2918 = vsel %vm1300, %v2916, %v2917
        %v2919 = vrot.slane %v2801, 5
        %v2920 = vrot.slane %v2919, 4
        %v2921 = vrot.slane %v2094, 5
        %v2922 = vsel %vm1300, %v2920, %v2921
        %v2923 = vrot.slane %v2921, 4
        %v2924 = vrot.slane %v2095, 5
        %v2925 = vsel %vm1300, %v2923, %v2924
        %v2926 = vrot.slane %v2802, 5
        %v2927 = vrot.slane %v2926, 4
        %v2928 = vrot.slane %v2097, 5
        %v2929 = vsel %vm1300, %v2927, %v2928
        %v2930 = vrot.slane %v2928, 4
        %v2931 = vrot.slane %v2098, 5
        %v2932 = vsel %vm1300, %v2930, %v2931
        %v2933 = vrot.slane %v2803, 5
        %v2934 = vrot.slane %v2933, 4
        %v2935 = vrot.slane %v2100, 5
        %v2936 = vsel %vm1300, %v2934, %v2935
        %v2937 = vrot.slane %v2935, 4
        %v2938 = vrot.slane %v2101, 5
        %v2939 = vsel %vm1300, %v2937, %v2938
        %v2940 = vrot.slane %v2804, 5
        %v2941 = vrot.slane %v2940, 4
        %v2942 = vrot.slane %v2103, 5
        %v2943 = vsel %vm1300, %v2941, %v2942
        %v2944 = vrot.slane %v2942, 4
        %v2945 = vrot.slane %v2104, 5
        %v2946 = vsel %vm1300, %v2944, %v2945
        %v2947 = vrot.slane %v2805, 5
        %v2948 = vrot.slane %v2947, 4
        %v2949 = vrot.slane %v2106, 5
        %v2950 = vsel %vm1300, %v2948, %v2949
        %v2951 = vrot.slane %v2949, 4
        %v2952 = vrot.slane %v2107, 5
        %v2953 = vsel %vm1300, %v2951, %v2952
        %v2954 = vrot.slane %v2806, 5
        %v2955 = vrot.slane %v2954, 4
        %v2956 = vrot.slane %v2109, 5
        %v2957 = vsel %vm1300, %v2955, %v2956
        %v2958 = vrot.slane %v2956, 4
        %v2959 = vrot.slane %v2110, 5
        %v2960 = vsel %vm1300, %v2958, %v2959
        %v2961 = vrot.slane %v2807, 5
        %v2962 = vrot.slane %v2961, 4
        %v2963 = vrot.slane %v2112, 5
        %v2964 = vsel %vm1300, %v2962, %v2963
        %v2965 = vrot.slane %v2963, 4
        %v2966 = vrot.slane %v2113, 5
        %v2967 = vsel %vm1300, %v2965, %v2966
        %s2968 = scalar_lea.vmem %s248, 20
        %v2969 = vld [vmem:[%s2968] sm:$0xf]
        %v2970 = vunpack.c.l.b16 %v2859
        %v2971 = vunpack.c.l.b16 %v2862
        %v2972 = vunpack.c.l.b16 %v2866
        %v2973 = vunpack.c.l.b16 %v2869
        %v2974 = vunpack.c.l.b16 %v2873
        %v2975 = vunpack.c.l.b16 %v2876
        %v2976 = vunpack.c.l.b16 %v2880
        %v2977 = vunpack.c.l.b16 %v2883
        %v2978 = vunpack.c.l.b16 %v2887
        %v2979 = vunpack.c.l.b16 %v2890
        %v2980 = vunpack.c.l.b16 %v2894
        %v2981 = vunpack.c.l.b16 %v2897
        %v2982 = vunpack.c.l.b16 %v2901
        %v2983 = vunpack.c.l.b16 %v2904
        %v2984 = vunpack.c.l.b16 %v2908
        %v2985 = vunpack.c.l.b16 %v2911
        %v2986 = vunpack.c.l.b16 %v2915
        %v2987 = vunpack.c.l.b16 %v2918
        %v2988 = vunpack.c.l.b16 %v2922
        %v2989 = vunpack.c.l.b16 %v2925
        %v2990 = vunpack.c.l.b16 %v2929
        %v2991 = vunpack.c.l.b16 %v2932
        %v2992 = vunpack.c.l.b16 %v2936
        %v2993 = vunpack.c.l.b16 %v2939
        %v2994 = vunpack.c.l.b16 %v2943
        %v2995 = vunpack.c.l.b16 %v2946
        %v2996 = vunpack.c.l.b16 %v2950
        %v2997 = vunpack.c.l.b16 %v2953
        %v2998 = vunpack.c.l.b16 %v2957
        %v2999 = vunpack.c.l.b16 %v2960
        %v3000 = vunpack.c.l.b16 %v2964
        %v3001 = vunpack.c.l.b16 %v2967
        %v3002 = vpack.c.b16 %v2971, %v2970
        %v3003 = vpack.c.b16 %v2973, %v2972
        %v3004 = vpack.c.b16 %v2975, %v2974
        %v3005 = vpack.c.b16 %v2977, %v2976
        %v3006 = vpack.c.b16 %v2979, %v2978
        %v3007 = vpack.c.b16 %v2981, %v2980
        %v3008 = vpack.c.b16 %v2983, %v2982
        %v3009 = vpack.c.b16 %v2985, %v2984
        %v3010 = vpack.c.b16 %v2987, %v2986
        %v3011 = vpack.c.b16 %v2989, %v2988
        %v3012 = vpack.c.b16 %v2991, %v2990
        %v3013 = vpack.c.b16 %v2993, %v2992
        %v3014 = vpack.c.b16 %v2995, %v2994
        %v3015 = vpack.c.b16 %v2997, %v2996
        %v3016 = vpack.c.b16 %v2999, %v2998
        %v3017 = vpack.c.b16 %v3001, %v3000
        %v3019 = vsel %vm744, %v3002, 0
        %v3022 = vsel %vm744, %v3003, 0
        %v3025 = vsel %vm744, %v3004, 0
        %v3028 = vsel %vm744, %v3005, 0
        %v3031 = vsel %vm744, %v3006, 0
        %v3034 = vsel %vm744, %v3007, 0
        %v3037 = vsel %vm744, %v3008, 0
        %v3040 = vsel %vm744, %v3009, 0
        %v3043 = vsel %vm744, %v3010, 0
        %v3046 = vsel %vm744, %v3011, 0
        %v3049 = vsel %vm744, %v3012, 0
        %v3052 = vsel %vm744, %v3013, 0
        %v3055 = vsel %vm744, %v3014, 0
        %v3058 = vsel %vm744, %v3015, 0
        %v3061 = vsel %vm744, %v3016, 0
        %v3064 = vsel %vm744, %v3017, 0
        %v3067 = vsel %vm793, %v2969, 0
        %3069 = vmatprep.subr.bf16.mxu0 0
        %3070 = vmatpush1.bf16.msra.mxu0 %v3067
        %3071 = vmatprep.subr.bf16.mxu0 0
        %3072 = vmatpush1.bf16.msra.mxu0 0
        %3073 = vmatprep.subr.bf16.mxu0 0
        %3074 = vmatpush1.bf16.msra.mxu0 0
        %3075 = vmatprep.subr.bf16.mxu0 0
        %3076 = vmatpush1.bf16.msra.mxu0 0
        %3077 = vmatprep.subr.bf16.mxu0 0
        %3078 = vmatpush1.bf16.msra.mxu0 0
        %3079 = vmatprep.subr.bf16.mxu0 0
        %3080 = vmatpush1.bf16.msra.mxu0 0
        %3081 = vmatprep.subr.bf16.mxu0 0
        %3082 = vmatpush1.bf16.msra.mxu0 0
        %3083 = vmatprep.subr.bf16.mxu0 0
        %3084 = vmatpush1.bf16.msra.mxu0 0
        %3085 = vmatprep.subr.bf16.mxu0 0
        %3086 = vmatpush1.bf16.msra.mxu0 0
        %3087 = vmatprep.subr.bf16.mxu0 0
        %3088 = vmatpush1.bf16.msra.mxu0 0
        %3089 = vmatprep.subr.bf16.mxu0 0
        %3090 = vmatpush1.bf16.msra.mxu0 0
        %3091 = vmatprep.subr.bf16.mxu0 0
        %3092 = vmatpush1.bf16.msra.mxu0 0
        %3093 = vmatprep.subr.bf16.mxu0 0
        %3094 = vmatpush1.bf16.msra.mxu0 0
        %3095 = vmatprep.subr.bf16.mxu0 0
        %3096 = vmatpush1.bf16.msra.mxu0 0
        %3097 = vmatprep.subr.bf16.mxu0 0
        %3098 = vmatpush1.bf16.msra.mxu0 0
        %3099 = vmatprep.subr.bf16.mxu0 0
        %3100 = vmatpush1.bf16.msra.mxu0 0
        %3101 = vmatprep.mubr.bf16.mxu0 0
        %3102 = vmatmul.mubr.bf16.gmra.mrb[0].mxu0 %v3019
        %v3103 = vpop.f32.mrb[0].mxu0
        %v3104 = vadd.f32 0.0, %v3103
        %v3105 = vpop.f32.mrb[0].mxu0
        %v3106 = vpop.f32.mrb[0].mxu0
        %v3107 = vadd.f32 0.0, %v3106
        %v3108 = vpop.f32.mrb[0].mxu0
        %3109 = vmatprep.mubr.bf16.mxu0 0
        %3110 = vmatmul.mubr.bf16.gmra.mrb[0].mxu0 %v3022
        %v3111 = vpop.f32.mrb[0].mxu0
        %v3112 = vadd.f32 0.0, %v3111
        %v3113 = vpop.f32.mrb[0].mxu0
        %v3114 = vpop.f32.mrb[0].mxu0
        %v3115 = vadd.f32 0.0, %v3114
        %v3116 = vpop.f32.mrb[0].mxu0
        %3117 = vmatprep.mubr.bf16.mxu0 0
        %3118 = vmatmul.mubr.bf16.gmra.mrb[0].mxu0 %v3025
        %v3119 = vpop.f32.mrb[0].mxu0
        %v3120 = vadd.f32 0.0, %v3119
        %v3121 = vpop.f32.mrb[0].mxu0
        %v3122 = vpop.f32.mrb[0].mxu0
        %v3123 = vadd.f32 0.0, %v3122
        %v3124 = vpop.f32.mrb[0].mxu0
        %3125 = vmatprep.mubr.bf16.mxu0 0
        %3126 = vmatmul.mubr.bf16.gmra.mrb[0].mxu0 %v3028
        %v3127 = vpop.f32.mrb[0].mxu0
        %v3128 = vadd.f32 0.0, %v3127
        %v3129 = vpop.f32.mrb[0].mxu0
        %v3130 = vpop.f32.mrb[0].mxu0
        %v3131 = vadd.f32 0.0, %v3130
        %v3132 = vpop.f32.mrb[0].mxu0
        %3133 = vmatprep.mubr.bf16.mxu0 0
        %3134 = vmatmul.mubr.bf16.gmra.mrb[0].mxu0 %v3031
        %v3135 = vpop.f32.mrb[0].mxu0
        %v3136 = vadd.f32 0.0, %v3135
        %v3137 = vpop.f32.mrb[0].mxu0
        %v3138 = vpop.f32.mrb[0].mxu0
        %v3139 = vadd.f32 0.0, %v3138
        %v3140 = vpop.f32.mrb[0].mxu0
        %3141 = vmatprep.mubr.bf16.mxu0 0
        %3142 = vmatmul.mubr.bf16.gmra.mrb[0].mxu0 %v3034
        %v3143 = vpop.f32.mrb[0].mxu0
        %v3144 = vadd.f32 0.0, %v3143
        %v3145 = vpop.f32.mrb[0].mxu0
        %v3146 = vpop.f32.mrb[0].mxu0
        %v3147 = vadd.f32 0.0, %v3146
        %v3148 = vpop.f32.mrb[0].mxu0
        %3149 = vmatprep.mubr.bf16.mxu0 0
        %3150 = vmatmul.mubr.bf16.gmra.mrb[0].mxu0 %v3037
        %v3151 = vpop.f32.mrb[0].mxu0
        %v3152 = vadd.f32 0.0, %v3151
        %v3153 = vpop.f32.mrb[0].mxu0
        %v3154 = vpop.f32.mrb[0].mxu0
        %v3155 = vadd.f32 0.0, %v3154
        %v3156 = vpop.f32.mrb[0].mxu0
        %3157 = vmatprep.mubr.bf16.mxu0 0
        %3158 = vmatmul.mubr.bf16.gmra.mrb[0].mxu0 %v3040
        %v3159 = vpop.f32.mrb[0].mxu0
        %v3160 = vadd.f32 0.0, %v3159
        %v3161 = vpop.f32.mrb[0].mxu0
        %v3162 = vpop.f32.mrb[0].mxu0
        %v3163 = vadd.f32 0.0, %v3162
        %v3164 = vpop.f32.mrb[0].mxu0
        %3165 = vmatprep.mubr.bf16.mxu0 0
        %3166 = vmatmul.mubr.bf16.gmra.mrb[0].mxu0 %v3043
        %v3167 = vpop.f32.mrb[0].mxu0
        %v3168 = vadd.f32 0.0, %v3167
        %v3169 = vpop.f32.mrb[0].mxu0
        %v3170 = vpop.f32.mrb[0].mxu0
        %v3171 = vadd.f32 0.0, %v3170
        %v3172 = vpop.f32.mrb[0].mxu0
        %3173 = vmatprep.mubr.bf16.mxu0 0
        %3174 = vmatmul.mubr.bf16.gmra.mrb[0].mxu0 %v3046
        %v3175 = vpop.f32.mrb[0].mxu0
        %v3176 = vadd.f32 0.0, %v3175
        %v3177 = vpop.f32.mrb[0].mxu0
        %v3178 = vpop.f32.mrb[0].mxu0
        %v3179 = vadd.f32 0.0, %v3178
        %v3180 = vpop.f32.mrb[0].mxu0
        %3181 = vmatprep.mubr.bf16.mxu0 0
        %3182 = vmatmul.mubr.bf16.gmra.mrb[0].mxu0 %v3049
        %v3183 = vpop.f32.mrb[0].mxu0
        %v3184 = vadd.f32 0.0, %v3183
        %v3185 = vpop.f32.mrb[0].mxu0
        %v3186 = vpop.f32.mrb[0].mxu0
        %v3187 = vadd.f32 0.0, %v3186
        %v3188 = vpop.f32.mrb[0].mxu0
        %3189 = vmatprep.mubr.bf16.mxu0 0
        %3190 = vmatmul.mubr.bf16.gmra.mrb[0].mxu0 %v3052
        %v3191 = vpop.f32.mrb[0].mxu0
        %v3192 = vadd.f32 0.0, %v3191
        %v3193 = vpop.f32.mrb[0].mxu0
        %v3194 = vpop.f32.mrb[0].mxu0
        %v3195 = vadd.f32 0.0, %v3194
        %v3196 = vpop.f32.mrb[0].mxu0
        %3197 = vmatprep.mubr.bf16.mxu0 0
        %3198 = vmatmul.mubr.bf16.gmra.mrb[0].mxu0 %v3055
        %v3199 = vpop.f32.mrb[0].mxu0
        %v3200 = vadd.f32 0.0, %v3199
        %v3201 = vpop.f32.mrb[0].mxu0
        %v3202 = vpop.f32.mrb[0].mxu0
        %v3203 = vadd.f32 0.0, %v3202
        %v3204 = vpop.f32.mrb[0].mxu0
        %3205 = vmatprep.mubr.bf16.mxu0 0
        %3206 = vmatmul.mubr.bf16.gmra.mrb[0].mxu0 %v3058
        %v3207 = vpop.f32.mrb[0].mxu0
        %v3208 = vadd.f32 0.0, %v3207
        %v3209 = vpop.f32.mrb[0].mxu0
        %v3210 = vpop.f32.mrb[0].mxu0
        %v3211 = vadd.f32 0.0, %v3210
        %v3212 = vpop.f32.mrb[0].mxu0
        %3213 = vmatprep.mubr.bf16.mxu0 0
        %3214 = vmatmul.mubr.bf16.gmra.mrb[0].mxu0 %v3061
        %v3215 = vpop.f32.mrb[0].mxu0
        %v3216 = vadd.f32 0.0, %v3215
        %v3217 = vpop.f32.mrb[0].mxu0
        %v3218 = vpop.f32.mrb[0].mxu0
        %v3219 = vadd.f32 0.0, %v3218
        %v3220 = vpop.f32.mrb[0].mxu0
        %3221 = vmatprep.mubr.bf16.mxu0 0
        %3222 = vmatmul.mubr.bf16.gmra.mrb[0].mxu0 %v3064
        %v3223 = vpop.f32.mrb[0].mxu0
        %v3224 = vadd.f32 0.0, %v3223
        %v3225 = vpop.f32.mrb[0].mxu0
        %v3226 = vpop.f32.mrb[0].mxu0
        %v3227 = vadd.f32 0.0, %v3226
        %v3228 = vpop.f32.mrb[0].mxu0
        %3229 = vdwg.mxu0
        %v3230 = vadd.f32 %v2760, %v3104
        %v3231 = vadd.f32 %v2761, %v3107
        %v3232 = vadd.f32 %v2762, %v3112
        %v3233 = vadd.f32 %v2763, %v3115
        %v3234 = vadd.f32 %v2764, %v3120
        %v3235 = vadd.f32 %v2765, %v3123
        %v3236 = vadd.f32 %v2766, %v3128
        %v3237 = vadd.f32 %v2767, %v3131
        %v3238 = vadd.f32 %v2768, %v3136
        %v3239 = vadd.f32 %v2769, %v3139
        %v3240 = vadd.f32 %v2770, %v3144
        %v3241 = vadd.f32 %v2771, %v3147
        %v3242 = vadd.f32 %v2772, %v3152
        %v3243 = vadd.f32 %v2773, %v3155
        %v3244 = vadd.f32 %v2774, %v3160
        %v3245 = vadd.f32 %v2775, %v3163
        %v3246 = vadd.f32 %v2776, %v3168
        %v3247 = vadd.f32 %v2777, %v3171
        %v3248 = vadd.f32 %v2778, %v3176
        %v3249 = vadd.f32 %v2779, %v3179
        %v3250 = vadd.f32 %v2780, %v3184
        %v3251 = vadd.f32 %v2781, %v3187
        %v3252 = vadd.f32 %v2782, %v3192
        %v3253 = vadd.f32 %v2783, %v3195
        %v3254 = vadd.f32 %v2784, %v3200
        %v3255 = vadd.f32 %v2785, %v3203
        %v3256 = vadd.f32 %v2786, %v3208
        %v3257 = vadd.f32 %v2787, %v3211
        %v3258 = vadd.f32 %v2788, %v3216
        %v3259 = vadd.f32 %v2789, %v3219
        %v3260 = vadd.f32 %v2790, %v3224
        %v3261 = vadd.f32 %v2791, %v3227
        %s3262 = scalar_lea.vmem %s244, 24
        %v3263 = vld [vmem:[%s3262] sm:$0xf]
        %v3264 = vld [vmem:[%s3262 + $0x4] sm:$0xf]
        %v3265 = vld [vmem:[%s3262 + $0xc] sm:$0xf]
        %v3266 = vld [vmem:[%s3262 + $0x10] sm:$0xf]
        %v3267 = vld [vmem:[%s3262 + $0x18] sm:$0xf]
        %v3268 = vld [vmem:[%s3262 + $0x1c] sm:$0xf]
        %v3269 = vld [vmem:[%s3262 + $0x24] sm:$0xf]
        %v3270 = vld [vmem:[%s3262 + $0x28] sm:$0xf]
        %v3271 = vld [vmem:[%s3262 + $0x30] sm:$0xf]
        %v3272 = vld [vmem:[%s3262 + $0x34] sm:$0xf]
        %v3273 = vld [vmem:[%s3262 + $0x3c] sm:$0xf]
        %v3274 = vld [vmem:[%s3262 + $0x40] sm:$0xf]
        %v3275 = vld [vmem:[%s3262 + $0x48] sm:$0xf]
        %v3276 = vld [vmem:[%s3262 + $0x4c] sm:$0xf]
        %v3277 = vld [vmem:[%s3262 + $0x54] sm:$0xf]
        %v3278 = vld [vmem:[%s3262 + $0x58] sm:$0xf]
        %v3279 = vld [vmem:[%s3262 + $0x60] sm:$0xf]
        %v3280 = vld [vmem:[%s3262 + $0x64] sm:$0xf]
        %v3281 = vld [vmem:[%s3262 + $0x6c] sm:$0xf]
        %v3282 = vld [vmem:[%s3262 + $0x70] sm:$0xf]
        %v3283 = vld [vmem:[%s3262 + $0x78] sm:$0xf]
        %v3284 = vld [vmem:[%s3262 + $0x7c] sm:$0xf]
        %v3285 = vld [vmem:[%s3262 + $0x84] sm:$0xf]
        %v3286 = vld [vmem:[%s3262 + $0x88] sm:$0xf]
        %v3287 = vld [vmem:[%s3262 + $0x90] sm:$0xf]
        %v3288 = vld [vmem:[%s3262 + $0x94] sm:$0xf]
        %v3289 = vld [vmem:[%s3262 + $0x9c] sm:$0xf]
        %v3290 = vld [vmem:[%s3262 + $0xa0] sm:$0xf]
        %v3291 = vld [vmem:[%s3262 + $0xa8] sm:$0xf]
        %v3292 = vld [vmem:[%s3262 + $0xac] sm:$0xf]
        %v3293 = vld [vmem:[%s3262 + $0xb4] sm:$0xf]
        %v3294 = vld [vmem:[%s3262 + $0xb8] sm:$0xf]
        %s3295 = scalar_lea.vmem %s248, 24
        %v3296 = vld [vmem:[%s3295] sm:$0xf]
        %v3329 = vunpack.c.l.b16 %v3263
        %v3330 = vunpack.c.l.b16 %v3264
        %v3331 = vunpack.c.l.b16 %v3265
        %v3332 = vunpack.c.l.b16 %v3266
        %v3333 = vunpack.c.l.b16 %v3267
        %v3334 = vunpack.c.l.b16 %v3268
        %v3335 = vunpack.c.l.b16 %v3269
        %v3336 = vunpack.c.l.b16 %v3270
        %v3337 = vunpack.c.l.b16 %v3271
        %v3338 = vunpack.c.l.b16 %v3272
        %v3339 = vunpack.c.l.b16 %v3273
        %v3340 = vunpack.c.l.b16 %v3274
        %v3341 = vunpack.c.l.b16 %v3275
        %v3342 = vunpack.c.l.b16 %v3276
        %v3343 = vunpack.c.l.b16 %v3277
        %v3344 = vunpack.c.l.b16 %v3278
        %v3345 = vunpack.c.l.b16 %v3279
        %v3346 = vunpack.c.l.b16 %v3280
        %v3347 = vunpack.c.l.b16 %v3281
        %v3348 = vunpack.c.l.b16 %v3282
        %v3349 = vunpack.c.l.b16 %v3283
        %v3350 = vunpack.c.l.b16 %v3284
        %v3351 = vunpack.c.l.b16 %v3285
        %v3352 = vunpack.c.l.b16 %v3286
        %v3353 = vunpack.c.l.b16 %v3287
        %v3354 = vunpack.c.l.b16 %v3288
        %v3355 = vunpack.c.l.b16 %v3289
        %v3356 = vunpack.c.l.b16 %v3290
        %v3357 = vunpack.c.l.b16 %v3291
        %v3358 = vunpack.c.l.b16 %v3292
        %v3359 = vunpack.c.l.b16 %v3293
        %v3360 = vunpack.c.l.b16 %v3294
        %v3361 = vpack.c.b16 %v3330, %v3329
        %v3362 = vpack.c.b16 %v3332, %v3331
        %v3363 = vpack.c.b16 %v3334, %v3333
        %v3364 = vpack.c.b16 %v3336, %v3335
        %v3365 = vpack.c.b16 %v3338, %v3337
        %v3366 = vpack.c.b16 %v3340, %v3339
        %v3367 = vpack.c.b16 %v3342, %v3341
        %v3368 = vpack.c.b16 %v3344, %v3343
        %v3369 = vpack.c.b16 %v3346, %v3345
        %v3370 = vpack.c.b16 %v3348, %v3347
        %v3371 = vpack.c.b16 %v3350, %v3349
        %v3372 = vpack.c.b16 %v3352, %v3351
        %v3373 = vpack.c.b16 %v3354, %v3353
        %v3374 = vpack.c.b16 %v3356, %v3355
        %v3375 = vpack.c.b16 %v3358, %v3357
        %v3376 = vpack.c.b16 %v3360, %v3359
        %v3378 = vsel %vm744, %v3361, 0
        %v3381 = vsel %vm744, %v3362, 0
        %v3384 = vsel %vm744, %v3363, 0
        %v3387 = vsel %vm744, %v3364, 0
        %v3390 = vsel %vm744, %v3365, 0
        %v3393 = vsel %vm744, %v3366, 0
        %v3396 = vsel %vm744, %v3367, 0
        %v3399 = vsel %vm744, %v3368, 0
        %v3402 = vsel %vm744, %v3369, 0
        %v3405 = vsel %vm744, %v3370, 0
        %v3408 = vsel %vm744, %v3371, 0
        %v3411 = vsel %vm744, %v3372, 0
        %v3414 = vsel %vm744, %v3373, 0
        %v3417 = vsel %vm744, %v3374, 0
        %v3420 = vsel %vm744, %v3375, 0
        %v3423 = vsel %vm744, %v3376, 0
        %v3426 = vsel %vm793, %v3296, 0
        %3428 = vmatprep.subr.bf16.mxu0 0
        %3429 = vmatpush1.bf16.msra.mxu0 %v3426
        %3430 = vmatprep.subr.bf16.mxu0 0
        %3431 = vmatpush1.bf16.msra.mxu0 0
        %3432 = vmatprep.subr.bf16.mxu0 0
        %3433 = vmatpush1.bf16.msra.mxu0 0
        %3434 = vmatprep.subr.bf16.mxu0 0
        %3435 = vmatpush1.bf16.msra.mxu0 0
        %3436 = vmatprep.subr.bf16.mxu0 0
        %3437 = vmatpush1.bf16.msra.mxu0 0
        %3438 = vmatprep.subr.bf16.mxu0 0
        %3439 = vmatpush1.bf16.msra.mxu0 0
        %3440 = vmatprep.subr.bf16.mxu0 0
        %3441 = vmatpush1.bf16.msra.mxu0 0
        %3442 = vmatprep.subr.bf16.mxu0 0
        %3443 = vmatpush1.bf16.msra.mxu0 0
        %3444 = vmatprep.subr.bf16.mxu0 0
        %3445 = vmatpush1.bf16.msra.mxu0 0
        %3446 = vmatprep.subr.bf16.mxu0 0
        %3447 = vmatpush1.bf16.msra.mxu0 0
        %3448 = vmatprep.subr.bf16.mxu0 0
        %3449 = vmatpush1.bf16.msra.mxu0 0
        %3450 = vmatprep.subr.bf16.mxu0 0
        %3451 = vmatpush1.bf16.msra.mxu0 0
        %3452 = vmatprep.subr.bf16.mxu0 0
        %3453 = vmatpush1.bf16.msra.mxu0 0
        %3454 = vmatprep.subr.bf16.mxu0 0
        %3455 = vmatpush1.bf16.msra.mxu0 0
        %3456 = vmatprep.subr.bf16.mxu0 0
        %3457 = vmatpush1.bf16.msra.mxu0 0
        %3458 = vmatprep.subr.bf16.mxu0 0
        %3459 = vmatpush1.bf16.msra.mxu0 0
        %3460 = vmatprep.mubr.bf16.mxu0 0
        %3461 = vmatmul.mubr.bf16.gmra.mrb[0].mxu0 %v3378
        %v3462 = vpop.f32.mrb[0].mxu0
        %v3463 = vadd.f32 0.0, %v3462
        %v3464 = vpop.f32.mrb[0].mxu0
        %v3465 = vpop.f32.mrb[0].mxu0
        %v3466 = vadd.f32 0.0, %v3465
        %v3467 = vpop.f32.mrb[0].mxu0
        %3468 = vmatprep.mubr.bf16.mxu0 0
        %3469 = vmatmul.mubr.bf16.gmra.mrb[0].mxu0 %v3381
        %v3470 = vpop.f32.mrb[0].mxu0
        %v3471 = vadd.f32 0.0, %v3470
        %v3472 = vpop.f32.mrb[0].mxu0
        %v3473 = vpop.f32.mrb[0].mxu0
        %v3474 = vadd.f32 0.0, %v3473
        %v3475 = vpop.f32.mrb[0].mxu0
        %3476 = vmatprep.mubr.bf16.mxu0 0
        %3477 = vmatmul.mubr.bf16.gmra.mrb[0].mxu0 %v3384
        %v3478 = vpop.f32.mrb[0].mxu0
        %v3479 = vadd.f32 0.0, %v3478
        %v3480 = vpop.f32.mrb[0].mxu0
        %v3481 = vpop.f32.mrb[0].mxu0
        %v3482 = vadd.f32 0.0, %v3481
        %v3483 = vpop.f32.mrb[0].mxu0
        %3484 = vmatprep.mubr.bf16.mxu0 0
        %3485 = vmatmul.mubr.bf16.gmra.mrb[0].mxu0 %v3387
        %v3486 = vpop.f32.mrb[0].mxu0
        %v3487 = vadd.f32 0.0, %v3486
        %v3488 = vpop.f32.mrb[0].mxu0
        %v3489 = vpop.f32.mrb[0].mxu0
        %v3490 = vadd.f32 0.0, %v3489
        %v3491 = vpop.f32.mrb[0].mxu0
        %3492 = vmatprep.mubr.bf16.mxu0 0
        %3493 = vmatmul.mubr.bf16.gmra.mrb[0].mxu0 %v3390
        %v3494 = vpop.f32.mrb[0].mxu0
        %v3495 = vadd.f32 0.0, %v3494
        %v3496 = vpop.f32.mrb[0].mxu0
        %v3497 = vpop.f32.mrb[0].mxu0
        %v3498 = vadd.f32 0.0, %v3497
        %v3499 = vpop.f32.mrb[0].mxu0
        %3500 = vmatprep.mubr.bf16.mxu0 0
        %3501 = vmatmul.mubr.bf16.gmra.mrb[0].mxu0 %v3393
        %v3502 = vpop.f32.mrb[0].mxu0
        %v3503 = vadd.f32 0.0, %v3502
        %v3504 = vpop.f32.mrb[0].mxu0
        %v3505 = vpop.f32.mrb[0].mxu0
        %v3506 = vadd.f32 0.0, %v3505
        %v3507 = vpop.f32.mrb[0].mxu0
        %3508 = vmatprep.mubr.bf16.mxu0 0
        %3509 = vmatmul.mubr.bf16.gmra.mrb[0].mxu0 %v3396
        %v3510 = vpop.f32.mrb[0].mxu0
        %v3511 = vadd.f32 0.0, %v3510
        %v3512 = vpop.f32.mrb[0].mxu0
        %v3513 = vpop.f32.mrb[0].mxu0
        %v3514 = vadd.f32 0.0, %v3513
        %v3515 = vpop.f32.mrb[0].mxu0
        %3516 = vmatprep.mubr.bf16.mxu0 0
        %3517 = vmatmul.mubr.bf16.gmra.mrb[0].mxu0 %v3399
        %v3518 = vpop.f32.mrb[0].mxu0
        %v3519 = vadd.f32 0.0, %v3518
        %v3520 = vpop.f32.mrb[0].mxu0
        %v3521 = vpop.f32.mrb[0].mxu0
        %v3522 = vadd.f32 0.0, %v3521
        %v3523 = vpop.f32.mrb[0].mxu0
        %3524 = vmatprep.mubr.bf16.mxu0 0
        %3525 = vmatmul.mubr.bf16.gmra.mrb[0].mxu0 %v3402
        %v3526 = vpop.f32.mrb[0].mxu0
        %v3527 = vadd.f32 0.0, %v3526
        %v3528 = vpop.f32.mrb[0].mxu0
        %v3529 = vpop.f32.mrb[0].mxu0
        %v3530 = vadd.f32 0.0, %v3529
        %v3531 = vpop.f32.mrb[0].mxu0
        %3532 = vmatprep.mubr.bf16.mxu0 0
        %3533 = vmatmul.mubr.bf16.gmra.mrb[0].mxu0 %v3405
        %v3534 = vpop.f32.mrb[0].mxu0
        %v3535 = vadd.f32 0.0, %v3534
        %v3536 = vpop.f32.mrb[0].mxu0
        %v3537 = vpop.f32.mrb[0].mxu0
        %v3538 = vadd.f32 0.0, %v3537
        %v3539 = vpop.f32.mrb[0].mxu0
        %3540 = vmatprep.mubr.bf16.mxu0 0
        %3541 = vmatmul.mubr.bf16.gmra.mrb[0].mxu0 %v3408
        %v3542 = vpop.f32.mrb[0].mxu0
        %v3543 = vadd.f32 0.0, %v3542
        %v3544 = vpop.f32.mrb[0].mxu0
        %v3545 = vpop.f32.mrb[0].mxu0
        %v3546 = vadd.f32 0.0, %v3545
        %v3547 = vpop.f32.mrb[0].mxu0
        %3548 = vmatprep.mubr.bf16.mxu0 0
        %3549 = vmatmul.mubr.bf16.gmra.mrb[0].mxu0 %v3411
        %v3550 = vpop.f32.mrb[0].mxu0
        %v3551 = vadd.f32 0.0, %v3550
        %v3552 = vpop.f32.mrb[0].mxu0
        %v3553 = vpop.f32.mrb[0].mxu0
        %v3554 = vadd.f32 0.0, %v3553
        %v3555 = vpop.f32.mrb[0].mxu0
        %3556 = vmatprep.mubr.bf16.mxu0 0
        %3557 = vmatmul.mubr.bf16.gmra.mrb[0].mxu0 %v3414
        %v3558 = vpop.f32.mrb[0].mxu0
        %v3559 = vadd.f32 0.0, %v3558
        %v3560 = vpop.f32.mrb[0].mxu0
        %v3561 = vpop.f32.mrb[0].mxu0
        %v3562 = vadd.f32 0.0, %v3561
        %v3563 = vpop.f32.mrb[0].mxu0
        %3564 = vmatprep.mubr.bf16.mxu0 0
        %3565 = vmatmul.mubr.bf16.gmra.mrb[0].mxu0 %v3417
        %v3566 = vpop.f32.mrb[0].mxu0
        %v3567 = vadd.f32 0.0, %v3566
        %v3568 = vpop.f32.mrb[0].mxu0
        %v3569 = vpop.f32.mrb[0].mxu0
        %v3570 = vadd.f32 0.0, %v3569
        %v3571 = vpop.f32.mrb[0].mxu0
        %3572 = vmatprep.mubr.bf16.mxu0 0
        %3573 = vmatmul.mubr.bf16.gmra.mrb[0].mxu0 %v3420
        %v3574 = vpop.f32.mrb[0].mxu0
        %v3575 = vadd.f32 0.0, %v3574
        %v3576 = vpop.f32.mrb[0].mxu0
        %v3577 = vpop.f32.mrb[0].mxu0
        %v3578 = vadd.f32 0.0, %v3577
        %v3579 = vpop.f32.mrb[0].mxu0
        %3580 = vmatprep.mubr.bf16.mxu0 0
        %3581 = vmatmul.mubr.bf16.gmra.mrb[0].mxu0 %v3423
        %v3582 = vpop.f32.mrb[0].mxu0
        %v3583 = vadd.f32 0.0, %v3582
        %v3584 = vpop.f32.mrb[0].mxu0
        %v3585 = vpop.f32.mrb[0].mxu0
        %v3586 = vadd.f32 0.0, %v3585
        %v3587 = vpop.f32.mrb[0].mxu0
        %3588 = vdwg.mxu0
        %v3589 = vadd.f32 %v3230, %v3463
        %v3590 = vadd.f32 %v3231, %v3466
        %v3591 = vadd.f32 %v3232, %v3471
        %v3592 = vadd.f32 %v3233, %v3474
        %v3593 = vadd.f32 %v3234, %v3479
        %v3594 = vadd.f32 %v3235, %v3482
        %v3595 = vadd.f32 %v3236, %v3487
        %v3596 = vadd.f32 %v3237, %v3490
        %v3597 = vadd.f32 %v3238, %v3495
        %v3598 = vadd.f32 %v3239, %v3498
        %v3599 = vadd.f32 %v3240, %v3503
        %v3600 = vadd.f32 %v3241, %v3506
        %v3601 = vadd.f32 %v3242, %v3511
        %v3602 = vadd.f32 %v3243, %v3514
        %v3603 = vadd.f32 %v3244, %v3519
        %v3604 = vadd.f32 %v3245, %v3522
        %v3605 = vadd.f32 %v3246, %v3527
        %v3606 = vadd.f32 %v3247, %v3530
        %v3607 = vadd.f32 %v3248, %v3535
        %v3608 = vadd.f32 %v3249, %v3538
        %v3609 = vadd.f32 %v3250, %v3543
        %v3610 = vadd.f32 %v3251, %v3546
        %v3611 = vadd.f32 %v3252, %v3551
        %v3612 = vadd.f32 %v3253, %v3554
        %v3613 = vadd.f32 %v3254, %v3559
        %v3614 = vadd.f32 %v3255, %v3562
        %v3615 = vadd.f32 %v3256, %v3567
        %v3616 = vadd.f32 %v3257, %v3570
        %v3617 = vadd.f32 %v3258, %v3575
        %v3618 = vadd.f32 %v3259, %v3578
        %v3619 = vadd.f32 %v3260, %v3583
        %v3620 = vadd.f32 %v3261, %v3586
        %v3621 = vld [vmem:[%s3262] sm:$0xf]
        %v3622 = vld [vmem:[%s3262 + $0x4] sm:$0xf]
        %v3623 = vld [vmem:[%s3262 + $0x8] sm:$0x1]
        %v3624 = vld [vmem:[%s3262 + $0xc] sm:$0xf]
        %v3625 = vld [vmem:[%s3262 + $0x10] sm:$0xf]
        %v3626 = vld [vmem:[%s3262 + $0x14] sm:$0x1]
        %v3627 = vld [vmem:[%s3262 + $0x18] sm:$0xf]
        %v3628 = vld [vmem:[%s3262 + $0x1c] sm:$0xf]
        %v3629 = vld [vmem:[%s3262 + $0x20] sm:$0x1]
        %v3630 = vld [vmem:[%s3262 + $0x24] sm:$0xf]
        %v3631 = vld [vmem:[%s3262 + $0x28] sm:$0xf]
        %v3632 = vld [vmem:[%s3262 + $0x2c] sm:$0x1]
        %v3633 = vld [vmem:[%s3262 + $0x30] sm:$0xf]
        %v3634 = vld [vmem:[%s3262 + $0x34] sm:$0xf]
        %v3635 = vld [vmem:[%s3262 + $0x38] sm:$0x1]
        %v3636 = vld [vmem:[%s3262 + $0x3c] sm:$0xf]
        %v3637 = vld [vmem:[%s3262 + $0x40] sm:$0xf]
        %v3638 = vld [vmem:[%s3262 + $0x44] sm:$0x1]
        %v3639 = vld [vmem:[%s3262 + $0x48] sm:$0xf]
        %v3640 = vld [vmem:[%s3262 + $0x4c] sm:$0xf]
        %v3641 = vld [vmem:[%s3262 + $0x50] sm:$0x1]
        %v3642 = vld [vmem:[%s3262 + $0x54] sm:$0xf]
        %v3643 = vld [vmem:[%s3262 + $0x58] sm:$0xf]
        %v3644 = vld [vmem:[%s3262 + $0x5c] sm:$0x1]
        %v3645 = vld [vmem:[%s3262 + $0x60] sm:$0xf]
        %v3646 = vld [vmem:[%s3262 + $0x64] sm:$0xf]
        %v3647 = vld [vmem:[%s3262 + $0x68] sm:$0x1]
        %v3648 = vld [vmem:[%s3262 + $0x6c] sm:$0xf]
        %v3649 = vld [vmem:[%s3262 + $0x70] sm:$0xf]
        %v3650 = vld [vmem:[%s3262 + $0x74] sm:$0x1]
        %v3651 = vld [vmem:[%s3262 + $0x78] sm:$0xf]
        %v3652 = vld [vmem:[%s3262 + $0x7c] sm:$0xf]
        %v3653 = vld [vmem:[%s3262 + $0x80] sm:$0x1]
        %v3654 = vld [vmem:[%s3262 + $0x84] sm:$0xf]
        %v3655 = vld [vmem:[%s3262 + $0x88] sm:$0xf]
        %v3656 = vld [vmem:[%s3262 + $0x8c] sm:$0x1]
        %v3657 = vld [vmem:[%s3262 + $0x90] sm:$0xf]
        %v3658 = vld [vmem:[%s3262 + $0x94] sm:$0xf]
        %v3659 = vld [vmem:[%s3262 + $0x98] sm:$0x1]
        %v3660 = vld [vmem:[%s3262 + $0x9c] sm:$0xf]
        %v3661 = vld [vmem:[%s3262 + $0xa0] sm:$0xf]
        %v3662 = vld [vmem:[%s3262 + $0xa4] sm:$0x1]
        %v3663 = vld [vmem:[%s3262 + $0xa8] sm:$0xf]
        %v3664 = vld [vmem:[%s3262 + $0xac] sm:$0xf]
        %v3665 = vld [vmem:[%s3262 + $0xb0] sm:$0x1]
        %v3666 = vld [vmem:[%s3262 + $0xb4] sm:$0xf]
        %v3667 = vld [vmem:[%s3262 + $0xb8] sm:$0xf]
        %v3668 = vld [vmem:[%s3262 + $0xbc] sm:$0x1]
        %v3670 = vshrl.u32 %v3621, 16
        %v3672 = vrot.slane %v3670, 4
        %v3673 = vshll.u32 %v3621, 16
        %v3675 = vrot.slane %v3673, 5
        %v3676 = vor.u32 %v3672, %v3675
        %v3677 = vrot.slane %v3676, 4
        %v3679 = vshll.u32 %v3622, 16
        %v3681 = vrot.slane %v3679, 5
        %v3682 = vsel %vm309, %v3677, %v3681
        %v3683 = vshrl.u32 %v3622, 16
        %v3685 = vrot.slane %v3683, 4
        %v3686 = vor.u32 %v3685, %v3681
        %v3687 = vrot.slane %v3686, 4
        %v3689 = vshll.u32 %v3623, 16
        %v3691 = vrot.slane %v3689, 5
        %v3692 = vsel %vm309, %v3687, %v3691
        %v3694 = vshrl.u32 %v3624, 16
        %v3696 = vrot.slane %v3694, 4
        %v3697 = vshll.u32 %v3624, 16
        %v3699 = vrot.slane %v3697, 5
        %v3700 = vor.u32 %v3696, %v3699
        %v3701 = vrot.slane %v3700, 4
        %v3703 = vshll.u32 %v3625, 16
        %v3705 = vrot.slane %v3703, 5
        %v3706 = vsel %vm309, %v3701, %v3705
        %v3707 = vshrl.u32 %v3625, 16
        %v3709 = vrot.slane %v3707, 4
        %v3710 = vor.u32 %v3709, %v3705
        %v3711 = vrot.slane %v3710, 4
        %v3713 = vshll.u32 %v3626, 16
        %v3715 = vrot.slane %v3713, 5
        %v3716 = vsel %vm309, %v3711, %v3715
        %v3718 = vshrl.u32 %v3627, 16
        %v3720 = vrot.slane %v3718, 4
        %v3721 = vshll.u32 %v3627, 16
        %v3723 = vrot.slane %v3721, 5
        %v3724 = vor.u32 %v3720, %v3723
        %v3725 = vrot.slane %v3724, 4
        %v3727 = vshll.u32 %v3628, 16
        %v3729 = vrot.slane %v3727, 5
        %v3730 = vsel %vm309, %v3725, %v3729
        %v3731 = vshrl.u32 %v3628, 16
        %v3733 = vrot.slane %v3731, 4
        %v3734 = vor.u32 %v3733, %v3729
        %v3735 = vrot.slane %v3734, 4
        %v3737 = vshll.u32 %v3629, 16
        %v3739 = vrot.slane %v3737, 5
        %v3740 = vsel %vm309, %v3735, %v3739
        %v3742 = vshrl.u32 %v3630, 16
        %v3744 = vrot.slane %v3742, 4
        %v3745 = vshll.u32 %v3630, 16
        %v3747 = vrot.slane %v3745, 5
        %v3748 = vor.u32 %v3744, %v3747
        %v3749 = vrot.slane %v3748, 4
        %v3751 = vshll.u32 %v3631, 16
        %v3753 = vrot.slane %v3751, 5
        %v3754 = vsel %vm309, %v3749, %v3753
        %v3755 = vshrl.u32 %v3631, 16
        %v3757 = vrot.slane %v3755, 4
        %v3758 = vor.u32 %v3757, %v3753
        %v3759 = vrot.slane %v3758, 4
        %v3761 = vshll.u32 %v3632, 16
        %v3763 = vrot.slane %v3761, 5
        %v3764 = vsel %vm309, %v3759, %v3763
        %v3766 = vshrl.u32 %v3633, 16
        %v3768 = vrot.slane %v3766, 4
        %v3769 = vshll.u32 %v3633, 16
        %v3771 = vrot.slane %v3769, 5
        %v3772 = vor.u32 %v3768, %v3771
        %v3773 = vrot.slane %v3772, 4
        %v3775 = vshll.u32 %v3634, 16
        %v3777 = vrot.slane %v3775, 5
        %v3778 = vsel %vm309, %v3773, %v3777
        %v3779 = vshrl.u32 %v3634, 16
        %v3781 = vrot.slane %v3779, 4
        %v3782 = vor.u32 %v3781, %v3777
        %v3783 = vrot.slane %v3782, 4
        %v3785 = vshll.u32 %v3635, 16
        %v3787 = vrot.slane %v3785, 5
        %v3788 = vsel %vm309, %v3783, %v3787
        %v3790 = vshrl.u32 %v3636, 16
        %v3792 = vrot.slane %v3790, 4
        %v3793 = vshll.u32 %v3636, 16
        %v3795 = vrot.slane %v3793, 5
        %v3796 = vor.u32 %v3792, %v3795
        %v3797 = vrot.slane %v3796, 4
        %v3799 = vshll.u32 %v3637, 16
        %v3801 = vrot.slane %v3799, 5
        %v3802 = vsel %vm309, %v3797, %v3801
        %v3803 = vshrl.u32 %v3637, 16
        %v3805 = vrot.slane %v3803, 4
        %v3806 = vor.u32 %v3805, %v3801
        %v3807 = vrot.slane %v3806, 4
        %v3809 = vshll.u32 %v3638, 16
        %v3811 = vrot.slane %v3809, 5
        %v3812 = vsel %vm309, %v3807, %v3811
        %v3814 = vshrl.u32 %v3639, 16
        %v3816 = vrot.slane %v3814, 4
        %v3817 = vshll.u32 %v3639, 16
        %v3819 = vrot.slane %v3817, 5
        %v3820 = vor.u32 %v3816, %v3819
        %v3821 = vrot.slane %v3820, 4
        %v3823 = vshll.u32 %v3640, 16
        %v3825 = vrot.slane %v3823, 5
        %v3826 = vsel %vm309, %v3821, %v3825
        %v3827 = vshrl.u32 %v3640, 16
        %v3829 = vrot.slane %v3827, 4
        %v3830 = vor.u32 %v3829, %v3825
        %v3831 = vrot.slane %v3830, 4
        %v3833 = vshll.u32 %v3641, 16
        %v3835 = vrot.slane %v3833, 5
        %v3836 = vsel %vm309, %v3831, %v3835
        %v3838 = vshrl.u32 %v3642, 16
        %v3840 = vrot.slane %v3838, 4
        %v3841 = vshll.u32 %v3642, 16
        %v3843 = vrot.slane %v3841, 5
        %v3844 = vor.u32 %v3840, %v3843
        %v3845 = vrot.slane %v3844, 4
        %v3847 = vshll.u32 %v3643, 16
        %v3849 = vrot.slane %v3847, 5
        %v3850 = vsel %vm309, %v3845, %v3849
        %v3851 = vshrl.u32 %v3643, 16
        %v3853 = vrot.slane %v3851, 4
        %v3854 = vor.u32 %v3853, %v3849
        %v3855 = vrot.slane %v3854, 4
        %v3857 = vshll.u32 %v3644, 16
        %v3859 = vrot.slane %v3857, 5
        %v3860 = vsel %vm309, %v3855, %v3859
        %v3862 = vshrl.u32 %v3645, 16
        %v3864 = vrot.slane %v3862, 4
        %v3865 = vshll.u32 %v3645, 16
        %v3867 = vrot.slane %v3865, 5
        %v3868 = vor.u32 %v3864, %v3867
        %v3869 = vrot.slane %v3868, 4
        %v3871 = vshll.u32 %v3646, 16
        %v3873 = vrot.slane %v3871, 5
        %v3874 = vsel %vm309, %v3869, %v3873
        %v3875 = vshrl.u32 %v3646, 16
        %v3877 = vrot.slane %v3875, 4
        %v3878 = vor.u32 %v3877, %v3873
        %v3879 = vrot.slane %v3878, 4
        %v3881 = vshll.u32 %v3647, 16
        %v3883 = vrot.slane %v3881, 5
        %v3884 = vsel %vm309, %v3879, %v3883
        %v3886 = vshrl.u32 %v3648, 16
        %v3888 = vrot.slane %v3886, 4
        %v3889 = vshll.u32 %v3648, 16
        %v3891 = vrot.slane %v3889, 5
        %v3892 = vor.u32 %v3888, %v3891
        %v3893 = vrot.slane %v3892, 4
        %v3895 = vshll.u32 %v3649, 16
        %v3897 = vrot.slane %v3895, 5
        %v3898 = vsel %vm309, %v3893, %v3897
        %v3899 = vshrl.u32 %v3649, 16
        %v3901 = vrot.slane %v3899, 4
        %v3902 = vor.u32 %v3901, %v3897
        %v3903 = vrot.slane %v3902, 4
        %v3905 = vshll.u32 %v3650, 16
        %v3907 = vrot.slane %v3905, 5
        %v3908 = vsel %vm309, %v3903, %v3907
        %v3910 = vshrl.u32 %v3651, 16
        %v3912 = vrot.slane %v3910, 4
        %v3913 = vshll.u32 %v3651, 16
        %v3915 = vrot.slane %v3913, 5
        %v3916 = vor.u32 %v3912, %v3915
        %v3917 = vrot.slane %v3916, 4
        %v3919 = vshll.u32 %v3652, 16
        %v3921 = vrot.slane %v3919, 5
        %v3922 = vsel %vm309, %v3917, %v3921
        %v3923 = vshrl.u32 %v3652, 16
        %v3925 = vrot.slane %v3923, 4
        %v3926 = vor.u32 %v3925, %v3921
        %v3927 = vrot.slane %v3926, 4
        %v3929 = vshll.u32 %v3653, 16
        %v3931 = vrot.slane %v3929, 5
        %v3932 = vsel %vm309, %v3927, %v3931
        %v3934 = vshrl.u32 %v3654, 16
        %v3936 = vrot.slane %v3934, 4
        %v3937 = vshll.u32 %v3654, 16
        %v3939 = vrot.slane %v3937, 5
        %v3940 = vor.u32 %v3936, %v3939
        %v3941 = vrot.slane %v3940, 4
        %v3943 = vshll.u32 %v3655, 16
        %v3945 = vrot.slane %v3943, 5
        %v3946 = vsel %vm309, %v3941, %v3945
        %v3947 = vshrl.u32 %v3655, 16
        %v3949 = vrot.slane %v3947, 4
        %v3950 = vor.u32 %v3949, %v3945
        %v3951 = vrot.slane %v3950, 4
        %v3953 = vshll.u32 %v3656, 16
        %v3955 = vrot.slane %v3953, 5
        %v3956 = vsel %vm309, %v3951, %v3955
        %v3958 = vshrl.u32 %v3657, 16
        %v3960 = vrot.slane %v3958, 4
        %v3961 = vshll.u32 %v3657, 16
        %v3963 = vrot.slane %v3961, 5
        %v3964 = vor.u32 %v3960, %v3963
        %v3965 = vrot.slane %v3964, 4
        %v3967 = vshll.u32 %v3658, 16
        %v3969 = vrot.slane %v3967, 5
        %v3970 = vsel %vm309, %v3965, %v3969
        %v3971 = vshrl.u32 %v3658, 16
        %v3973 = vrot.slane %v3971, 4
        %v3974 = vor.u32 %v3973, %v3969
        %v3975 = vrot.slane %v3974, 4
        %v3977 = vshll.u32 %v3659, 16
        %v3979 = vrot.slane %v3977, 5
        %v3980 = vsel %vm309, %v3975, %v3979
        %v3982 = vshrl.u32 %v3660, 16
        %v3984 = vrot.slane %v3982, 4
        %v3985 = vshll.u32 %v3660, 16
        %v3987 = vrot.slane %v3985, 5
        %v3988 = vor.u32 %v3984, %v3987
        %v3989 = vrot.slane %v3988, 4
        %v3991 = vshll.u32 %v3661, 16
        %v3993 = vrot.slane %v3991, 5
        %v3994 = vsel %vm309, %v3989, %v3993
        %v3995 = vshrl.u32 %v3661, 16
        %v3997 = vrot.slane %v3995, 4
        %v3998 = vor.u32 %v3997, %v3993
        %v3999 = vrot.slane %v3998, 4
        %v4001 = vshll.u32 %v3662, 16
        %v4003 = vrot.slane %v4001, 5
        %v4004 = vsel %vm309, %v3999, %v4003
        %v4006 = vshrl.u32 %v3663, 16
        %v4008 = vrot.slane %v4006, 4
        %v4009 = vshll.u32 %v3663, 16
        %v4011 = vrot.slane %v4009, 5
        %v4012 = vor.u32 %v4008, %v4011
        %v4013 = vrot.slane %v4012, 4
        %v4015 = vshll.u32 %v3664, 16
        %v4017 = vrot.slane %v4015, 5
        %v4018 = vsel %vm309, %v4013, %v4017
        %v4019 = vshrl.u32 %v3664, 16
        %v4021 = vrot.slane %v4019, 4
        %v4022 = vor.u32 %v4021, %v4017
        %v4023 = vrot.slane %v4022, 4
        %v4025 = vshll.u32 %v3665, 16
        %v4027 = vrot.slane %v4025, 5
        %v4028 = vsel %vm309, %v4023, %v4027
        %v4030 = vshrl.u32 %v3666, 16
        %v4032 = vrot.slane %v4030, 4
        %v4033 = vshll.u32 %v3666, 16
        %v4035 = vrot.slane %v4033, 5
        %v4036 = vor.u32 %v4032, %v4035
        %v4037 = vrot.slane %v4036, 4
        %v4039 = vshll.u32 %v3667, 16
        %v4041 = vrot.slane %v4039, 5
        %v4042 = vsel %vm309, %v4037, %v4041
        %v4043 = vshrl.u32 %v3667, 16
        %v4045 = vrot.slane %v4043, 4
        %v4046 = vor.u32 %v4045, %v4041
        %v4047 = vrot.slane %v4046, 4
        %v4049 = vshll.u32 %v3668, 16
        %v4051 = vrot.slane %v4049, 5
        %v4052 = vsel %vm309, %v4047, %v4051
        %s4053 = scalar_lea.vmem %s248, 28
        %v4054 = vld [vmem:[%s4053] sm:$0xf]
        %v4055 = vunpack.c.l.b16 %v3682
        %v4056 = vunpack.c.l.b16 %v3692
        %v4057 = vunpack.c.l.b16 %v3706
        %v4058 = vunpack.c.l.b16 %v3716
        %v4059 = vunpack.c.l.b16 %v3730
        %v4060 = vunpack.c.l.b16 %v3740
        %v4061 = vunpack.c.l.b16 %v3754
        %v4062 = vunpack.c.l.b16 %v3764
        %v4063 = vunpack.c.l.b16 %v3778
        %v4064 = vunpack.c.l.b16 %v3788
        %v4065 = vunpack.c.l.b16 %v3802
        %v4066 = vunpack.c.l.b16 %v3812
        %v4067 = vunpack.c.l.b16 %v3826
        %v4068 = vunpack.c.l.b16 %v3836
        %v4069 = vunpack.c.l.b16 %v3850
        %v4070 = vunpack.c.l.b16 %v3860
        %v4071 = vunpack.c.l.b16 %v3874
        %v4072 = vunpack.c.l.b16 %v3884
        %v4073 = vunpack.c.l.b16 %v3898
        %v4074 = vunpack.c.l.b16 %v3908
        %v4075 = vunpack.c.l.b16 %v3922
        %v4076 = vunpack.c.l.b16 %v3932
        %v4077 = vunpack.c.l.b16 %v3946
        %v4078 = vunpack.c.l.b16 %v3956
        %v4079 = vunpack.c.l.b16 %v3970
        %v4080 = vunpack.c.l.b16 %v3980
        %v4081 = vunpack.c.l.b16 %v3994
        %v4082 = vunpack.c.l.b16 %v4004
        %v4083 = vunpack.c.l.b16 %v4018
        %v4084 = vunpack.c.l.b16 %v4028
        %v4085 = vunpack.c.l.b16 %v4042
        %v4086 = vunpack.c.l.b16 %v4052
        %v4087 = vpack.c.b16 %v4056, %v4055
        %v4088 = vpack.c.b16 %v4058, %v4057
        %v4089 = vpack.c.b16 %v4060, %v4059
        %v4090 = vpack.c.b16 %v4062, %v4061
        %v4091 = vpack.c.b16 %v4064, %v4063
        %v4092 = vpack.c.b16 %v4066, %v4065
        %v4093 = vpack.c.b16 %v4068, %v4067
        %v4094 = vpack.c.b16 %v4070, %v4069
        %v4095 = vpack.c.b16 %v4072, %v4071
        %v4096 = vpack.c.b16 %v4074, %v4073
        %v4097 = vpack.c.b16 %v4076, %v4075
        %v4098 = vpack.c.b16 %v4078, %v4077
        %v4099 = vpack.c.b16 %v4080, %v4079
        %v4100 = vpack.c.b16 %v4082, %v4081
        %v4101 = vpack.c.b16 %v4084, %v4083
        %v4102 = vpack.c.b16 %v4086, %v4085
        %v4104 = vsel %vm744, %v4087, 0
        %v4107 = vsel %vm744, %v4088, 0
        %v4110 = vsel %vm744, %v4089, 0
        %v4113 = vsel %vm744, %v4090, 0
        %v4116 = vsel %vm744, %v4091, 0
        %v4119 = vsel %vm744, %v4092, 0
        %v4122 = vsel %vm744, %v4093, 0
        %v4125 = vsel %vm744, %v4094, 0
        %v4128 = vsel %vm744, %v4095, 0
        %v4131 = vsel %vm744, %v4096, 0
        %v4134 = vsel %vm744, %v4097, 0
        %v4137 = vsel %vm744, %v4098, 0
        %v4140 = vsel %vm744, %v4099, 0
        %v4143 = vsel %vm744, %v4100, 0
        %v4146 = vsel %vm744, %v4101, 0
        %v4149 = vsel %vm744, %v4102, 0
        %v4152 = vsel %vm793, %v4054, 0
        %4154 = vmatprep.subr.bf16.mxu0 0
        %4155 = vmatpush1.bf16.msra.mxu0 %v4152
        %4156 = vmatprep.subr.bf16.mxu0 0
        %4157 = vmatpush1.bf16.msra.mxu0 0
        %4158 = vmatprep.subr.bf16.mxu0 0
        %4159 = vmatpush1.bf16.msra.mxu0 0
        %4160 = vmatprep.subr.bf16.mxu0 0
        %4161 = vmatpush1.bf16.msra.mxu0 0
        %4162 = vmatprep.subr.bf16.mxu0 0
        %4163 = vmatpush1.bf16.msra.mxu0 0
        %4164 = vmatprep.subr.bf16.mxu0 0
        %4165 = vmatpush1.bf16.msra.mxu0 0
        %4166 = vmatprep.subr.bf16.mxu0 0
        %4167 = vmatpush1.bf16.msra.mxu0 0
        %4168 = vmatprep.subr.bf16.mxu0 0
        %4169 = vmatpush1.bf16.msra.mxu0 0
        %4170 = vmatprep.subr.bf16.mxu0 0
        %4171 = vmatpush1.bf16.msra.mxu0 0
        %4172 = vmatprep.subr.bf16.mxu0 0
        %4173 = vmatpush1.bf16.msra.mxu0 0
        %4174 = vmatprep.subr.bf16.mxu0 0
        %4175 = vmatpush1.bf16.msra.mxu0 0
        %4176 = vmatprep.subr.bf16.mxu0 0
        %4177 = vmatpush1.bf16.msra.mxu0 0
        %4178 = vmatprep.subr.bf16.mxu0 0
        %4179 = vmatpush1.bf16.msra.mxu0 0
        %4180 = vmatprep.subr.bf16.mxu0 0
        %4181 = vmatpush1.bf16.msra.mxu0 0
        %4182 = vmatprep.subr.bf16.mxu0 0
        %4183 = vmatpush1.bf16.msra.mxu0 0
        %4184 = vmatprep.subr.bf16.mxu0 0
        %4185 = vmatpush1.bf16.msra.mxu0 0
        %4186 = vmatprep.mubr.bf16.mxu0 0
        %4187 = vmatmul.mubr.bf16.gmra.mrb[0].mxu0 %v4104
        %v4188 = vpop.f32.mrb[0].mxu0
        %v4189 = vadd.f32 0.0, %v4188
        %v4190 = vpop.f32.mrb[0].mxu0
        %v4191 = vpop.f32.mrb[0].mxu0
        %v4192 = vadd.f32 0.0, %v4191
        %v4193 = vpop.f32.mrb[0].mxu0
        %4194 = vmatprep.mubr.bf16.mxu0 0
        %4195 = vmatmul.mubr.bf16.gmra.mrb[0].mxu0 %v4107
        %v4196 = vpop.f32.mrb[0].mxu0
        %v4197 = vadd.f32 0.0, %v4196
        %v4198 = vpop.f32.mrb[0].mxu0
        %v4199 = vpop.f32.mrb[0].mxu0
        %v4200 = vadd.f32 0.0, %v4199
        %v4201 = vpop.f32.mrb[0].mxu0
        %4202 = vmatprep.mubr.bf16.mxu0 0
        %4203 = vmatmul.mubr.bf16.gmra.mrb[0].mxu0 %v4110
        %v4204 = vpop.f32.mrb[0].mxu0
        %v4205 = vadd.f32 0.0, %v4204
        %v4206 = vpop.f32.mrb[0].mxu0
        %v4207 = vpop.f32.mrb[0].mxu0
        %v4208 = vadd.f32 0.0, %v4207
        %v4209 = vpop.f32.mrb[0].mxu0
        %4210 = vmatprep.mubr.bf16.mxu0 0
        %4211 = vmatmul.mubr.bf16.gmra.mrb[0].mxu0 %v4113
        %v4212 = vpop.f32.mrb[0].mxu0
        %v4213 = vadd.f32 0.0, %v4212
        %v4214 = vpop.f32.mrb[0].mxu0
        %v4215 = vpop.f32.mrb[0].mxu0
        %v4216 = vadd.f32 0.0, %v4215
        %v4217 = vpop.f32.mrb[0].mxu0
        %4218 = vmatprep.mubr.bf16.mxu0 0
        %4219 = vmatmul.mubr.bf16.gmra.mrb[0].mxu0 %v4116
        %v4220 = vpop.f32.mrb[0].mxu0
        %v4221 = vadd.f32 0.0, %v4220
        %v4222 = vpop.f32.mrb[0].mxu0
        %v4223 = vpop.f32.mrb[0].mxu0
        %v4224 = vadd.f32 0.0, %v4223
        %v4225 = vpop.f32.mrb[0].mxu0
        %4226 = vmatprep.mubr.bf16.mxu0 0
        %4227 = vmatmul.mubr.bf16.gmra.mrb[0].mxu0 %v4119
        %v4228 = vpop.f32.mrb[0].mxu0
        %v4229 = vadd.f32 0.0, %v4228
        %v4230 = vpop.f32.mrb[0].mxu0
        %v4231 = vpop.f32.mrb[0].mxu0
        %v4232 = vadd.f32 0.0, %v4231
        %v4233 = vpop.f32.mrb[0].mxu0
        %4234 = vmatprep.mubr.bf16.mxu0 0
        %4235 = vmatmul.mubr.bf16.gmra.mrb[0].mxu0 %v4122
        %v4236 = vpop.f32.mrb[0].mxu0
        %v4237 = vadd.f32 0.0, %v4236
        %v4238 = vpop.f32.mrb[0].mxu0
        %v4239 = vpop.f32.mrb[0].mxu0
        %v4240 = vadd.f32 0.0, %v4239
        %v4241 = vpop.f32.mrb[0].mxu0
        %4242 = vmatprep.mubr.bf16.mxu0 0
        %4243 = vmatmul.mubr.bf16.gmra.mrb[0].mxu0 %v4125
        %v4244 = vpop.f32.mrb[0].mxu0
        %v4245 = vadd.f32 0.0, %v4244
        %v4246 = vpop.f32.mrb[0].mxu0
        %v4247 = vpop.f32.mrb[0].mxu0
        %v4248 = vadd.f32 0.0, %v4247
        %v4249 = vpop.f32.mrb[0].mxu0
        %4250 = vmatprep.mubr.bf16.mxu0 0
        %4251 = vmatmul.mubr.bf16.gmra.mrb[0].mxu0 %v4128
        %v4252 = vpop.f32.mrb[0].mxu0
        %v4253 = vadd.f32 0.0, %v4252
        %v4254 = vpop.f32.mrb[0].mxu0
        %v4255 = vpop.f32.mrb[0].mxu0
        %v4256 = vadd.f32 0.0, %v4255
        %v4257 = vpop.f32.mrb[0].mxu0
        %4258 = vmatprep.mubr.bf16.mxu0 0
        %4259 = vmatmul.mubr.bf16.gmra.mrb[0].mxu0 %v4131
        %v4260 = vpop.f32.mrb[0].mxu0
        %v4261 = vadd.f32 0.0, %v4260
        %v4262 = vpop.f32.mrb[0].mxu0
        %v4263 = vpop.f32.mrb[0].mxu0
        %v4264 = vadd.f32 0.0, %v4263
        %v4265 = vpop.f32.mrb[0].mxu0
        %4266 = vmatprep.mubr.bf16.mxu0 0
        %4267 = vmatmul.mubr.bf16.gmra.mrb[0].mxu0 %v4134
        %v4268 = vpop.f32.mrb[0].mxu0
        %v4269 = vadd.f32 0.0, %v4268
        %v4270 = vpop.f32.mrb[0].mxu0
        %v4271 = vpop.f32.mrb[0].mxu0
        %v4272 = vadd.f32 0.0, %v4271
        %v4273 = vpop.f32.mrb[0].mxu0
        %4274 = vmatprep.mubr.bf16.mxu0 0
        %4275 = vmatmul.mubr.bf16.gmra.mrb[0].mxu0 %v4137
        %v4276 = vpop.f32.mrb[0].mxu0
        %v4277 = vadd.f32 0.0, %v4276
        %v4278 = vpop.f32.mrb[0].mxu0
        %v4279 = vpop.f32.mrb[0].mxu0
        %v4280 = vadd.f32 0.0, %v4279
        %v4281 = vpop.f32.mrb[0].mxu0
        %4282 = vmatprep.mubr.bf16.mxu0 0
        %4283 = vmatmul.mubr.bf16.gmra.mrb[0].mxu0 %v4140
        %v4284 = vpop.f32.mrb[0].mxu0
        %v4285 = vadd.f32 0.0, %v4284
        %v4286 = vpop.f32.mrb[0].mxu0
        %v4287 = vpop.f32.mrb[0].mxu0
        %v4288 = vadd.f32 0.0, %v4287
        %v4289 = vpop.f32.mrb[0].mxu0
        %4290 = vmatprep.mubr.bf16.mxu0 0
        %4291 = vmatmul.mubr.bf16.gmra.mrb[0].mxu0 %v4143
        %v4292 = vpop.f32.mrb[0].mxu0
        %v4293 = vadd.f32 0.0, %v4292
        %v4294 = vpop.f32.mrb[0].mxu0
        %v4295 = vpop.f32.mrb[0].mxu0
        %v4296 = vadd.f32 0.0, %v4295
        %v4297 = vpop.f32.mrb[0].mxu0
        %4298 = vmatprep.mubr.bf16.mxu0 0
        %4299 = vmatmul.mubr.bf16.gmra.mrb[0].mxu0 %v4146
        %v4300 = vpop.f32.mrb[0].mxu0
        %v4301 = vadd.f32 0.0, %v4300
        %v4302 = vpop.f32.mrb[0].mxu0
        %v4303 = vpop.f32.mrb[0].mxu0
        %v4304 = vadd.f32 0.0, %v4303
        %v4305 = vpop.f32.mrb[0].mxu0
        %4306 = vmatprep.mubr.bf16.mxu0 0
        %4307 = vmatmul.mubr.bf16.gmra.mrb[0].mxu0 %v4149
        %v4308 = vpop.f32.mrb[0].mxu0
        %v4309 = vadd.f32 0.0, %v4308
        %v4310 = vpop.f32.mrb[0].mxu0
        %v4311 = vpop.f32.mrb[0].mxu0
        %v4312 = vadd.f32 0.0, %v4311
        %v4313 = vpop.f32.mrb[0].mxu0
        %4314 = vdwg.mxu0
        %v4315 = vadd.f32 %v3589, %v4189
        %v4316 = vadd.f32 %v3590, %v4192
        %v4317 = vadd.f32 %v3591, %v4197
        %v4318 = vadd.f32 %v3592, %v4200
        %v4319 = vadd.f32 %v3593, %v4205
        %v4320 = vadd.f32 %v3594, %v4208
        %v4321 = vadd.f32 %v3595, %v4213
        %v4322 = vadd.f32 %v3596, %v4216
        %v4323 = vadd.f32 %v3597, %v4221
        %v4324 = vadd.f32 %v3598, %v4224
        %v4325 = vadd.f32 %v3599, %v4229
        %v4326 = vadd.f32 %v3600, %v4232
        %v4327 = vadd.f32 %v3601, %v4237
        %v4328 = vadd.f32 %v3602, %v4240
        %v4329 = vadd.f32 %v3603, %v4245
        %v4330 = vadd.f32 %v3604, %v4248
        %v4331 = vadd.f32 %v3605, %v4253
        %v4332 = vadd.f32 %v3606, %v4256
        %v4333 = vadd.f32 %v3607, %v4261
        %v4334 = vadd.f32 %v3608, %v4264
        %v4335 = vadd.f32 %v3609, %v4269
        %v4336 = vadd.f32 %v3610, %v4272
        %v4337 = vadd.f32 %v3611, %v4277
        %v4338 = vadd.f32 %v3612, %v4280
        %v4339 = vadd.f32 %v3613, %v4285
        %v4340 = vadd.f32 %v3614, %v4288
        %v4341 = vadd.f32 %v3615, %v4293
        %v4342 = vadd.f32 %v3616, %v4296
        %v4343 = vadd.f32 %v3617, %v4301
        %v4344 = vadd.f32 %v3618, %v4304
        %v4345 = vadd.f32 %v3619, %v4309
        %v4346 = vadd.f32 %v3620, %v4312
        %v4347 = vld [vmem:[%s3262] sm:$0xe]
        %v4348 = vld [vmem:[%s3262 + $0xc] sm:$0xe]
        %v4349 = vld [vmem:[%s3262 + $0x18] sm:$0xe]
        %v4350 = vld [vmem:[%s3262 + $0x24] sm:$0xe]
        %v4351 = vld [vmem:[%s3262 + $0x30] sm:$0xe]
        %v4352 = vld [vmem:[%s3262 + $0x3c] sm:$0xe]
        %v4353 = vld [vmem:[%s3262 + $0x48] sm:$0xe]
        %v4354 = vld [vmem:[%s3262 + $0x54] sm:$0xe]
        %v4355 = vld [vmem:[%s3262 + $0x60] sm:$0xe]
        %v4356 = vld [vmem:[%s3262 + $0x6c] sm:$0xe]
        %v4357 = vld [vmem:[%s3262 + $0x78] sm:$0xe]
        %v4358 = vld [vmem:[%s3262 + $0x84] sm:$0xe]
        %v4359 = vld [vmem:[%s3262 + $0x90] sm:$0xe]
        %v4360 = vld [vmem:[%s3262 + $0x9c] sm:$0xe]
        %v4361 = vld [vmem:[%s3262 + $0xa8] sm:$0xe]
        %v4362 = vld [vmem:[%s3262 + $0xb4] sm:$0xe]
        %v4411 = vrot.slane %v4347, 5
        %v4412 = vrot.slane %v4411, 4
        %v4413 = vrot.slane %v3622, 5
        %v4414 = vsel %vm1300, %v4412, %v4413
        %v4415 = vrot.slane %v4413, 4
        %v4416 = vrot.slane %v3623, 5
        %v4417 = vsel %vm1300, %v4415, %v4416
        %v4418 = vrot.slane %v4348, 5
        %v4419 = vrot.slane %v4418, 4
        %v4420 = vrot.slane %v3625, 5
        %v4421 = vsel %vm1300, %v4419, %v4420
        %v4422 = vrot.slane %v4420, 4
        %v4423 = vrot.slane %v3626, 5
        %v4424 = vsel %vm1300, %v4422, %v4423
        %v4425 = vrot.slane %v4349, 5
        %v4426 = vrot.slane %v4425, 4
        %v4427 = vrot.slane %v3628, 5
        %v4428 = vsel %vm1300, %v4426, %v4427
        %v4429 = vrot.slane %v4427, 4
        %v4430 = vrot.slane %v3629, 5
        %v4431 = vsel %vm1300, %v4429, %v4430
        %v4432 = vrot.slane %v4350, 5
        %v4433 = vrot.slane %v4432, 4
        %v4434 = vrot.slane %v3631, 5
        %v4435 = vsel %vm1300, %v4433, %v4434
        %v4436 = vrot.slane %v4434, 4
        %v4437 = vrot.slane %v3632, 5
        %v4438 = vsel %vm1300, %v4436, %v4437
        %v4439 = vrot.slane %v4351, 5
        %v4440 = vrot.slane %v4439, 4
        %v4441 = vrot.slane %v3634, 5
        %v4442 = vsel %vm1300, %v4440, %v4441
        %v4443 = vrot.slane %v4441, 4
        %v4444 = vrot.slane %v3635, 5
        %v4445 = vsel %vm1300, %v4443, %v4444
        %v4446 = vrot.slane %v4352, 5
        %v4447 = vrot.slane %v4446, 4
        %v4448 = vrot.slane %v3637, 5
        %v4449 = vsel %vm1300, %v4447, %v4448
        %v4450 = vrot.slane %v4448, 4
        %v4451 = vrot.slane %v3638, 5
        %v4452 = vsel %vm1300, %v4450, %v4451
        %v4453 = vrot.slane %v4353, 5
        %v4454 = vrot.slane %v4453, 4
        %v4455 = vrot.slane %v3640, 5
        %v4456 = vsel %vm1300, %v4454, %v4455
        %v4457 = vrot.slane %v4455, 4
        %v4458 = vrot.slane %v3641, 5
        %v4459 = vsel %vm1300, %v4457, %v4458
        %v4460 = vrot.slane %v4354, 5
        %v4461 = vrot.slane %v4460, 4
        %v4462 = vrot.slane %v3643, 5
        %v4463 = vsel %vm1300, %v4461, %v4462
        %v4464 = vrot.slane %v4462, 4
        %v4465 = vrot.slane %v3644, 5
        %v4466 = vsel %vm1300, %v4464, %v4465
        %v4467 = vrot.slane %v4355, 5
        %v4468 = vrot.slane %v4467, 4
        %v4469 = vrot.slane %v3646, 5
        %v4470 = vsel %vm1300, %v4468, %v4469
        %v4471 = vrot.slane %v4469, 4
        %v4472 = vrot.slane %v3647, 5
        %v4473 = vsel %vm1300, %v4471, %v4472
        %v4474 = vrot.slane %v4356, 5
        %v4475 = vrot.slane %v4474, 4
        %v4476 = vrot.slane %v3649, 5
        %v4477 = vsel %vm1300, %v4475, %v4476
        %v4478 = vrot.slane %v4476, 4
        %v4479 = vrot.slane %v3650, 5
        %v4480 = vsel %vm1300, %v4478, %v4479
        %v4481 = vrot.slane %v4357, 5
        %v4482 = vrot.slane %v4481, 4
        %v4483 = vrot.slane %v3652, 5
        %v4484 = vsel %vm1300, %v4482, %v4483
        %v4485 = vrot.slane %v4483, 4
        %v4486 = vrot.slane %v3653, 5
        %v4487 = vsel %vm1300, %v4485, %v4486
        %v4488 = vrot.slane %v4358, 5
        %v4489 = vrot.slane %v4488, 4
        %v4490 = vrot.slane %v3655, 5
        %v4491 = vsel %vm1300, %v4489, %v4490
        %v4492 = vrot.slane %v4490, 4
        %v4493 = vrot.slane %v3656, 5
        %v4494 = vsel %vm1300, %v4492, %v4493
        %v4495 = vrot.slane %v4359, 5
        %v4496 = vrot.slane %v4495, 4
        %v4497 = vrot.slane %v3658, 5
        %v4498 = vsel %vm1300, %v4496, %v4497
        %v4499 = vrot.slane %v4497, 4
        %v4500 = vrot.slane %v3659, 5
        %v4501 = vsel %vm1300, %v4499, %v4500
        %v4502 = vrot.slane %v4360, 5
        %v4503 = vrot.slane %v4502, 4
        %v4504 = vrot.slane %v3661, 5
        %v4505 = vsel %vm1300, %v4503, %v4504
        %v4506 = vrot.slane %v4504, 4
        %v4507 = vrot.slane %v3662, 5
        %v4508 = vsel %vm1300, %v4506, %v4507
        %v4509 = vrot.slane %v4361, 5
        %v4510 = vrot.slane %v4509, 4
        %v4511 = vrot.slane %v3664, 5
        %v4512 = vsel %vm1300, %v4510, %v4511
        %v4513 = vrot.slane %v4511, 4
        %v4514 = vrot.slane %v3665, 5
        %v4515 = vsel %vm1300, %v4513, %v4514
        %v4516 = vrot.slane %v4362, 5
        %v4517 = vrot.slane %v4516, 4
        %v4518 = vrot.slane %v3667, 5
        %v4519 = vsel %vm1300, %v4517, %v4518
        %v4520 = vrot.slane %v4518, 4
        %v4521 = vrot.slane %v3668, 5
        %v4522 = vsel %vm1300, %v4520, %v4521
        %s4523 = scalar_lea.vmem %s248, 32
        %v4524 = vld [vmem:[%s4523] sm:$0xf]
        %v4525 = vunpack.c.l.b16 %v4414
        %v4526 = vunpack.c.l.b16 %v4417
        %v4527 = vunpack.c.l.b16 %v4421
        %v4528 = vunpack.c.l.b16 %v4424
        %v4529 = vunpack.c.l.b16 %v4428
        %v4530 = vunpack.c.l.b16 %v4431
        %v4531 = vunpack.c.l.b16 %v4435
        %v4532 = vunpack.c.l.b16 %v4438
        %v4533 = vunpack.c.l.b16 %v4442
        %v4534 = vunpack.c.l.b16 %v4445
        %v4535 = vunpack.c.l.b16 %v4449
        %v4536 = vunpack.c.l.b16 %v4452
        %v4537 = vunpack.c.l.b16 %v4456
        %v4538 = vunpack.c.l.b16 %v4459
        %v4539 = vunpack.c.l.b16 %v4463
        %v4540 = vunpack.c.l.b16 %v4466
        %v4541 = vunpack.c.l.b16 %v4470
        %v4542 = vunpack.c.l.b16 %v4473
        %v4543 = vunpack.c.l.b16 %v4477
        %v4544 = vunpack.c.l.b16 %v4480
        %v4545 = vunpack.c.l.b16 %v4484
        %v4546 = vunpack.c.l.b16 %v4487
        %v4547 = vunpack.c.l.b16 %v4491
        %v4548 = vunpack.c.l.b16 %v4494
        %v4549 = vunpack.c.l.b16 %v4498
        %v4550 = vunpack.c.l.b16 %v4501
        %v4551 = vunpack.c.l.b16 %v4505
        %v4552 = vunpack.c.l.b16 %v4508
        %v4553 = vunpack.c.l.b16 %v4512
        %v4554 = vunpack.c.l.b16 %v4515
        %v4555 = vunpack.c.l.b16 %v4519
        %v4556 = vunpack.c.l.b16 %v4522
        %v4557 = vpack.c.b16 %v4526, %v4525
        %v4558 = vpack.c.b16 %v4528, %v4527
        %v4559 = vpack.c.b16 %v4530, %v4529
        %v4560 = vpack.c.b16 %v4532, %v4531
        %v4561 = vpack.c.b16 %v4534, %v4533
        %v4562 = vpack.c.b16 %v4536, %v4535
        %v4563 = vpack.c.b16 %v4538, %v4537
        %v4564 = vpack.c.b16 %v4540, %v4539
        %v4565 = vpack.c.b16 %v4542, %v4541
        %v4566 = vpack.c.b16 %v4544, %v4543
        %v4567 = vpack.c.b16 %v4546, %v4545
        %v4568 = vpack.c.b16 %v4548, %v4547
        %v4569 = vpack.c.b16 %v4550, %v4549
        %v4570 = vpack.c.b16 %v4552, %v4551
        %v4571 = vpack.c.b16 %v4554, %v4553
        %v4572 = vpack.c.b16 %v4556, %v4555
        %v4574 = vsel %vm744, %v4557, 0
        %v4577 = vsel %vm744, %v4558, 0
        %v4580 = vsel %vm744, %v4559, 0
        %v4583 = vsel %vm744, %v4560, 0
        %v4586 = vsel %vm744, %v4561, 0
        %v4589 = vsel %vm744, %v4562, 0
        %v4592 = vsel %vm744, %v4563, 0
        %v4595 = vsel %vm744, %v4564, 0
        %v4598 = vsel %vm744, %v4565, 0
        %v4601 = vsel %vm744, %v4566, 0
        %v4604 = vsel %vm744, %v4567, 0
        %v4607 = vsel %vm744, %v4568, 0
        %v4610 = vsel %vm744, %v4569, 0
        %v4613 = vsel %vm744, %v4570, 0
        %v4616 = vsel %vm744, %v4571, 0
        %v4619 = vsel %vm744, %v4572, 0
        %v4622 = vsel %vm793, %v4524, 0
        %4624 = vmatprep.subr.bf16.mxu0 0
        %4625 = vmatpush1.bf16.msra.mxu0 %v4622
        %4626 = vmatprep.subr.bf16.mxu0 0
        %4627 = vmatpush1.bf16.msra.mxu0 0
        %4628 = vmatprep.subr.bf16.mxu0 0
        %4629 = vmatpush1.bf16.msra.mxu0 0
        %4630 = vmatprep.subr.bf16.mxu0 0
        %4631 = vmatpush1.bf16.msra.mxu0 0
        %4632 = vmatprep.subr.bf16.mxu0 0
        %4633 = vmatpush1.bf16.msra.mxu0 0
        %4634 = vmatprep.subr.bf16.mxu0 0
        %4635 = vmatpush1.bf16.msra.mxu0 0
        %4636 = vmatprep.subr.bf16.mxu0 0
        %4637 = vmatpush1.bf16.msra.mxu0 0
        %4638 = vmatprep.subr.bf16.mxu0 0
        %4639 = vmatpush1.bf16.msra.mxu0 0
        %4640 = vmatprep.subr.bf16.mxu0 0
        %4641 = vmatpush1.bf16.msra.mxu0 0
        %4642 = vmatprep.subr.bf16.mxu0 0
        %4643 = vmatpush1.bf16.msra.mxu0 0
        %4644 = vmatprep.subr.bf16.mxu0 0
        %4645 = vmatpush1.bf16.msra.mxu0 0
        %4646 = vmatprep.subr.bf16.mxu0 0
        %4647 = vmatpush1.bf16.msra.mxu0 0
        %4648 = vmatprep.subr.bf16.mxu0 0
        %4649 = vmatpush1.bf16.msra.mxu0 0
        %4650 = vmatprep.subr.bf16.mxu0 0
        %4651 = vmatpush1.bf16.msra.mxu0 0
        %4652 = vmatprep.subr.bf16.mxu0 0
        %4653 = vmatpush1.bf16.msra.mxu0 0
        %4654 = vmatprep.subr.bf16.mxu0 0
        %4655 = vmatpush1.bf16.msra.mxu0 0
        %4656 = vmatprep.mubr.bf16.mxu0 0
        %4657 = vmatmul.mubr.bf16.gmra.mrb[0].mxu0 %v4574
        %v4658 = vpop.f32.mrb[0].mxu0
        %v4659 = vadd.f32 0.0, %v4658
        %v4660 = vpop.f32.mrb[0].mxu0
        %v4661 = vpop.f32.mrb[0].mxu0
        %v4662 = vadd.f32 0.0, %v4661
        %v4663 = vpop.f32.mrb[0].mxu0
        %4664 = vmatprep.mubr.bf16.mxu0 0
        %4665 = vmatmul.mubr.bf16.gmra.mrb[0].mxu0 %v4577
        %v4666 = vpop.f32.mrb[0].mxu0
        %v4667 = vadd.f32 0.0, %v4666
        %v4668 = vpop.f32.mrb[0].mxu0
        %v4669 = vpop.f32.mrb[0].mxu0
        %v4670 = vadd.f32 0.0, %v4669
        %v4671 = vpop.f32.mrb[0].mxu0
        %4672 = vmatprep.mubr.bf16.mxu0 0
        %4673 = vmatmul.mubr.bf16.gmra.mrb[0].mxu0 %v4580
        %v4674 = vpop.f32.mrb[0].mxu0
        %v4675 = vadd.f32 0.0, %v4674
        %v4676 = vpop.f32.mrb[0].mxu0
        %v4677 = vpop.f32.mrb[0].mxu0
        %v4678 = vadd.f32 0.0, %v4677
        %v4679 = vpop.f32.mrb[0].mxu0
        %4680 = vmatprep.mubr.bf16.mxu0 0
        %4681 = vmatmul.mubr.bf16.gmra.mrb[0].mxu0 %v4583
        %v4682 = vpop.f32.mrb[0].mxu0
        %v4683 = vadd.f32 0.0, %v4682
        %v4684 = vpop.f32.mrb[0].mxu0
        %v4685 = vpop.f32.mrb[0].mxu0
        %v4686 = vadd.f32 0.0, %v4685
        %v4687 = vpop.f32.mrb[0].mxu0
        %4688 = vmatprep.mubr.bf16.mxu0 0
        %4689 = vmatmul.mubr.bf16.gmra.mrb[0].mxu0 %v4586
        %v4690 = vpop.f32.mrb[0].mxu0
        %v4691 = vadd.f32 0.0, %v4690
        %v4692 = vpop.f32.mrb[0].mxu0
        %v4693 = vpop.f32.mrb[0].mxu0
        %v4694 = vadd.f32 0.0, %v4693
        %v4695 = vpop.f32.mrb[0].mxu0
        %4696 = vmatprep.mubr.bf16.mxu0 0
        %4697 = vmatmul.mubr.bf16.gmra.mrb[0].mxu0 %v4589
        %v4698 = vpop.f32.mrb[0].mxu0
        %v4699 = vadd.f32 0.0, %v4698
        %v4700 = vpop.f32.mrb[0].mxu0
        %v4701 = vpop.f32.mrb[0].mxu0
        %v4702 = vadd.f32 0.0, %v4701
        %v4703 = vpop.f32.mrb[0].mxu0
        %4704 = vmatprep.mubr.bf16.mxu0 0
        %4705 = vmatmul.mubr.bf16.gmra.mrb[0].mxu0 %v4592
        %v4706 = vpop.f32.mrb[0].mxu0
        %v4707 = vadd.f32 0.0, %v4706
        %v4708 = vpop.f32.mrb[0].mxu0
        %v4709 = vpop.f32.mrb[0].mxu0
        %v4710 = vadd.f32 0.0, %v4709
        %v4711 = vpop.f32.mrb[0].mxu0
        %4712 = vmatprep.mubr.bf16.mxu0 0
        %4713 = vmatmul.mubr.bf16.gmra.mrb[0].mxu0 %v4595
        %v4714 = vpop.f32.mrb[0].mxu0
        %v4715 = vadd.f32 0.0, %v4714
        %v4716 = vpop.f32.mrb[0].mxu0
        %v4717 = vpop.f32.mrb[0].mxu0
        %v4718 = vadd.f32 0.0, %v4717
        %v4719 = vpop.f32.mrb[0].mxu0
        %4720 = vmatprep.mubr.bf16.mxu0 0
        %4721 = vmatmul.mubr.bf16.gmra.mrb[0].mxu0 %v4598
        %v4722 = vpop.f32.mrb[0].mxu0
        %v4723 = vadd.f32 0.0, %v4722
        %v4724 = vpop.f32.mrb[0].mxu0
        %v4725 = vpop.f32.mrb[0].mxu0
        %v4726 = vadd.f32 0.0, %v4725
        %v4727 = vpop.f32.mrb[0].mxu0
        %4728 = vmatprep.mubr.bf16.mxu0 0
        %4729 = vmatmul.mubr.bf16.gmra.mrb[0].mxu0 %v4601
        %v4730 = vpop.f32.mrb[0].mxu0
        %v4731 = vadd.f32 0.0, %v4730
        %v4732 = vpop.f32.mrb[0].mxu0
        %v4733 = vpop.f32.mrb[0].mxu0
        %v4734 = vadd.f32 0.0, %v4733
        %v4735 = vpop.f32.mrb[0].mxu0
        %4736 = vmatprep.mubr.bf16.mxu0 0
        %4737 = vmatmul.mubr.bf16.gmra.mrb[0].mxu0 %v4604
        %v4738 = vpop.f32.mrb[0].mxu0
        %v4739 = vadd.f32 0.0, %v4738
        %v4740 = vpop.f32.mrb[0].mxu0
        %v4741 = vpop.f32.mrb[0].mxu0
        %v4742 = vadd.f32 0.0, %v4741
        %v4743 = vpop.f32.mrb[0].mxu0
        %4744 = vmatprep.mubr.bf16.mxu0 0
        %4745 = vmatmul.mubr.bf16.gmra.mrb[0].mxu0 %v4607
        %v4746 = vpop.f32.mrb[0].mxu0
        %v4747 = vadd.f32 0.0, %v4746
        %v4748 = vpop.f32.mrb[0].mxu0
        %v4749 = vpop.f32.mrb[0].mxu0
        %v4750 = vadd.f32 0.0, %v4749
        %v4751 = vpop.f32.mrb[0].mxu0
        %4752 = vmatprep.mubr.bf16.mxu0 0
        %4753 = vmatmul.mubr.bf16.gmra.mrb[0].mxu0 %v4610
        %v4754 = vpop.f32.mrb[0].mxu0
        %v4755 = vadd.f32 0.0, %v4754
        %v4756 = vpop.f32.mrb[0].mxu0
        %v4757 = vpop.f32.mrb[0].mxu0
        %v4758 = vadd.f32 0.0, %v4757
        %v4759 = vpop.f32.mrb[0].mxu0
        %4760 = vmatprep.mubr.bf16.mxu0 0
        %4761 = vmatmul.mubr.bf16.gmra.mrb[0].mxu0 %v4613
        %v4762 = vpop.f32.mrb[0].mxu0
        %v4763 = vadd.f32 0.0, %v4762
        %v4764 = vpop.f32.mrb[0].mxu0
        %v4765 = vpop.f32.mrb[0].mxu0
        %v4766 = vadd.f32 0.0, %v4765
        %v4767 = vpop.f32.mrb[0].mxu0
        %4768 = vmatprep.mubr.bf16.mxu0 0
        %4769 = vmatmul.mubr.bf16.gmra.mrb[0].mxu0 %v4616
        %v4770 = vpop.f32.mrb[0].mxu0
        %v4771 = vadd.f32 0.0, %v4770
        %v4772 = vpop.f32.mrb[0].mxu0
        %v4773 = vpop.f32.mrb[0].mxu0
        %v4774 = vadd.f32 0.0, %v4773
        %v4775 = vpop.f32.mrb[0].mxu0
        %4776 = vmatprep.mubr.bf16.mxu0 0
        %4777 = vmatmul.mubr.bf16.gmra.mrb[0].mxu0 %v4619
        %v4778 = vpop.f32.mrb[0].mxu0
        %v4779 = vadd.f32 0.0, %v4778
        %v4780 = vpop.f32.mrb[0].mxu0
        %v4781 = vpop.f32.mrb[0].mxu0
        %v4782 = vadd.f32 0.0, %v4781
        %v4783 = vpop.f32.mrb[0].mxu0
        %4784 = vdwg.mxu0
        %v4785 = vadd.f32 %v4315, %v4659
        %v4786 = vadd.f32 %v4316, %v4662
        %v4787 = vadd.f32 %v4317, %v4667
        %v4788 = vadd.f32 %v4318, %v4670
        %v4789 = vadd.f32 %v4319, %v4675
        %v4790 = vadd.f32 %v4320, %v4678
        %v4791 = vadd.f32 %v4321, %v4683
        %v4792 = vadd.f32 %v4322, %v4686
        %v4793 = vadd.f32 %v4323, %v4691
        %v4794 = vadd.f32 %v4324, %v4694
        %v4795 = vadd.f32 %v4325, %v4699
        %v4796 = vadd.f32 %v4326, %v4702
        %v4797 = vadd.f32 %v4327, %v4707
        %v4798 = vadd.f32 %v4328, %v4710
        %v4799 = vadd.f32 %v4329, %v4715
        %v4800 = vadd.f32 %v4330, %v4718
        %v4801 = vadd.f32 %v4331, %v4723
        %v4802 = vadd.f32 %v4332, %v4726
        %v4803 = vadd.f32 %v4333, %v4731
        %v4804 = vadd.f32 %v4334, %v4734
        %v4805 = vadd.f32 %v4335, %v4739
        %v4806 = vadd.f32 %v4336, %v4742
        %v4807 = vadd.f32 %v4337, %v4747
        %v4808 = vadd.f32 %v4338, %v4750
        %v4809 = vadd.f32 %v4339, %v4755
        %v4810 = vadd.f32 %v4340, %v4758
        %v4811 = vadd.f32 %v4341, %v4763
        %v4812 = vadd.f32 %v4342, %v4766
        %v4813 = vadd.f32 %v4343, %v4771
        %v4814 = vadd.f32 %v4344, %v4774
        %v4815 = vadd.f32 %v4345, %v4779
        %v4816 = vadd.f32 %v4346, %v4782
        %v4818 = vlaneseq
        %v4819 = vshrl.u32 %v4818, 7
        %v4820 = vsub.s32 0, %v4819
        %v4821 = vrot.slane %v256, %v4820
        %v4823 = vmul.f32 %v4785, %v4821
        %v4824 = vmul.f32 %v4786, %v4821
        %v4825 = vmul.f32 %v4787, %v4821
        %v4826 = vmul.f32 %v4788, %v4821
        %v4827 = vmul.f32 %v4789, %v4821
        %v4828 = vmul.f32 %v4790, %v4821
        %v4829 = vmul.f32 %v4791, %v4821
        %v4830 = vmul.f32 %v4792, %v4821
        %v4831 = vmul.f32 %v4793, %v4821
        %v4832 = vmul.f32 %v4794, %v4821
        %v4833 = vmul.f32 %v4795, %v4821
        %v4834 = vmul.f32 %v4796, %v4821
        %v4835 = vmul.f32 %v4797, %v4821
        %v4836 = vmul.f32 %v4798, %v4821
        %v4837 = vmul.f32 %v4799, %v4821
        %v4838 = vmul.f32 %v4800, %v4821
        %v4839 = vmul.f32 %v4801, %v4821
        %v4840 = vmul.f32 %v4802, %v4821
        %v4841 = vmul.f32 %v4803, %v4821
        %v4842 = vmul.f32 %v4804, %v4821
        %v4843 = vmul.f32 %v4805, %v4821
        %v4844 = vmul.f32 %v4806, %v4821
        %v4845 = vmul.f32 %v4807, %v4821
        %v4846 = vmul.f32 %v4808, %v4821
        %v4847 = vmul.f32 %v4809, %v4821
        %v4848 = vmul.f32 %v4810, %v4821
        %v4849 = vmul.f32 %v4811, %v4821
        %v4850 = vmul.f32 %v4812, %v4821
        %v4851 = vmul.f32 %v4813, %v4821
        %v4852 = vmul.f32 %v4814, %v4821
        %v4853 = vmul.f32 %v4815, %v4821
        %v4854 = vmul.f32 %v4816, %v4821
        %v4856 = vlaneseq
        %v4857 = vshrl.u32 %v4856, 7
        %v4858 = vsub.s32 0, %v4857
        %v4859 = vrot.slane %v257, %v4858
        %v4861 = vadd.f32 %v4823, %v4859
        %v4862 = vadd.f32 %v4824, %v4859
        %v4863 = vadd.f32 %v4825, %v4859
        %v4864 = vadd.f32 %v4826, %v4859
        %v4865 = vadd.f32 %v4827, %v4859
        %v4866 = vadd.f32 %v4828, %v4859
        %v4867 = vadd.f32 %v4829, %v4859
        %v4868 = vadd.f32 %v4830, %v4859
        %v4869 = vadd.f32 %v4831, %v4859
        %v4870 = vadd.f32 %v4832, %v4859
        %v4871 = vadd.f32 %v4833, %v4859
        %v4872 = vadd.f32 %v4834, %v4859
        %v4873 = vadd.f32 %v4835, %v4859
        %v4874 = vadd.f32 %v4836, %v4859
        %v4875 = vadd.f32 %v4837, %v4859
        %v4876 = vadd.f32 %v4838, %v4859
        %v4877 = vadd.f32 %v4839, %v4859
        %v4878 = vadd.f32 %v4840, %v4859
        %v4879 = vadd.f32 %v4841, %v4859
        %v4880 = vadd.f32 %v4842, %v4859
        %v4881 = vadd.f32 %v4843, %v4859
        %v4882 = vadd.f32 %v4844, %v4859
        %v4883 = vadd.f32 %v4845, %v4859
        %v4884 = vadd.f32 %v4846, %v4859
        %v4885 = vadd.f32 %v4847, %v4859
        %v4886 = vadd.f32 %v4848, %v4859
        %v4887 = vadd.f32 %v4849, %v4859
        %v4888 = vadd.f32 %v4850, %v4859
        %v4889 = vadd.f32 %v4851, %v4859
        %v4890 = vadd.f32 %v4852, %v4859
        %v4891 = vadd.f32 %v4853, %v4859
        %v4892 = vadd.f32 %v4854, %v4859
        %v4893 = vmax.f32 %v4861, 0.0
        %v4894 = vmax.f32 %v4862, 0.0
        %v4895 = vmax.f32 %v4863, 0.0
        %v4896 = vmax.f32 %v4864, 0.0
        %v4897 = vmax.f32 %v4865, 0.0
        %v4898 = vmax.f32 %v4866, 0.0
        %v4899 = vmax.f32 %v4867, 0.0
        %v4900 = vmax.f32 %v4868, 0.0
        %v4901 = vmax.f32 %v4869, 0.0
        %v4902 = vmax.f32 %v4870, 0.0
        %v4903 = vmax.f32 %v4871, 0.0
        %v4904 = vmax.f32 %v4872, 0.0
        %v4905 = vmax.f32 %v4873, 0.0
        %v4906 = vmax.f32 %v4874, 0.0
        %v4907 = vmax.f32 %v4875, 0.0
        %v4908 = vmax.f32 %v4876, 0.0
        %v4909 = vmax.f32 %v4877, 0.0
        %v4910 = vmax.f32 %v4878, 0.0
        %v4911 = vmax.f32 %v4879, 0.0
        %v4912 = vmax.f32 %v4880, 0.0
        %v4913 = vmax.f32 %v4881, 0.0
        %v4914 = vmax.f32 %v4882, 0.0
        %v4915 = vmax.f32 %v4883, 0.0
        %v4916 = vmax.f32 %v4884, 0.0
        %v4917 = vmax.f32 %v4885, 0.0
        %v4918 = vmax.f32 %v4886, 0.0
        %v4919 = vmax.f32 %v4887, 0.0
        %v4920 = vmax.f32 %v4888, 0.0
        %v4921 = vmax.f32 %v4889, 0.0
        %v4922 = vmax.f32 %v4890, 0.0
        %v4923 = vmax.f32 %v4891, 0.0
        %v4924 = vmax.f32 %v4892, 0.0
        %v4925 = vpack.c.bf16 %v4894, %v4893
        %v4926 = vpack.c.bf16 %v4896, %v4895
        %v4927 = vpack.c.bf16 %v4898, %v4897
        %v4928 = vpack.c.bf16 %v4900, %v4899
        %v4929 = vpack.c.bf16 %v4902, %v4901
        %v4930 = vpack.c.bf16 %v4904, %v4903
        %v4931 = vpack.c.bf16 %v4906, %v4905
        %v4932 = vpack.c.bf16 %v4908, %v4907
        %v4933 = vpack.c.bf16 %v4910, %v4909
        %v4934 = vpack.c.bf16 %v4912, %v4911
        %v4935 = vpack.c.bf16 %v4914, %v4913
        %v4936 = vpack.c.bf16 %v4916, %v4915
        %v4937 = vpack.c.bf16 %v4918, %v4917
        %v4938 = vpack.c.bf16 %v4920, %v4919
        %v4939 = vpack.c.bf16 %v4922, %v4921
        %v4940 = vpack.c.bf16 %v4924, %v4923
        %v4957 = vunpack.c.l.b16 %v4925
        %v4958 = vunpack.c.h.b16 %v4925
        %v4959 = vunpack.c.l.b16 %v4926
        %v4960 = vunpack.c.h.b16 %v4926
        %v4961 = vunpack.c.l.b16 %v4927
        %v4962 = vunpack.c.h.b16 %v4927
        %v4963 = vunpack.c.l.b16 %v4928
        %v4964 = vunpack.c.h.b16 %v4928
        %v4965 = vunpack.c.l.b16 %v4929
        %v4966 = vunpack.c.h.b16 %v4929
        %v4967 = vunpack.c.l.b16 %v4930
        %v4968 = vunpack.c.h.b16 %v4930
        %v4969 = vunpack.c.l.b16 %v4931
        %v4970 = vunpack.c.h.b16 %v4931
        %v4971 = vunpack.c.l.b16 %v4932
        %v4972 = vunpack.c.h.b16 %v4932
        %v4973 = vunpack.c.l.b16 %v4933
        %v4974 = vunpack.c.h.b16 %v4933
        %v4975 = vunpack.c.l.b16 %v4934
        %v4976 = vunpack.c.h.b16 %v4934
        %v4977 = vunpack.c.l.b16 %v4935
        %v4978 = vunpack.c.h.b16 %v4935
        %v4979 = vunpack.c.l.b16 %v4936
        %v4980 = vunpack.c.h.b16 %v4936
        %v4981 = vunpack.c.l.b16 %v4937
        %v4982 = vunpack.c.h.b16 %v4937
        %v4983 = vunpack.c.l.b16 %v4938
        %v4984 = vunpack.c.h.b16 %v4938
        %v4985 = vunpack.c.l.b16 %v4939
        %v4986 = vunpack.c.h.b16 %v4939
        %v4987 = vunpack.c.l.b16 %v4940
        %v4988 = vunpack.c.h.b16 %v4940
        %v4989 = vpack.c.b16 %v4957, %v4957
        %v4990 = vpack.c.b16 %v4958, %v4958
        %v4991 = vpack.c.b16 %v4959, %v4959
        %v4992 = vpack.c.b16 %v4960, %v4960
        %v4993 = vpack.c.b16 %v4961, %v4961
        %v4994 = vpack.c.b16 %v4962, %v4962
        %v4995 = vpack.c.b16 %v4963, %v4963
        %v4996 = vpack.c.b16 %v4964, %v4964
        %v4997 = vpack.c.b16 %v4965, %v4965
        %v4998 = vpack.c.b16 %v4966, %v4966
        %v4999 = vpack.c.b16 %v4967, %v4967
        %v5000 = vpack.c.b16 %v4968, %v4968
        %v5001 = vpack.c.b16 %v4969, %v4969
        %v5002 = vpack.c.b16 %v4970, %v4970
        %v5003 = vpack.c.b16 %v4971, %v4971
        %v5004 = vpack.c.b16 %v4972, %v4972
        %v5005 = vpack.c.b16 %v4973, %v4973
        %v5006 = vpack.c.b16 %v4974, %v4974
        %v5007 = vpack.c.b16 %v4975, %v4975
        %v5008 = vpack.c.b16 %v4976, %v4976
        %v5009 = vpack.c.b16 %v4977, %v4977
        %v5010 = vpack.c.b16 %v4978, %v4978
        %v5011 = vpack.c.b16 %v4979, %v4979
        %v5012 = vpack.c.b16 %v4980, %v4980
        %v5013 = vpack.c.b16 %v4981, %v4981
        %v5014 = vpack.c.b16 %v4982, %v4982
        %v5015 = vpack.c.b16 %v4983, %v4983
        %v5016 = vpack.c.b16 %v4984, %v4984
        %v5017 = vpack.c.b16 %v4985, %v4985
        %v5018 = vpack.c.b16 %v4986, %v4986
        %v5019 = vpack.c.b16 %v4987, %v4987
        %v5020 = vpack.c.b16 %v4988, %v4988
        %vm5053 = vcmask 519168
        %5054 = vst.msk [vmem:[%s239] sm:$0xf] %vm5053, %v4989
        %5055 = vst.msk [vmem:[%s239 + $0x4] sm:$0xf] %vm5053, %v4990
        %5056 = vst.msk [vmem:[%s239 + $0x8] sm:$0xf] %vm5053, %v4991
        %5057 = vst.msk [vmem:[%s239 + $0xc] sm:$0xf] %vm5053, %v4992
        %5058 = vst.msk [vmem:[%s239 + $0x10] sm:$0xf] %vm5053, %v4993
        %5059 = vst.msk [vmem:[%s239 + $0x14] sm:$0xf] %vm5053, %v4994
        %5060 = vst.msk [vmem:[%s239 + $0x18] sm:$0xf] %vm5053, %v4995
        %5061 = vst.msk [vmem:[%s239 + $0x1c] sm:$0xf] %vm5053, %v4996
        %5062 = vst.msk [vmem:[%s239 + $0x20] sm:$0xf] %vm5053, %v4997
        %5063 = vst.msk [vmem:[%s239 + $0x24] sm:$0xf] %vm5053, %v4998
        %5064 = vst.msk [vmem:[%s239 + $0x28] sm:$0xf] %vm5053, %v4999
        %5065 = vst.msk [vmem:[%s239 + $0x2c] sm:$0xf] %vm5053, %v5000
        %5066 = vst.msk [vmem:[%s239 + $0x30] sm:$0xf] %vm5053, %v5001
        %5067 = vst.msk [vmem:[%s239 + $0x34] sm:$0xf] %vm5053, %v5002
        %5068 = vst.msk [vmem:[%s239 + $0x38] sm:$0xf] %vm5053, %v5003
        %5069 = vst.msk [vmem:[%s239 + $0x3c] sm:$0xf] %vm5053, %v5004
        %5070 = vst.msk [vmem:[%s239 + $0x40] sm:$0xf] %vm5053, %v5005
        %5071 = vst.msk [vmem:[%s239 + $0x44] sm:$0xf] %vm5053, %v5006
        %5072 = vst.msk [vmem:[%s239 + $0x48] sm:$0xf] %vm5053, %v5007
        %5073 = vst.msk [vmem:[%s239 + $0x4c] sm:$0xf] %vm5053, %v5008
        %5074 = vst.msk [vmem:[%s239 + $0x50] sm:$0xf] %vm5053, %v5009
        %5075 = vst.msk [vmem:[%s239 + $0x54] sm:$0xf] %vm5053, %v5010
        %5076 = vst.msk [vmem:[%s239 + $0x58] sm:$0xf] %vm5053, %v5011
        %5077 = vst.msk [vmem:[%s239 + $0x5c] sm:$0xf] %vm5053, %v5012
        %5078 = vst.msk [vmem:[%s239 + $0x60] sm:$0xf] %vm5053, %v5013
        %5079 = vst.msk [vmem:[%s239 + $0x64] sm:$0xf] %vm5053, %v5014
        %5080 = vst.msk [vmem:[%s239 + $0x68] sm:$0xf] %vm5053, %v5015
        %5081 = vst.msk [vmem:[%s239 + $0x6c] sm:$0xf] %vm5053, %v5016
        %5082 = vst.msk [vmem:[%s239 + $0x70] sm:$0xf] %vm5053, %v5017
        %5083 = vst.msk [vmem:[%s239 + $0x74] sm:$0xf] %vm5053, %v5018
        %5084 = vst.msk [vmem:[%s239 + $0x78] sm:$0xf] %vm5053, %v5019
        %5085 = vst.msk [vmem:[%s239 + $0x7c] sm:$0xf] %vm5053, %v5020
        %s5086 = sand.u32 %s144, 1
        %s5087 = scalar_lea.sflag [#allocation3], %s5086
        %s5088 = sand.u32 %s144, 1
        %s5089 = smul.addr %s5088, 128
        %s5090 = scalar_lea.vmem [#allocation2], %s5089
        // Predicated region
        $region37: #{tpu_custom_call.1} parent=35 // pred_check
          %p5091 = pneg %p154
        $region38: #{tpu_custom_call.1} parent=35 // pred_check_branch
          %5093 = sbr.rel (%p5091) target = $region40
        $region39: #{tpu_custom_call.1} parent=35 // pred_region
          %s5095 = ssub.s32 2048, 2048
          %5096 = vsyncadd %s5087, %s5095
          %s5097 = smul.addr %s23, 32
          %s5098 = sadd.s32 %s22, %s5097
          %s5099 = smul.addr %s5098, 64
          %s5100 = scalar_lea.hbm %s4, %s5099
          %s5101 = sshll.u32 %s5090, 4
          %s5102 = int_to_ptr.vmem [resolvable:$true] %s5101
          %5107 = dma.vmem_to_hbm [thread:$0]  %s5102, 2048, %s5100, %s5087, 64, 64, 4
        $region40: #{tpu_custom_call.1} parent=35 // pred_fallthru
          _
      $region36: #{tpu_custom_call.1} parent=5 // pred_fallthru
        _
      %p5108 = scmp.le.s32.totalorder 2, %s13
      // Predicated region
      $region41: #{tpu_custom_call.1} parent=5 // pred_check
        %p5109 = pneg %p5108
      $region42: #{tpu_custom_call.1} parent=5 // pred_check_branch
        %5111 = sbr.rel (%p5109) target = $region44
      $region43: #{tpu_custom_call.1} parent=5 // pred_region
        %s5112 = ssub.s32 %s13, 2
        // Predicated region
        $region45: #{tpu_custom_call.1} parent=43 // pred_check
          %p5113 = pneg %p160
        $region46: #{tpu_custom_call.1} parent=43 // pred_check_branch
          %5115 = sbr.rel (%p5113) target = $region48
        $region47: #{tpu_custom_call.1} parent=43 // pred_region
          %s5116 = sand.u32 %s145, 1
          %s5117 = scalar_lea.sflag [#allocation3], %s5116
          %s5118 = sand.u32 %s145, 1
          %s5119 = smul.addr %s5118, 128
          %s5120 = scalar_lea.vmem [#allocation2], %s5119
          %5121 = dma.done %s5117, 2048
        $region48: #{tpu_custom_call.1} parent=43 // pred_fallthru
          _
      $region44: #{tpu_custom_call.1} parent=5 // pred_fallthru
        _
    $region6: #{tpu_custom_call.1} parent=1 // loop_footer
      %s17 = sadd.s32 1, %s13
    $region7: #{tpu_custom_call.1} parent=1 // loop_footer_branch
      %12 = sbr.rel target = $region3
    $region8: #{tpu_custom_call.1} parent=1 // loop_exit
      _
    %5122 = vsyncpa [#allocation3], 1
    %s5123 = scalar_lea.sflag [#allocation3], 1
    %5124 = vsyncpa %s5123, 1

</llo_original>
